<compile_context>
chip_gen: v6e
topology: v6e:2x2x1
jax: 0.10.0
libtpu: 0.0.40
codegen_flags: <defaults>
</compile_context>

<pallas_src>
import jax
import jax.numpy as jnp
from jax.experimental import pallas as pl
from jax.experimental.pallas import tpu as pltpu

EPS = 1e-5


def _conv_bn_add_kernel(x_ref, w_ref, gamma_ref, beta_ref, res_ref, o_ref):
    # x_ref:      [M, Cin]   bf16   (M = N*Ho*Wo, full row extent in every block)
    # w_ref:      [Cin, Ct]  bf16   (column tile of the pre-relayouted weight)
    # gamma/beta: [1, Ct]    f32
    # res_ref:    [M, Ct]    f32
    # o_ref:      [M, Ct]    f32
    y = jnp.dot(x_ref[...], w_ref[...],
                preferred_element_type=jnp.float32)        # [M, Ct], f32 acc on MXU

    # BatchNorm (training mode): biased mean/var over N,H,W (= rows) per channel,
    # computed in a single reduction pass and folded into per-channel scale/bias.
    m = jnp.float32(1.0) / jnp.float32(y.shape[0])
    mean = jnp.sum(y, axis=0, keepdims=True) * m           # [1, Ct]
    mean_sq = jnp.sum(y * y, axis=0, keepdims=True) * m    # [1, Ct]
    var = mean_sq - mean * mean
    inv = jax.lax.rsqrt(var + EPS)
    scale = inv * gamma_ref[...]                            # [1, Ct]
    bias = beta_ref[...] - mean * scale                     # [1, Ct]

    o_ref[...] = (y * scale + bias + res_ref[...]).astype(o_ref.dtype)
    # TODO(synk): running_mean / running_var updates are side-effect-only in the
    # PyTorch module (not part of the returned value), so they are not emitted.


def prepare_weight(weight):
    """One-time weight relayout: [Cout, Cin, 1, 1] f32 -> [Cin, Cout] bf16.

    In a real model this lives with the parameters and is amortized across
    calls; it must NOT be re-executed per forward call (it would move more HBM
    bytes than the kernel itself)."""
    Cout, Cin = weight.shape[0], weight.shape[1]
    return jnp.transpose(weight.reshape(Cout, Cin), (1, 0)).astype(jnp.bfloat16)


def conv_bn_add(x310, x318, w_mat, gamma, beta, *, stride=2, cout_tile=1024):
    """x310: [N, Cin, H, W] NCHW f32, x318: [N, Cout, Ho, Wo] NCHW f32,
    w_mat: [Cin, Cout] bf16 (pre-prepared), gamma/beta: [Cout] f32.
    Returns [N, Cout, Ho, Wo] f32."""
    N, Cin, H, W = x310.shape
    Cout = w_mat.shape[1]
    Ho = (H - 1) // stride + 1
    Wo = (W - 1) // stride + 1
    M = N * Ho * Wo
    assert Cout % cout_tile == 0
    n_tiles = Cout // cout_tile

    # Layout plumbing (NCHW -> rows x channels).  Activations are fresh per call
    # so this small (~300 KB) relayout is unavoidable here; in a full model it
    # fuses with the upstream producer.
    x_s = x310[:, :, ::stride, ::stride]                                   # [N,Cin,Ho,Wo]
    x_rows = jnp.transpose(x_s, (0, 2, 3, 1)).reshape(M, Cin).astype(jnp.bfloat16)
    res_rows = jnp.transpose(x318, (0, 2, 3, 1)).reshape(M, Cout)          # f32
    gamma2 = gamma.reshape(1, Cout).astype(jnp.float32)
    beta2 = beta.reshape(1, Cout).astype(jnp.float32)

    cost = pl.CostEstimate(
        flops=2 * M * Cin * Cout,
        transcendentals=Cout,                      # one rsqrt per channel
        bytes_accessed=(M * Cin * 2                # x (bf16)
                        + Cout * Cin * 2           # weight (bf16)
                        + M * Cout * 4             # residual (f32)
                        + M * Cout * 4             # output (f32)
                        + 2 * Cout * 4),           # gamma + beta
    )

    out_rows = pl.pallas_call(
        _conv_bn_add_kernel,
        out_shape=jax.ShapeDtypeStruct((M, Cout), jnp.float32),
        grid_spec=pltpu.PrefetchScalarGridSpec(
            num_scalar_prefetch=0,
            grid=(n_tiles,),
            in_specs=[
                pl.BlockSpec((M, Cin), lambda j: (0, 0)),           # x: full rows, reused
                pl.BlockSpec((Cin, cout_tile), lambda j: (0, j)),   # weight column tile
                pl.BlockSpec((1, cout_tile), lambda j: (0, j)),     # gamma
                pl.BlockSpec((1, cout_tile), lambda j: (0, j)),     # beta
                pl.BlockSpec((M, cout_tile), lambda j: (0, j)),     # residual
            ],
            out_specs=pl.BlockSpec((M, cout_tile), lambda j: (0, j)),
        ),
        compiler_params=pltpu.CompilerParams(
            dimension_semantics=("parallel",),     # 2 tiles -> one per TC on v7x
            vmem_limit_bytes=32 * 1024 * 1024,
        ),
        cost_estimate=cost,
    )(x_rows, w_mat, gamma2, beta2, res_rows)

    # Back to NCHW.
    return jnp.transpose(out_rows.reshape(N, Ho, Wo, Cout), (0, 3, 1, 2))


def _reference(x310, x318, weight, gamma, beta, stride=2):
    x_s = x310[:, :, ::stride, ::stride]
    w = weight.reshape(weight.shape[0], weight.shape[1])
    y = jnp.einsum("nchw,oc->nohw", x_s, w)
    mean = jnp.mean(y, axis=(0, 2, 3), keepdims=True)
    var = jnp.mean((y - mean) ** 2, axis=(0, 2, 3), keepdims=True)
    y_hat = (y - mean) * jax.lax.rsqrt(var + EPS)
    return x318 + y_hat * gamma[None, :, None, None] + beta[None, :, None, None]


if __name__ == "__main__":
    key = jax.random.PRNGKey(0)
    k1, k2, k3, k4, k5 = jax.random.split(key, 5)

    N, Cin, H, W = 1, 1024, 14, 14
    Cout, Ho, Wo = 2048, 7, 7

    x310 = jax.random.normal(k1, (N, Cin, H, W), dtype=jnp.float32)
    x318 = jax.random.normal(k2, (N, Cout, Ho, Wo), dtype=jnp.float32)
    weight = jax.random.normal(k3, (Cout, Cin, 1, 1), dtype=jnp.float32) * 0.02
    gamma = 1.0 + 0.1 * jax.random.normal(k4, (Cout,), dtype=jnp.float32)
    beta = 0.1 * jax.random.normal(k5, (Cout,), dtype=jnp.float32)

    # One-time parameter prep (cached across calls in a real model).
    w_mat = jax.block_until_ready(prepare_weight(weight))

    out = conv_bn_add(x310, x318, w_mat, gamma, beta)
    out = jax.block_until_ready(out)

    ref = _reference(x310, x318, weight, gamma, beta)
    assert out.shape == (N, Cout, Ho, Wo)
    # Matmul operands are bf16 (f32 accumulation + f32 BN/residual), so compare
    # against the f32 reference with a bf16-appropriate tolerance.
    assert jnp.allclose(out, ref, atol=2e-2, rtol=2e-2), (
        "max abs err = %f" % float(jnp.max(jnp.abs(out - ref))))

    print("KERNEL_OK")
</pallas_src>

<mosaic_0001>
module attributes {stable_mosaic.version = 11 : i64} {
  func.func @_conv_bn_add_kernel(%arg0: i32, %arg1: memref<49x1024xbf16, #tpu.memory_space<vmem>>, %arg2: memref<1024x1024xbf16, #tpu.memory_space<vmem>>, %arg3: memref<1x1024xf32, #tpu.memory_space<vmem>>, %arg4: memref<1x1024xf32, #tpu.memory_space<vmem>>, %arg5: memref<49x1024xf32, #tpu.memory_space<vmem>>, %arg6: memref<49x1024xf32, #tpu.memory_space<vmem>>) attributes {dimension_semantics = [#tpu.dimension_semantics<parallel>], iteration_bounds = array<i64: 2>, scalar_prefetch = 0 : i64, scratch_operands = 0 : i64, tpu.core_type = #tpu.core_type<tc>, window_params = [{pipeline_mode = #tpu.pipeline_mode<synchronous>, transform_indices = @transform_0, window_bounds = array<i64: 49, 1024>}, {transform_indices = @transform_1, window_bounds = array<i64: 1024, 1024>}, {transform_indices = @transform_2, window_bounds = array<i64: 1, 1024>}, {transform_indices = @transform_3, window_bounds = array<i64: 1, 1024>}, {transform_indices = @transform_4, window_bounds = array<i64: 49, 1024>}, {transform_indices = @transform_5, window_bounds = array<i64: 49, 1024>}]} {
    %c0 = arith.constant 0 : index
    %c0_0 = arith.constant 0 : index
    %0 = vector.load %arg1[%c0, %c0_0] : memref<49x1024xbf16, #tpu.memory_space<vmem>>, vector<49x1024xbf16>
    %c0_1 = arith.constant 0 : index
    %c0_2 = arith.constant 0 : index
    %1 = vector.load %arg2[%c0_1, %c0_2] : memref<1024x1024xbf16, #tpu.memory_space<vmem>>, vector<1024x1024xbf16>
    %cst = arith.constant dense<0.000000e+00> : vector<49x1024xf32>
    %2 = tpu.matmul %0, %1, %cst {dimension_numbers = #tpu.dot_dimension_numbers<[1], [0], [0], [1], [0, 0, 1, 1], [], []>} : vector<49x1024xbf16>, vector<1024x1024xbf16>, vector<49x1024xf32> -> vector<49x1024xf32>
    %cst_3 = arith.constant 1.000000e+00 : f32
    %cst_4 = arith.constant 4.900000e+01 : f32
    %3 = arith.divf %cst_3, %cst_4 : f32
    %cst_5 = arith.constant dense<0.000000e+00> : vector<1024xf32>
    %4 = vector.multi_reduction <add>, %2, %cst_5 [0] : vector<49x1024xf32> to vector<1024xf32>
    %5 = vector.shape_cast %4 : vector<1024xf32> to vector<1x1024xf32>
    %6 = vector.broadcast %3 : f32 to vector<1x1024xf32>
    %7 = arith.mulf %5, %6 : vector<1x1024xf32>
    %8 = arith.mulf %2, %2 : vector<49x1024xf32>
    %cst_6 = arith.constant dense<0.000000e+00> : vector<1024xf32>
    %9 = vector.multi_reduction <add>, %8, %cst_6 [0] : vector<49x1024xf32> to vector<1024xf32>
    %10 = vector.shape_cast %9 : vector<1024xf32> to vector<1x1024xf32>
    %11 = vector.broadcast %3 : f32 to vector<1x1024xf32>
    %12 = arith.mulf %10, %11 : vector<1x1024xf32>
    %13 = arith.mulf %7, %7 : vector<1x1024xf32>
    %14 = arith.subf %12, %13 : vector<1x1024xf32>
    %cst_7 = arith.constant 9.99999974E-6 : f32
    %15 = vector.broadcast %cst_7 : f32 to vector<1x1024xf32>
    %16 = arith.addf %14, %15 : vector<1x1024xf32>
    %17 = math.rsqrt %16 : vector<1x1024xf32>
    %c0_8 = arith.constant 0 : index
    %c0_9 = arith.constant 0 : index
    %18 = vector.load %arg3[%c0_8, %c0_9] : memref<1x1024xf32, #tpu.memory_space<vmem>>, vector<1x1024xf32>
    %19 = arith.mulf %17, %18 : vector<1x1024xf32>
    %c0_10 = arith.constant 0 : index
    %c0_11 = arith.constant 0 : index
    %20 = vector.load %arg4[%c0_10, %c0_11] : memref<1x1024xf32, #tpu.memory_space<vmem>>, vector<1x1024xf32>
    %21 = arith.mulf %7, %19 : vector<1x1024xf32>
    %22 = arith.subf %20, %21 : vector<1x1024xf32>
    %23 = vector.broadcast %19 : vector<1x1024xf32> to vector<49x1024xf32>
    %24 = arith.mulf %2, %23 : vector<49x1024xf32>
    %25 = vector.broadcast %22 : vector<1x1024xf32> to vector<49x1024xf32>
    %26 = arith.addf %24, %25 : vector<49x1024xf32>
    %c0_12 = arith.constant 0 : index
    %c0_13 = arith.constant 0 : index
    %27 = vector.load %arg5[%c0_12, %c0_13] : memref<49x1024xf32, #tpu.memory_space<vmem>>, vector<49x1024xf32>
    %28 = arith.addf %26, %27 : vector<49x1024xf32>
    %c0_14 = arith.constant 0 : index
    %c0_15 = arith.constant 0 : index
    %29 = vector.load %arg6[%c0_14, %c0_15] : memref<49x1024xf32, #tpu.memory_space<vmem>>, vector<49x1024xf32>
    tpu.vector_store %arg6[%c0_14, %c0_15], %28 {strides = array<i32>} : memref<49x1024xf32, #tpu.memory_space<vmem>>, vector<49x1024xf32>,
    return
  }
  func.func @transform_0(%arg0: i32) -> (i32, i32) {
    %c0_i32 = arith.constant 0 : i32
    %c0_i32_0 = arith.constant 0 : i32
    %c0_i32_1 = arith.constant 0 : i32
    return %c0_i32, %c0_i32_0 : i32, i32
  }
  func.func @transform_1(%arg0: i32) -> (i32, i32) {
    %c0_i32 = arith.constant 0 : i32
    %c0_i32_0 = arith.constant 0 : i32
    return %c0_i32, %arg0 : i32, i32
  }
  func.func @transform_2(%arg0: i32) -> (i32, i32) {
    %c0_i32 = arith.constant 0 : i32
    %c0_i32_0 = arith.constant 0 : i32
    return %c0_i32, %arg0 : i32, i32
  }
  func.func @transform_3(%arg0: i32) -> (i32, i32) {
    %c0_i32 = arith.constant 0 : i32
    %c0_i32_0 = arith.constant 0 : i32
    return %c0_i32, %arg0 : i32, i32
  }
  func.func @transform_4(%arg0: i32) -> (i32, i32) {
    %c0_i32 = arith.constant 0 : i32
    %c0_i32_0 = arith.constant 0 : i32
    return %c0_i32, %arg0 : i32, i32
  }
  func.func @transform_5(%arg0: i32) -> (i32, i32) {
    %c0_i32 = arith.constant 0 : i32
    %c0_i32_0 = arith.constant 0 : i32
    return %c0_i32, %arg0 : i32, i32
  }
}

</mosaic_0001>

<llo_original>
// kernel: tpu_custom_call.1
$region0: #{tpu_custom_call.1}
  #allocation0 [shape = 'u32[]', space=smem, size = 0x4, offset = 0x4, fixed_abs, tag = 'smem constant byte address 0x4 - core index']
  #allocation1 [shape = 'u32[144,128]{1,0:T(1,128)}', space=vmem, size = 0x12000, scoped, tag = 'internal scratch']
  %s0 = inlined_call_operand.hbm [shape: bf16[49,1024], index: 0, kind: input, shape index: {}]
  %s1 = inlined_call_operand.hbm [shape: bf16[1024,2048], index: 1, kind: input, shape index: {}]
  %s2 = inlined_call_operand.hbm [shape: f32[1,2048], index: 2, kind: input, shape index: {}]
  %s3 = inlined_call_operand.hbm [shape: f32[1,2048], index: 3, kind: input, shape index: {}]
  %s4 = inlined_call_operand.hbm [shape: f32[49,2048], index: 4, kind: input, shape index: {}]
  %s5 = inlined_call_operand.hbm [shape: f32[49,2048], index: 5, kind: output, shape index: {}]
  %s6 = sld [smem:[#allocation0]]
  $region73: #{tpu_custom_call.1} parent=0
    _
  %s8 = ssub.s32 1, %s6
  %s9 = scalar_select 0, %s8, %s6
  $region1: #{tpu_custom_call.1} parent=0
    #allocation2 [shape = 'u8[114688]{0}', space=vmem, size = 0x1c000, scoped, tag = 'input window, operand 0, single buffered']
    #allocation3 [shape = 's32[2]{0}', space=sflag, size = 0x8, scoped, tag = 'scoped memory for tpu_custom_call.1']
    #allocation4 [shape = 's32[2]{0}', space=sflag, size = 0x8, scoped, tag = 'scoped memory for tpu_custom_call.1']
    #allocation5 [shape = 'u8[4194304]{0}', space=vmem, size = 0x400000, scoped, tag = 'input window, operand 1']
    #allocation6 [shape = 's32[2]{0}', space=sflag, size = 0x8, scoped, tag = 'scoped memory for tpu_custom_call.1']
    #allocation7 [shape = 'u8[8192]{0}', space=vmem, size = 0x2000, scoped, tag = 'input window, operand 2']
    #allocation8 [shape = 'u8[8192]{0}', space=vmem, size = 0x2000, scoped, tag = 'input window, operand 3']
    #allocation9 [shape = 's32[2]{0}', space=sflag, size = 0x8, scoped, tag = 'scoped memory for tpu_custom_call.1']
    #allocation10 [shape = 'u8[458752]{0}', space=vmem, size = 0x70000, scoped, tag = 'input window, operand 4']
    #allocation11 [shape = 'u8[458752]{0}', space=vmem, size = 0x70000, scoped, tag = 'output window, operand 0']
    %10 = vsyncpa [#allocation3], 0
    %11 = vsyncpa [#allocation6], 0
    %s12 = scalar_lea.sflag [#allocation6], 1
    %13 = vsyncpa %s12, 0
    %14 = vsyncpa [#allocation9], 0
    %s15 = scalar_lea.sflag [#allocation9], 1
    %16 = vsyncpa %s15, 0
    %17 = vsyncpa [#allocation4], 0
    %s18 = scalar_lea.sflag [#allocation4], 1
    %19 = vsyncpa %s18, 0
    loop: start=0, step=1, limit=4
    $region2: #{tpu_custom_call.1} parent=1 // loop_pre_header
      _
    $region3: #{tpu_custom_call.1} parent=1 // loop_header
      %s21 = sphi 0, %s25
      %p22 = scmp.ge.s32.totalorder %s21, 4
      %s29 = sphi 0, %s29
      %s31 = sphi 0, %s29
      %s32 = sphi 0, %s31
      %s46 = sphi 0, %s32
      %s52 = sphi 0, %s54
      %s55 = sphi 0, %s52
      %s56 = sphi 0, %s55
      %s72 = sphi 0, %s56
      %s78 = sphi 0, %s80
      %s81 = sphi 0, %s78
      %s82 = sphi 0, %s81
      %s98 = sphi 0, %s82
      %s104 = sphi 0, %s106
      %s107 = sphi 0, %s104
      %s108 = sphi 0, %s107
      %s124 = sphi 0, %s108
      %s130 = sphi 0, %s132
      %s133 = sphi 0, %s130
      %s134 = sphi 0, %s133
      %s150 = sphi 0, %s134
      %s156 = sphi 0, %s158
      %s159 = sphi 0, %s156
      %s160 = sphi 0, %s159
      %s176 = sphi 0, %s160
    $region4: #{tpu_custom_call.1} parent=1 // loop_header_branch
      %24 = sbr.rel (%p22) target = $region8
    $region5: #{tpu_custom_call.1} parent=1 // loop_body
      %s26 = ssub.s32 %s21, 1
      %s27 = ssub.s32 %s21, 2
      %s28 = sadd.s32 %s21, 1
      %s30 = sadd.s32 %s29, 1
      %p33 = scmp.eq.s32.totalorder %s21, 1
      %p34 = scmp.ne.s32.totalorder %s29, %s31
      %p35 = scmp.eq.s32.totalorder %s21, 0
      %p36 = por %p34, %p35
      %p37 = scmp.ne.s32.totalorder %s29, %s31
      %p38 = scmp.eq.s32.totalorder %s26, 1
      %p39 = por %p37, %p38
      %p40 = scmp.ne.s32.totalorder %s31, %s32
      %p41 = scmp.eq.s32.totalorder %s26, 0
      %p42 = por %p40, %p41
      %p43 = scmp.ne.s32.totalorder %s31, %s32
      %p44 = scmp.eq.s32.totalorder %s27, 1
      %p45 = por %p43, %p44
      %p47 = scmp.ne.s32.totalorder %s32, %s46
      %p48 = scmp.eq.s32.totalorder %s27, 0
      %p49 = por %p47, %p48
      %s50 = ssub.s32 %s21, %s28
      %p51 = scmp.eq.s32.totalorder %s50, 0
      %s53 = sadd.s32 %s52, 1
      %s54 = scalar_select %p51, %s52, %s53
      %p57 = pneg %p51
      %p58 = scmp.eq.s32.totalorder %s21, 1
      %p59 = por %p57, %p58
      %p60 = scmp.ne.s32.totalorder %s52, %s55
      %p61 = scmp.eq.s32.totalorder %s21, 0
      %p62 = por %p60, %p61
      %p63 = scmp.ne.s32.totalorder %s52, %s55
      %p64 = scmp.eq.s32.totalorder %s26, 1
      %p65 = por %p63, %p64
      %p66 = scmp.ne.s32.totalorder %s55, %s56
      %p67 = scmp.eq.s32.totalorder %s26, 0
      %p68 = por %p66, %p67
      %p69 = scmp.ne.s32.totalorder %s55, %s56
      %p70 = scmp.eq.s32.totalorder %s27, 1
      %p71 = por %p69, %p70
      %p73 = scmp.ne.s32.totalorder %s56, %s72
      %p74 = scmp.eq.s32.totalorder %s27, 0
      %p75 = por %p73, %p74
      %s76 = ssub.s32 %s21, %s28
      %p77 = scmp.eq.s32.totalorder %s76, 0
      %s79 = sadd.s32 %s78, 1
      %s80 = scalar_select %p77, %s78, %s79
      %p83 = pneg %p77
      %p84 = scmp.eq.s32.totalorder %s21, 1
      %p85 = por %p83, %p84
      %p86 = scmp.ne.s32.totalorder %s78, %s81
      %p87 = scmp.eq.s32.totalorder %s21, 0
      %p88 = por %p86, %p87
      %p89 = scmp.ne.s32.totalorder %s78, %s81
      %p90 = scmp.eq.s32.totalorder %s26, 1
      %p91 = por %p89, %p90
      %p92 = scmp.ne.s32.totalorder %s81, %s82
      %p93 = scmp.eq.s32.totalorder %s26, 0
      %p94 = por %p92, %p93
      %p95 = scmp.ne.s32.totalorder %s81, %s82
      %p96 = scmp.eq.s32.totalorder %s27, 1
      %p97 = por %p95, %p96
      %p99 = scmp.ne.s32.totalorder %s82, %s98
      %p100 = scmp.eq.s32.totalorder %s27, 0
      %p101 = por %p99, %p100
      %s102 = ssub.s32 %s21, %s28
      %p103 = scmp.eq.s32.totalorder %s102, 0
      %s105 = sadd.s32 %s104, 1
      %s106 = scalar_select %p103, %s104, %s105
      %p109 = pneg %p103
      %p110 = scmp.eq.s32.totalorder %s21, 1
      %p111 = por %p109, %p110
      %p112 = scmp.ne.s32.totalorder %s104, %s107
      %p113 = scmp.eq.s32.totalorder %s21, 0
      %p114 = por %p112, %p113
      %p115 = scmp.ne.s32.totalorder %s104, %s107
      %p116 = scmp.eq.s32.totalorder %s26, 1
      %p117 = por %p115, %p116
      %p118 = scmp.ne.s32.totalorder %s107, %s108
      %p119 = scmp.eq.s32.totalorder %s26, 0
      %p120 = por %p118, %p119
      %p121 = scmp.ne.s32.totalorder %s107, %s108
      %p122 = scmp.eq.s32.totalorder %s27, 1
      %p123 = por %p121, %p122
      %p125 = scmp.ne.s32.totalorder %s108, %s124
      %p126 = scmp.eq.s32.totalorder %s27, 0
      %p127 = por %p125, %p126
      %s128 = ssub.s32 %s21, %s28
      %p129 = scmp.eq.s32.totalorder %s128, 0
      %s131 = sadd.s32 %s130, 1
      %s132 = scalar_select %p129, %s130, %s131
      %p135 = pneg %p129
      %p136 = scmp.eq.s32.totalorder %s21, 1
      %p137 = por %p135, %p136
      %p138 = scmp.ne.s32.totalorder %s130, %s133
      %p139 = scmp.eq.s32.totalorder %s21, 0
      %p140 = por %p138, %p139
      %p141 = scmp.ne.s32.totalorder %s130, %s133
      %p142 = scmp.eq.s32.totalorder %s26, 1
      %p143 = por %p141, %p142
      %p144 = scmp.ne.s32.totalorder %s133, %s134
      %p145 = scmp.eq.s32.totalorder %s26, 0
      %p146 = por %p144, %p145
      %p147 = scmp.ne.s32.totalorder %s133, %s134
      %p148 = scmp.eq.s32.totalorder %s27, 1
      %p149 = por %p147, %p148
      %p151 = scmp.ne.s32.totalorder %s134, %s150
      %p152 = scmp.eq.s32.totalorder %s27, 0
      %p153 = por %p151, %p152
      %s154 = ssub.s32 %s21, %s28
      %p155 = scmp.eq.s32.totalorder %s154, 0
      %s157 = sadd.s32 %s156, 1
      %s158 = scalar_select %p155, %s156, %s157
      %p161 = pneg %p155
      %p162 = scmp.eq.s32.totalorder %s21, 1
      %p163 = por %p161, %p162
      %p164 = scmp.ne.s32.totalorder %s156, %s159
      %p165 = scmp.eq.s32.totalorder %s21, 0
      %p166 = por %p164, %p165
      %p167 = scmp.ne.s32.totalorder %s156, %s159
      %p168 = scmp.eq.s32.totalorder %s26, 1
      %p169 = por %p167, %p168
      %p170 = scmp.ne.s32.totalorder %s159, %s160
      %p171 = scmp.eq.s32.totalorder %s26, 0
      %p172 = por %p170, %p171
      %p173 = scmp.ne.s32.totalorder %s159, %s160
      %p174 = scmp.eq.s32.totalorder %s27, 1
      %p175 = por %p173, %p174
      %p177 = scmp.ne.s32.totalorder %s160, %s176
      %p178 = scmp.eq.s32.totalorder %s27, 0
      %p179 = por %p177, %p178
      %p180 = scmp.le.s32.totalorder 1, %s21
      %p181 = scmp.lt.s32.totalorder %s21, 3
      %p182 = pnand %p180, %p181
      %p183 = pneg %p182
      // Predicated region
      $region9: #{tpu_custom_call.1} parent=5 // pred_check
        _
      $region10: #{tpu_custom_call.1} parent=5 // pred_check_branch
        %185 = sbr.rel (%p182) target = $region12
      $region11: #{tpu_custom_call.1} parent=5 // pred_region
        %s186 = ssub.s32 %s21, 1
        // Predicated region
        $region13: #{tpu_custom_call.1} parent=11 // pred_check
          %p187 = pneg %p42
        $region14: #{tpu_custom_call.1} parent=11 // pred_check_branch
          %189 = sbr.rel (%p187) target = $region16
        $region15: #{tpu_custom_call.1} parent=11 // pred_region
          %s191 = ssub.s32 3584, 3584
          %192 = vsyncadd [#allocation3], %s191
          %s193 = sshll.u32 [#allocation2], 4
          %s194 = int_to_ptr.vmem [resolvable:$true] %s193
          %199 = dma.hbm_to_vmem [thread:$0]  %s0, 3584, %s194, [#allocation3], 512, 512, 32
        $region16: #{tpu_custom_call.1} parent=11 // pred_fallthru
          _
      $region12: #{tpu_custom_call.1} parent=5 // pred_fallthru
        _
      %p200 = scmp.lt.s32.totalorder %s21, 2
      // Predicated region
      $region17: #{tpu_custom_call.1} parent=5 // pred_check
        %p201 = pneg %p200
      $region18: #{tpu_custom_call.1} parent=5 // pred_check_branch
        %203 = sbr.rel (%p201) target = $region20
      $region19: #{tpu_custom_call.1} parent=5 // pred_region
        // Predicated region
        $region21: #{tpu_custom_call.1} parent=19 // pred_check
          %p204 = pneg %p62
        $region22: #{tpu_custom_call.1} parent=19 // pred_check_branch
          %206 = sbr.rel (%p204) target = $region24
        $region23: #{tpu_custom_call.1} parent=19 // pred_region
          %s207 = sand.u32 %s21, 1
          %s208 = scalar_lea.sflag [#allocation6], %s207
          %s209 = sand.u32 %s52, 1
          %s210 = smul.addr %s209, 4096
          %s211 = scalar_lea.vmem [#allocation5], %s210
          %s212 = smul.u32 8, %s21
          %s214 = ssub.s32 65536, 65536
          %215 = vsyncadd %s208, %s214
          %s216 = smul.addr %s212, 64
          %s217 = scalar_lea.hbm %s1, %s216
          %s218 = sshll.u32 %s211, 4
          %s219 = int_to_ptr.vmem [resolvable:$true] %s218
          %224 = dma.hbm_to_vmem [thread:$0]  %s217, 65536, %s219, %s208, 1024, 512, 32
        $region24: #{tpu_custom_call.1} parent=19 // pred_fallthru
          _
        // Predicated region
        $region25: #{tpu_custom_call.1} parent=19 // pred_check
          %p225 = pneg %p88
        $region26: #{tpu_custom_call.1} parent=19 // pred_check_branch
          %227 = sbr.rel (%p225) target = $region28
        $region27: #{tpu_custom_call.1} parent=19 // pred_region
          %s228 = sand.u32 %s21, 1
          %s229 = scalar_lea.sflag [#allocation6], %s228
          %s230 = sand.u32 %s78, 1
          %s231 = smul.addr %s230, 8
          %s232 = scalar_lea.vmem [#allocation7], %s231
          %s233 = smul.u32 8, %s21
          %s235 = ssub.s32 128, 128
          %236 = vsyncadd %s229, %s235
          %s237 = smul.addr %s233, 16
          %s238 = scalar_lea.hbm %s2, %s237
          %s240 = sshll.u32 %s232, 4
          %s241 = int_to_ptr.vmem [resolvable:$true] %s240
          %243 = dma.hbm_to_vmem [thread:$0]  %s238, 128, %s241, %s229
        $region28: #{tpu_custom_call.1} parent=19 // pred_fallthru
          _
        // Predicated region
        $region29: #{tpu_custom_call.1} parent=19 // pred_check
          %p244 = pneg %p114
        $region30: #{tpu_custom_call.1} parent=19 // pred_check_branch
          %246 = sbr.rel (%p244) target = $region32
        $region31: #{tpu_custom_call.1} parent=19 // pred_region
          %s247 = sand.u32 %s21, 1
          %s248 = scalar_lea.sflag [#allocation9], %s247
          %s249 = sand.u32 %s104, 1
          %s250 = smul.addr %s249, 8
          %s251 = scalar_lea.vmem [#allocation8], %s250
          %s252 = smul.u32 8, %s21
          %s254 = ssub.s32 128, 128
          %255 = vsyncadd %s248, %s254
          %s256 = smul.addr %s252, 16
          %s257 = scalar_lea.hbm %s3, %s256
          %s259 = sshll.u32 %s251, 4
          %s260 = int_to_ptr.vmem [resolvable:$true] %s259
          %262 = dma.hbm_to_vmem [thread:$0]  %s257, 128, %s260, %s248
        $region32: #{tpu_custom_call.1} parent=19 // pred_fallthru
          _
        // Predicated region
        $region33: #{tpu_custom_call.1} parent=19 // pred_check
          %p263 = pneg %p140
        $region34: #{tpu_custom_call.1} parent=19 // pred_check_branch
          %265 = sbr.rel (%p263) target = $region36
        $region35: #{tpu_custom_call.1} parent=19 // pred_region
          %s266 = sand.u32 %s21, 1
          %s267 = scalar_lea.sflag [#allocation9], %s266
          %s268 = sand.u32 %s130, 1
          %s269 = smul.addr %s268, 448
          %s270 = scalar_lea.vmem [#allocation10], %s269
          %s271 = smul.u32 8, %s21
          %s273 = ssub.s32 7168, 7168
          %274 = vsyncadd %s267, %s273
          %s275 = smul.addr %s271, 128
          %s276 = scalar_lea.hbm %s4, %s275
          %s277 = sshll.u32 %s270, 4
          %s278 = int_to_ptr.vmem [resolvable:$true] %s277
          %283 = dma.hbm_to_vmem [thread:$0]  %s276, 7168, %s278, %s267, 2048, 1024, 64
        $region36: #{tpu_custom_call.1} parent=19 // pred_fallthru
          _
      $region20: #{tpu_custom_call.1} parent=5 // pred_fallthru
        _
      %p284 = scmp.le.s32.totalorder 1, %s21
      %p285 = scmp.lt.s32.totalorder %s21, 3
      %p286 = pnand %p284, %p285
      %p287 = pneg %p286
      // Predicated region
      $region37: #{tpu_custom_call.1} parent=5 // pred_check
        _
      $region38: #{tpu_custom_call.1} parent=5 // pred_check_branch
        %289 = sbr.rel (%p286) target = $region40
      $region39: #{tpu_custom_call.1} parent=5 // pred_region
        %s290 = ssub.s32 %s21, 1
        // Predicated region
        $region41: #{tpu_custom_call.1} parent=39 // pred_check
          %p291 = pneg %p42
        $region42: #{tpu_custom_call.1} parent=39 // pred_check_branch
          %293 = sbr.rel (%p291) target = $region44
        $region43: #{tpu_custom_call.1} parent=39 // pred_region
          %294 = dma.done [#allocation3], 3584
        $region44: #{tpu_custom_call.1} parent=39 // pred_fallthru
          _
        %s295 = sand.u32 %s26, 1
        %s296 = scalar_lea.sflag [#allocation6], %s295
        %s297 = sand.u32 %s55, 1
        %s298 = smul.addr %s297, 4096
        %s299 = scalar_lea.vmem [#allocation5], %s298
        // Predicated region
        $region45: #{tpu_custom_call.1} parent=39 // pred_check
          %p300 = pneg %p68
        $region46: #{tpu_custom_call.1} parent=39 // pred_check_branch
          %302 = sbr.rel (%p300) target = $region48
        $region47: #{tpu_custom_call.1} parent=39 // pred_region
          %303 = dma.done %s296, 65536
        $region48: #{tpu_custom_call.1} parent=39 // pred_fallthru
          _
        %s304 = sand.u32 %s26, 1
        %s305 = scalar_lea.sflag [#allocation6], %s304
        %s306 = sand.u32 %s81, 1
        %s307 = smul.addr %s306, 8
        %s308 = scalar_lea.vmem [#allocation7], %s307
        // Predicated region
        $region49: #{tpu_custom_call.1} parent=39 // pred_check
          %p309 = pneg %p94
        $region50: #{tpu_custom_call.1} parent=39 // pred_check_branch
          %311 = sbr.rel (%p309) target = $region52
        $region51: #{tpu_custom_call.1} parent=39 // pred_region
          %312 = dma.done %s305, 128
        $region52: #{tpu_custom_call.1} parent=39 // pred_fallthru
          _
        %s313 = sand.u32 %s26, 1
        %s314 = scalar_lea.sflag [#allocation9], %s313
        %s315 = sand.u32 %s107, 1
        %s316 = smul.addr %s315, 8
        %s317 = scalar_lea.vmem [#allocation8], %s316
        // Predicated region
        $region53: #{tpu_custom_call.1} parent=39 // pred_check
          %p318 = pneg %p120
        $region54: #{tpu_custom_call.1} parent=39 // pred_check_branch
          %320 = sbr.rel (%p318) target = $region56
        $region55: #{tpu_custom_call.1} parent=39 // pred_region
          %321 = dma.done %s314, 128
        $region56: #{tpu_custom_call.1} parent=39 // pred_fallthru
          _
        %s322 = sand.u32 %s26, 1
        %s323 = scalar_lea.sflag [#allocation9], %s322
        %s324 = sand.u32 %s133, 1
        %s325 = smul.addr %s324, 448
        %s326 = scalar_lea.vmem [#allocation10], %s325
        // Predicated region
        $region57: #{tpu_custom_call.1} parent=39 // pred_check
          %p327 = pneg %p146
        $region58: #{tpu_custom_call.1} parent=39 // pred_check_branch
          %329 = sbr.rel (%p327) target = $region60
        $region59: #{tpu_custom_call.1} parent=39 // pred_region
          %330 = dma.done %s323, 7168
        $region60: #{tpu_custom_call.1} parent=39 // pred_fallthru
          _
        %p331 = pneg %p42
        %p332 = pneg %p39
        %s333 = sand.u32 %s26, 1
        %s334 = scalar_lea.sflag [#allocation6], %s333
        %s335 = sand.u32 %s55, 1
        %s336 = smul.addr %s335, 4096
        %s337 = scalar_lea.vmem [#allocation5], %s336
        %p338 = pneg %p68
        %p339 = pneg %p65
        %s340 = sand.u32 %s26, 1
        %s341 = scalar_lea.sflag [#allocation6], %s340
        %s342 = sand.u32 %s81, 1
        %s343 = smul.addr %s342, 8
        %s344 = scalar_lea.vmem [#allocation7], %s343
        %p345 = pneg %p94
        %p346 = pneg %p91
        %s347 = sand.u32 %s26, 1
        %s348 = scalar_lea.sflag [#allocation9], %s347
        %s349 = sand.u32 %s107, 1
        %s350 = smul.addr %s349, 8
        %s351 = scalar_lea.vmem [#allocation8], %s350
        %p352 = pneg %p120
        %p353 = pneg %p117
        %s354 = sand.u32 %s26, 1
        %s355 = scalar_lea.sflag [#allocation9], %s354
        %s356 = sand.u32 %s133, 1
        %s357 = smul.addr %s356, 448
        %s358 = scalar_lea.vmem [#allocation10], %s357
        %p359 = pneg %p146
        %p360 = pneg %p143
        %p361 = pneg %p172
        %p362 = pneg %p169
        %s363 = sand.u32 %s159, 1
        %s364 = scalar_lea.sflag [#allocation4], %s363
        %s365 = sand.u32 %s159, 1
        %s366 = smul.addr %s365, 448
        %s367 = scalar_lea.vmem [#allocation11], %s366
        %s368 = smul.u32 8, %s26
        %s369 = smul.u32 8, %s26
        %s370 = smul.u32 8, %s26
        %s371 = smul.u32 8, %s26
        %s372 = smul.u32 8, %s26
        %v373 = vld [vmem:[#allocation2] sm:$0xff]
        %v374 = vld [vmem:[#allocation2 + $0x8] sm:$0xff]
        %v375 = vld [vmem:[#allocation2 + $0x10] sm:$0xff]
        %v376 = vld [vmem:[#allocation2 + $0x18] sm:$0xff]
        %v377 = vld [vmem:[#allocation2 + $0x20] sm:$0xff]
        %v378 = vld [vmem:[#allocation2 + $0x28] sm:$0xff]
        %v379 = vld [vmem:[#allocation2 + $0x30] sm:$0xff]
        %v380 = vld [vmem:[#allocation2 + $0x38] sm:$0xff]
        %v381 = vld [vmem:[#allocation2 + $0x40] sm:$0xff]
        %v382 = vld [vmem:[#allocation2 + $0x48] sm:$0xff]
        %v383 = vld [vmem:[#allocation2 + $0x50] sm:$0xff]
        %v384 = vld [vmem:[#allocation2 + $0x58] sm:$0xff]
        %v385 = vld [vmem:[#allocation2 + $0x60] sm:$0xff]
        %v386 = vld [vmem:[#allocation2 + $0x68] sm:$0xff]
        %v387 = vld [vmem:[#allocation2 + $0x70] sm:$0xff]
        %v388 = vld [vmem:[#allocation2 + $0x78] sm:$0xff]
        %v389 = vld [vmem:[#allocation2 + $0x80] sm:$0xff]
        %v390 = vld [vmem:[#allocation2 + $0x88] sm:$0xff]
        %v391 = vld [vmem:[#allocation2 + $0x90] sm:$0xff]
        %v392 = vld [vmem:[#allocation2 + $0x98] sm:$0xff]
        %v393 = vld [vmem:[#allocation2 + $0xa0] sm:$0xff]
        %v394 = vld [vmem:[#allocation2 + $0xa8] sm:$0xff]
        %v395 = vld [vmem:[#allocation2 + $0xb0] sm:$0xff]
        %v396 = vld [vmem:[#allocation2 + $0xb8] sm:$0xff]
        %v397 = vld [vmem:[#allocation2 + $0xc0] sm:$0x11]
        %v398 = vld [vmem:[#allocation2 + $0xc8] sm:$0x11]
        %v399 = vld [vmem:[#allocation2 + $0xd0] sm:$0x11]
        %v400 = vld [vmem:[#allocation2 + $0xd8] sm:$0x11]
        %v401 = vld [vmem:[%s299] sm:$0xff]
        %v402 = vld [vmem:[%s299 + $0x8] sm:$0xff]
        %v403 = vld [vmem:[%s299 + $0x10] sm:$0xff]
        %v404 = vld [vmem:[%s299 + $0x18] sm:$0xff]
        %v405 = vld [vmem:[%s299 + $0x20] sm:$0xff]
        %v406 = vld [vmem:[%s299 + $0x28] sm:$0xff]
        %v407 = vld [vmem:[%s299 + $0x30] sm:$0xff]
        %v408 = vld [vmem:[%s299 + $0x38] sm:$0xff]
        %v409 = vld [vmem:[%s299 + $0x40] sm:$0xff]
        %v410 = vld [vmem:[%s299 + $0x48] sm:$0xff]
        %v411 = vld [vmem:[%s299 + $0x50] sm:$0xff]
        %v412 = vld [vmem:[%s299 + $0x58] sm:$0xff]
        %v413 = vld [vmem:[%s299 + $0x60] sm:$0xff]
        %v414 = vld [vmem:[%s299 + $0x68] sm:$0xff]
        %v415 = vld [vmem:[%s299 + $0x70] sm:$0xff]
        %v416 = vld [vmem:[%s299 + $0x78] sm:$0xff]
        %v417 = vld [vmem:[%s299 + $0x80] sm:$0xff]
        %v418 = vld [vmem:[%s299 + $0x88] sm:$0xff]
        %v419 = vld [vmem:[%s299 + $0x90] sm:$0xff]
        %v420 = vld [vmem:[%s299 + $0x98] sm:$0xff]
        %v421 = vld [vmem:[%s299 + $0xa0] sm:$0xff]
        %v422 = vld [vmem:[%s299 + $0xa8] sm:$0xff]
        %v423 = vld [vmem:[%s299 + $0xb0] sm:$0xff]
        %v424 = vld [vmem:[%s299 + $0xb8] sm:$0xff]
        %v425 = vld [vmem:[%s299 + $0xc0] sm:$0xff]
        %v426 = vld [vmem:[%s299 + $0xc8] sm:$0xff]
        %v427 = vld [vmem:[%s299 + $0xd0] sm:$0xff]
        %v428 = vld [vmem:[%s299 + $0xd8] sm:$0xff]
        %v429 = vld [vmem:[%s299 + $0xe0] sm:$0xff]
        %v430 = vld [vmem:[%s299 + $0xe8] sm:$0xff]
        %v431 = vld [vmem:[%s299 + $0xf0] sm:$0xff]
        %v432 = vld [vmem:[%s299 + $0xf8] sm:$0xff]
        %v433 = vld [vmem:[%s299 + $0x100] sm:$0xff]
        %v434 = vld [vmem:[%s299 + $0x108] sm:$0xff]
        %v435 = vld [vmem:[%s299 + $0x110] sm:$0xff]
        %v436 = vld [vmem:[%s299 + $0x118] sm:$0xff]
        %v437 = vld [vmem:[%s299 + $0x120] sm:$0xff]
        %v438 = vld [vmem:[%s299 + $0x128] sm:$0xff]
        %v439 = vld [vmem:[%s299 + $0x130] sm:$0xff]
        %v440 = vld [vmem:[%s299 + $0x138] sm:$0xff]
        %v441 = vld [vmem:[%s299 + $0x140] sm:$0xff]
        %v442 = vld [vmem:[%s299 + $0x148] sm:$0xff]
        %v443 = vld [vmem:[%s299 + $0x150] sm:$0xff]
        %v444 = vld [vmem:[%s299 + $0x158] sm:$0xff]
        %v445 = vld [vmem:[%s299 + $0x160] sm:$0xff]
        %v446 = vld [vmem:[%s299 + $0x168] sm:$0xff]
        %v447 = vld [vmem:[%s299 + $0x170] sm:$0xff]
        %v448 = vld [vmem:[%s299 + $0x178] sm:$0xff]
        %v449 = vld [vmem:[%s299 + $0x180] sm:$0xff]
        %v450 = vld [vmem:[%s299 + $0x188] sm:$0xff]
        %v451 = vld [vmem:[%s299 + $0x190] sm:$0xff]
        %v452 = vld [vmem:[%s299 + $0x198] sm:$0xff]
        %v453 = vld [vmem:[%s299 + $0x1a0] sm:$0xff]
        %v454 = vld [vmem:[%s299 + $0x1a8] sm:$0xff]
        %v455 = vld [vmem:[%s299 + $0x1b0] sm:$0xff]
        %v456 = vld [vmem:[%s299 + $0x1b8] sm:$0xff]
        %v457 = vld [vmem:[%s299 + $0x1c0] sm:$0xff]
        %v458 = vld [vmem:[%s299 + $0x1c8] sm:$0xff]
        %v459 = vld [vmem:[%s299 + $0x1d0] sm:$0xff]
        %v460 = vld [vmem:[%s299 + $0x1d8] sm:$0xff]
        %v461 = vld [vmem:[%s299 + $0x1e0] sm:$0xff]
        %v462 = vld [vmem:[%s299 + $0x1e8] sm:$0xff]
        %v463 = vld [vmem:[%s299 + $0x1f0] sm:$0xff]
        %v464 = vld [vmem:[%s299 + $0x1f8] sm:$0xff]
        %v465 = vld [vmem:[%s299 + $0x200] sm:$0xff]
        %v466 = vld [vmem:[%s299 + $0x208] sm:$0xff]
        %v467 = vld [vmem:[%s299 + $0x210] sm:$0xff]
        %v468 = vld [vmem:[%s299 + $0x218] sm:$0xff]
        %v469 = vld [vmem:[%s299 + $0x220] sm:$0xff]
        %v470 = vld [vmem:[%s299 + $0x228] sm:$0xff]
        %v471 = vld [vmem:[%s299 + $0x230] sm:$0xff]
        %v472 = vld [vmem:[%s299 + $0x238] sm:$0xff]
        %v473 = vld [vmem:[%s299 + $0x240] sm:$0xff]
        %v474 = vld [vmem:[%s299 + $0x248] sm:$0xff]
        %v475 = vld [vmem:[%s299 + $0x250] sm:$0xff]
        %v476 = vld [vmem:[%s299 + $0x258] sm:$0xff]
        %v477 = vld [vmem:[%s299 + $0x260] sm:$0xff]
        %v478 = vld [vmem:[%s299 + $0x268] sm:$0xff]
        %v479 = vld [vmem:[%s299 + $0x270] sm:$0xff]
        %v480 = vld [vmem:[%s299 + $0x278] sm:$0xff]
        %v481 = vld [vmem:[%s299 + $0x280] sm:$0xff]
        %v482 = vld [vmem:[%s299 + $0x288] sm:$0xff]
        %v483 = vld [vmem:[%s299 + $0x290] sm:$0xff]
        %v484 = vld [vmem:[%s299 + $0x298] sm:$0xff]
        %v485 = vld [vmem:[%s299 + $0x2a0] sm:$0xff]
        %v486 = vld [vmem:[%s299 + $0x2a8] sm:$0xff]
        %v487 = vld [vmem:[%s299 + $0x2b0] sm:$0xff]
        %v488 = vld [vmem:[%s299 + $0x2b8] sm:$0xff]
        %v489 = vld [vmem:[%s299 + $0x2c0] sm:$0xff]
        %v490 = vld [vmem:[%s299 + $0x2c8] sm:$0xff]
        %v491 = vld [vmem:[%s299 + $0x2d0] sm:$0xff]
        %v492 = vld [vmem:[%s299 + $0x2d8] sm:$0xff]
        %v493 = vld [vmem:[%s299 + $0x2e0] sm:$0xff]
        %v494 = vld [vmem:[%s299 + $0x2e8] sm:$0xff]
        %v495 = vld [vmem:[%s299 + $0x2f0] sm:$0xff]
        %v496 = vld [vmem:[%s299 + $0x2f8] sm:$0xff]
        %v497 = vld [vmem:[%s299 + $0x300] sm:$0xff]
        %v498 = vld [vmem:[%s299 + $0x308] sm:$0xff]
        %v499 = vld [vmem:[%s299 + $0x310] sm:$0xff]
        %v500 = vld [vmem:[%s299 + $0x318] sm:$0xff]
        %v501 = vld [vmem:[%s299 + $0x320] sm:$0xff]
        %v502 = vld [vmem:[%s299 + $0x328] sm:$0xff]
        %v503 = vld [vmem:[%s299 + $0x330] sm:$0xff]
        %v504 = vld [vmem:[%s299 + $0x338] sm:$0xff]
        %v505 = vld [vmem:[%s299 + $0x340] sm:$0xff]
        %v506 = vld [vmem:[%s299 + $0x348] sm:$0xff]
        %v507 = vld [vmem:[%s299 + $0x350] sm:$0xff]
        %v508 = vld [vmem:[%s299 + $0x358] sm:$0xff]
        %v509 = vld [vmem:[%s299 + $0x360] sm:$0xff]
        %v510 = vld [vmem:[%s299 + $0x368] sm:$0xff]
        %v511 = vld [vmem:[%s299 + $0x370] sm:$0xff]
        %v512 = vld [vmem:[%s299 + $0x378] sm:$0xff]
        %v513 = vld [vmem:[%s299 + $0x380] sm:$0xff]
        %v514 = vld [vmem:[%s299 + $0x388] sm:$0xff]
        %v515 = vld [vmem:[%s299 + $0x390] sm:$0xff]
        %v516 = vld [vmem:[%s299 + $0x398] sm:$0xff]
        %v517 = vld [vmem:[%s299 + $0x3a0] sm:$0xff]
        %v518 = vld [vmem:[%s299 + $0x3a8] sm:$0xff]
        %v519 = vld [vmem:[%s299 + $0x3b0] sm:$0xff]
        %v520 = vld [vmem:[%s299 + $0x3b8] sm:$0xff]
        %v521 = vld [vmem:[%s299 + $0x3c0] sm:$0xff]
        %v522 = vld [vmem:[%s299 + $0x3c8] sm:$0xff]
        %v523 = vld [vmem:[%s299 + $0x3d0] sm:$0xff]
        %v524 = vld [vmem:[%s299 + $0x3d8] sm:$0xff]
        %v525 = vld [vmem:[%s299 + $0x3e0] sm:$0xff]
        %v526 = vld [vmem:[%s299 + $0x3e8] sm:$0xff]
        %v527 = vld [vmem:[%s299 + $0x3f0] sm:$0xff]
        %v528 = vld [vmem:[%s299 + $0x3f8] sm:$0xff]
        %v529 = vld [vmem:[%s299 + $0x400] sm:$0xff]
        %v530 = vld [vmem:[%s299 + $0x408] sm:$0xff]
        %v531 = vld [vmem:[%s299 + $0x410] sm:$0xff]
        %v532 = vld [vmem:[%s299 + $0x418] sm:$0xff]
        %v533 = vld [vmem:[%s299 + $0x420] sm:$0xff]
        %v534 = vld [vmem:[%s299 + $0x428] sm:$0xff]
        %v535 = vld [vmem:[%s299 + $0x430] sm:$0xff]
        %v536 = vld [vmem:[%s299 + $0x438] sm:$0xff]
        %v537 = vld [vmem:[%s299 + $0x440] sm:$0xff]
        %v538 = vld [vmem:[%s299 + $0x448] sm:$0xff]
        %v539 = vld [vmem:[%s299 + $0x450] sm:$0xff]
        %v540 = vld [vmem:[%s299 + $0x458] sm:$0xff]
        %v541 = vld [vmem:[%s299 + $0x460] sm:$0xff]
        %v542 = vld [vmem:[%s299 + $0x468] sm:$0xff]
        %v543 = vld [vmem:[%s299 + $0x470] sm:$0xff]
        %v544 = vld [vmem:[%s299 + $0x478] sm:$0xff]
        %v545 = vld [vmem:[%s299 + $0x480] sm:$0xff]
        %v546 = vld [vmem:[%s299 + $0x488] sm:$0xff]
        %v547 = vld [vmem:[%s299 + $0x490] sm:$0xff]
        %v548 = vld [vmem:[%s299 + $0x498] sm:$0xff]
        %v549 = vld [vmem:[%s299 + $0x4a0] sm:$0xff]
        %v550 = vld [vmem:[%s299 + $0x4a8] sm:$0xff]
        %v551 = vld [vmem:[%s299 + $0x4b0] sm:$0xff]
        %v552 = vld [vmem:[%s299 + $0x4b8] sm:$0xff]
        %v553 = vld [vmem:[%s299 + $0x4c0] sm:$0xff]
        %v554 = vld [vmem:[%s299 + $0x4c8] sm:$0xff]
        %v555 = vld [vmem:[%s299 + $0x4d0] sm:$0xff]
        %v556 = vld [vmem:[%s299 + $0x4d8] sm:$0xff]
        %v557 = vld [vmem:[%s299 + $0x4e0] sm:$0xff]
        %v558 = vld [vmem:[%s299 + $0x4e8] sm:$0xff]
        %v559 = vld [vmem:[%s299 + $0x4f0] sm:$0xff]
        %v560 = vld [vmem:[%s299 + $0x4f8] sm:$0xff]
        %v561 = vld [vmem:[%s299 + $0x500] sm:$0xff]
        %v562 = vld [vmem:[%s299 + $0x508] sm:$0xff]
        %v563 = vld [vmem:[%s299 + $0x510] sm:$0xff]
        %v564 = vld [vmem:[%s299 + $0x518] sm:$0xff]
        %v565 = vld [vmem:[%s299 + $0x520] sm:$0xff]
        %v566 = vld [vmem:[%s299 + $0x528] sm:$0xff]
        %v567 = vld [vmem:[%s299 + $0x530] sm:$0xff]
        %v568 = vld [vmem:[%s299 + $0x538] sm:$0xff]
        %v569 = vld [vmem:[%s299 + $0x540] sm:$0xff]
        %v570 = vld [vmem:[%s299 + $0x548] sm:$0xff]
        %v571 = vld [vmem:[%s299 + $0x550] sm:$0xff]
        %v572 = vld [vmem:[%s299 + $0x558] sm:$0xff]
        %v573 = vld [vmem:[%s299 + $0x560] sm:$0xff]
        %v574 = vld [vmem:[%s299 + $0x568] sm:$0xff]
        %v575 = vld [vmem:[%s299 + $0x570] sm:$0xff]
        %v576 = vld [vmem:[%s299 + $0x578] sm:$0xff]
        %v577 = vld [vmem:[%s299 + $0x580] sm:$0xff]
        %v578 = vld [vmem:[%s299 + $0x588] sm:$0xff]
        %v579 = vld [vmem:[%s299 + $0x590] sm:$0xff]
        %v580 = vld [vmem:[%s299 + $0x598] sm:$0xff]
        %v581 = vld [vmem:[%s299 + $0x5a0] sm:$0xff]
        %v582 = vld [vmem:[%s299 + $0x5a8] sm:$0xff]
        %v583 = vld [vmem:[%s299 + $0x5b0] sm:$0xff]
        %v584 = vld [vmem:[%s299 + $0x5b8] sm:$0xff]
        %v585 = vld [vmem:[%s299 + $0x5c0] sm:$0xff]
        %v586 = vld [vmem:[%s299 + $0x5c8] sm:$0xff]
        %v587 = vld [vmem:[%s299 + $0x5d0] sm:$0xff]
        %v588 = vld [vmem:[%s299 + $0x5d8] sm:$0xff]
        %v589 = vld [vmem:[%s299 + $0x5e0] sm:$0xff]
        %v590 = vld [vmem:[%s299 + $0x5e8] sm:$0xff]
        %v591 = vld [vmem:[%s299 + $0x5f0] sm:$0xff]
        %v592 = vld [vmem:[%s299 + $0x5f8] sm:$0xff]
        %v593 = vld [vmem:[%s299 + $0x600] sm:$0xff]
        %v594 = vld [vmem:[%s299 + $0x608] sm:$0xff]
        %v595 = vld [vmem:[%s299 + $0x610] sm:$0xff]
        %v596 = vld [vmem:[%s299 + $0x618] sm:$0xff]
        %v597 = vld [vmem:[%s299 + $0x620] sm:$0xff]
        %v598 = vld [vmem:[%s299 + $0x628] sm:$0xff]
        %v599 = vld [vmem:[%s299 + $0x630] sm:$0xff]
        %v600 = vld [vmem:[%s299 + $0x638] sm:$0xff]
        %v601 = vld [vmem:[%s299 + $0x640] sm:$0xff]
        %v602 = vld [vmem:[%s299 + $0x648] sm:$0xff]
        %v603 = vld [vmem:[%s299 + $0x650] sm:$0xff]
        %v604 = vld [vmem:[%s299 + $0x658] sm:$0xff]
        %v605 = vld [vmem:[%s299 + $0x660] sm:$0xff]
        %v606 = vld [vmem:[%s299 + $0x668] sm:$0xff]
        %v607 = vld [vmem:[%s299 + $0x670] sm:$0xff]
        %v608 = vld [vmem:[%s299 + $0x678] sm:$0xff]
        %v609 = vld [vmem:[%s299 + $0x680] sm:$0xff]
        %v610 = vld [vmem:[%s299 + $0x688] sm:$0xff]
        %v611 = vld [vmem:[%s299 + $0x690] sm:$0xff]
        %v612 = vld [vmem:[%s299 + $0x698] sm:$0xff]
        %v613 = vld [vmem:[%s299 + $0x6a0] sm:$0xff]
        %v614 = vld [vmem:[%s299 + $0x6a8] sm:$0xff]
        %v615 = vld [vmem:[%s299 + $0x6b0] sm:$0xff]
        %v616 = vld [vmem:[%s299 + $0x6b8] sm:$0xff]
        %v617 = vld [vmem:[%s299 + $0x6c0] sm:$0xff]
        %v618 = vld [vmem:[%s299 + $0x6c8] sm:$0xff]
        %v619 = vld [vmem:[%s299 + $0x6d0] sm:$0xff]
        %v620 = vld [vmem:[%s299 + $0x6d8] sm:$0xff]
        %v621 = vld [vmem:[%s299 + $0x6e0] sm:$0xff]
        %v622 = vld [vmem:[%s299 + $0x6e8] sm:$0xff]
        %v623 = vld [vmem:[%s299 + $0x6f0] sm:$0xff]
        %v624 = vld [vmem:[%s299 + $0x6f8] sm:$0xff]
        %v625 = vld [vmem:[%s299 + $0x700] sm:$0xff]
        %v626 = vld [vmem:[%s299 + $0x708] sm:$0xff]
        %v627 = vld [vmem:[%s299 + $0x710] sm:$0xff]
        %v628 = vld [vmem:[%s299 + $0x718] sm:$0xff]
        %v629 = vld [vmem:[%s299 + $0x720] sm:$0xff]
        %v630 = vld [vmem:[%s299 + $0x728] sm:$0xff]
        %v631 = vld [vmem:[%s299 + $0x730] sm:$0xff]
        %v632 = vld [vmem:[%s299 + $0x738] sm:$0xff]
        %v633 = vld [vmem:[%s299 + $0x740] sm:$0xff]
        %v634 = vld [vmem:[%s299 + $0x748] sm:$0xff]
        %v635 = vld [vmem:[%s299 + $0x750] sm:$0xff]
        %v636 = vld [vmem:[%s299 + $0x758] sm:$0xff]
        %v637 = vld [vmem:[%s299 + $0x760] sm:$0xff]
        %v638 = vld [vmem:[%s299 + $0x768] sm:$0xff]
        %v639 = vld [vmem:[%s299 + $0x770] sm:$0xff]
        %v640 = vld [vmem:[%s299 + $0x778] sm:$0xff]
        %v641 = vld [vmem:[%s299 + $0x780] sm:$0xff]
        %v642 = vld [vmem:[%s299 + $0x788] sm:$0xff]
        %v643 = vld [vmem:[%s299 + $0x790] sm:$0xff]
        %v644 = vld [vmem:[%s299 + $0x798] sm:$0xff]
        %v645 = vld [vmem:[%s299 + $0x7a0] sm:$0xff]
        %v646 = vld [vmem:[%s299 + $0x7a8] sm:$0xff]
        %v647 = vld [vmem:[%s299 + $0x7b0] sm:$0xff]
        %v648 = vld [vmem:[%s299 + $0x7b8] sm:$0xff]
        %v649 = vld [vmem:[%s299 + $0x7c0] sm:$0xff]
        %v650 = vld [vmem:[%s299 + $0x7c8] sm:$0xff]
        %v651 = vld [vmem:[%s299 + $0x7d0] sm:$0xff]
        %v652 = vld [vmem:[%s299 + $0x7d8] sm:$0xff]
        %v653 = vld [vmem:[%s299 + $0x7e0] sm:$0xff]
        %v654 = vld [vmem:[%s299 + $0x7e8] sm:$0xff]
        %v655 = vld [vmem:[%s299 + $0x7f0] sm:$0xff]
        %v656 = vld [vmem:[%s299 + $0x7f8] sm:$0xff]
        %v657 = vld [vmem:[%s299 + $0x800] sm:$0xff]
        %v658 = vld [vmem:[%s299 + $0x808] sm:$0xff]
        %v659 = vld [vmem:[%s299 + $0x810] sm:$0xff]
        %v660 = vld [vmem:[%s299 + $0x818] sm:$0xff]
        %v661 = vld [vmem:[%s299 + $0x820] sm:$0xff]
        %v662 = vld [vmem:[%s299 + $0x828] sm:$0xff]
        %v663 = vld [vmem:[%s299 + $0x830] sm:$0xff]
        %v664 = vld [vmem:[%s299 + $0x838] sm:$0xff]
        %v665 = vld [vmem:[%s299 + $0x840] sm:$0xff]
        %v666 = vld [vmem:[%s299 + $0x848] sm:$0xff]
        %v667 = vld [vmem:[%s299 + $0x850] sm:$0xff]
        %v668 = vld [vmem:[%s299 + $0x858] sm:$0xff]
        %v669 = vld [vmem:[%s299 + $0x860] sm:$0xff]
        %v670 = vld [vmem:[%s299 + $0x868] sm:$0xff]
        %v671 = vld [vmem:[%s299 + $0x870] sm:$0xff]
        %v672 = vld [vmem:[%s299 + $0x878] sm:$0xff]
        %v673 = vld [vmem:[%s299 + $0x880] sm:$0xff]
        %v674 = vld [vmem:[%s299 + $0x888] sm:$0xff]
        %v675 = vld [vmem:[%s299 + $0x890] sm:$0xff]
        %v676 = vld [vmem:[%s299 + $0x898] sm:$0xff]
        %v677 = vld [vmem:[%s299 + $0x8a0] sm:$0xff]
        %v678 = vld [vmem:[%s299 + $0x8a8] sm:$0xff]
        %v679 = vld [vmem:[%s299 + $0x8b0] sm:$0xff]
        %v680 = vld [vmem:[%s299 + $0x8b8] sm:$0xff]
        %v681 = vld [vmem:[%s299 + $0x8c0] sm:$0xff]
        %v682 = vld [vmem:[%s299 + $0x8c8] sm:$0xff]
        %v683 = vld [vmem:[%s299 + $0x8d0] sm:$0xff]
        %v684 = vld [vmem:[%s299 + $0x8d8] sm:$0xff]
        %v685 = vld [vmem:[%s299 + $0x8e0] sm:$0xff]
        %v686 = vld [vmem:[%s299 + $0x8e8] sm:$0xff]
        %v687 = vld [vmem:[%s299 + $0x8f0] sm:$0xff]
        %v688 = vld [vmem:[%s299 + $0x8f8] sm:$0xff]
        %v689 = vld [vmem:[%s299 + $0x900] sm:$0xff]
        %v690 = vld [vmem:[%s299 + $0x908] sm:$0xff]
        %v691 = vld [vmem:[%s299 + $0x910] sm:$0xff]
        %v692 = vld [vmem:[%s299 + $0x918] sm:$0xff]
        %v693 = vld [vmem:[%s299 + $0x920] sm:$0xff]
        %v694 = vld [vmem:[%s299 + $0x928] sm:$0xff]
        %v695 = vld [vmem:[%s299 + $0x930] sm:$0xff]
        %v696 = vld [vmem:[%s299 + $0x938] sm:$0xff]
        %v697 = vld [vmem:[%s299 + $0x940] sm:$0xff]
        %v698 = vld [vmem:[%s299 + $0x948] sm:$0xff]
        %v699 = vld [vmem:[%s299 + $0x950] sm:$0xff]
        %v700 = vld [vmem:[%s299 + $0x958] sm:$0xff]
        %v701 = vld [vmem:[%s299 + $0x960] sm:$0xff]
        %v702 = vld [vmem:[%s299 + $0x968] sm:$0xff]
        %v703 = vld [vmem:[%s299 + $0x970] sm:$0xff]
        %v704 = vld [vmem:[%s299 + $0x978] sm:$0xff]
        %v705 = vld [vmem:[%s299 + $0x980] sm:$0xff]
        %v706 = vld [vmem:[%s299 + $0x988] sm:$0xff]
        %v707 = vld [vmem:[%s299 + $0x990] sm:$0xff]
        %v708 = vld [vmem:[%s299 + $0x998] sm:$0xff]
        %v709 = vld [vmem:[%s299 + $0x9a0] sm:$0xff]
        %v710 = vld [vmem:[%s299 + $0x9a8] sm:$0xff]
        %v711 = vld [vmem:[%s299 + $0x9b0] sm:$0xff]
        %v712 = vld [vmem:[%s299 + $0x9b8] sm:$0xff]
        %v713 = vld [vmem:[%s299 + $0x9c0] sm:$0xff]
        %v714 = vld [vmem:[%s299 + $0x9c8] sm:$0xff]
        %v715 = vld [vmem:[%s299 + $0x9d0] sm:$0xff]
        %v716 = vld [vmem:[%s299 + $0x9d8] sm:$0xff]
        %v717 = vld [vmem:[%s299 + $0x9e0] sm:$0xff]
        %v718 = vld [vmem:[%s299 + $0x9e8] sm:$0xff]
        %v719 = vld [vmem:[%s299 + $0x9f0] sm:$0xff]
        %v720 = vld [vmem:[%s299 + $0x9f8] sm:$0xff]
        %v721 = vld [vmem:[%s299 + $0xa00] sm:$0xff]
        %v722 = vld [vmem:[%s299 + $0xa08] sm:$0xff]
        %v723 = vld [vmem:[%s299 + $0xa10] sm:$0xff]
        %v724 = vld [vmem:[%s299 + $0xa18] sm:$0xff]
        %v725 = vld [vmem:[%s299 + $0xa20] sm:$0xff]
        %v726 = vld [vmem:[%s299 + $0xa28] sm:$0xff]
        %v727 = vld [vmem:[%s299 + $0xa30] sm:$0xff]
        %v728 = vld [vmem:[%s299 + $0xa38] sm:$0xff]
        %v729 = vld [vmem:[%s299 + $0xa40] sm:$0xff]
        %v730 = vld [vmem:[%s299 + $0xa48] sm:$0xff]
        %v731 = vld [vmem:[%s299 + $0xa50] sm:$0xff]
        %v732 = vld [vmem:[%s299 + $0xa58] sm:$0xff]
        %v733 = vld [vmem:[%s299 + $0xa60] sm:$0xff]
        %v734 = vld [vmem:[%s299 + $0xa68] sm:$0xff]
        %v735 = vld [vmem:[%s299 + $0xa70] sm:$0xff]
        %v736 = vld [vmem:[%s299 + $0xa78] sm:$0xff]
        %v737 = vld [vmem:[%s299 + $0xa80] sm:$0xff]
        %v738 = vld [vmem:[%s299 + $0xa88] sm:$0xff]
        %v739 = vld [vmem:[%s299 + $0xa90] sm:$0xff]
        %v740 = vld [vmem:[%s299 + $0xa98] sm:$0xff]
        %v741 = vld [vmem:[%s299 + $0xaa0] sm:$0xff]
        %v742 = vld [vmem:[%s299 + $0xaa8] sm:$0xff]
        %v743 = vld [vmem:[%s299 + $0xab0] sm:$0xff]
        %v744 = vld [vmem:[%s299 + $0xab8] sm:$0xff]
        %v745 = vld [vmem:[%s299 + $0xac0] sm:$0xff]
        %v746 = vld [vmem:[%s299 + $0xac8] sm:$0xff]
        %v747 = vld [vmem:[%s299 + $0xad0] sm:$0xff]
        %v748 = vld [vmem:[%s299 + $0xad8] sm:$0xff]
        %v749 = vld [vmem:[%s299 + $0xae0] sm:$0xff]
        %v750 = vld [vmem:[%s299 + $0xae8] sm:$0xff]
        %v751 = vld [vmem:[%s299 + $0xaf0] sm:$0xff]
        %v752 = vld [vmem:[%s299 + $0xaf8] sm:$0xff]
        %v753 = vld [vmem:[%s299 + $0xb00] sm:$0xff]
        %v754 = vld [vmem:[%s299 + $0xb08] sm:$0xff]
        %v755 = vld [vmem:[%s299 + $0xb10] sm:$0xff]
        %v756 = vld [vmem:[%s299 + $0xb18] sm:$0xff]
        %v757 = vld [vmem:[%s299 + $0xb20] sm:$0xff]
        %v758 = vld [vmem:[%s299 + $0xb28] sm:$0xff]
        %v759 = vld [vmem:[%s299 + $0xb30] sm:$0xff]
        %v760 = vld [vmem:[%s299 + $0xb38] sm:$0xff]
        %v761 = vld [vmem:[%s299 + $0xb40] sm:$0xff]
        %v762 = vld [vmem:[%s299 + $0xb48] sm:$0xff]
        %v763 = vld [vmem:[%s299 + $0xb50] sm:$0xff]
        %v764 = vld [vmem:[%s299 + $0xb58] sm:$0xff]
        %v765 = vld [vmem:[%s299 + $0xb60] sm:$0xff]
        %v766 = vld [vmem:[%s299 + $0xb68] sm:$0xff]
        %v767 = vld [vmem:[%s299 + $0xb70] sm:$0xff]
        %v768 = vld [vmem:[%s299 + $0xb78] sm:$0xff]
        %v769 = vld [vmem:[%s299 + $0xb80] sm:$0xff]
        %v770 = vld [vmem:[%s299 + $0xb88] sm:$0xff]
        %v771 = vld [vmem:[%s299 + $0xb90] sm:$0xff]
        %v772 = vld [vmem:[%s299 + $0xb98] sm:$0xff]
        %v773 = vld [vmem:[%s299 + $0xba0] sm:$0xff]
        %v774 = vld [vmem:[%s299 + $0xba8] sm:$0xff]
        %v775 = vld [vmem:[%s299 + $0xbb0] sm:$0xff]
        %v776 = vld [vmem:[%s299 + $0xbb8] sm:$0xff]
        %v777 = vld [vmem:[%s299 + $0xbc0] sm:$0xff]
        %v778 = vld [vmem:[%s299 + $0xbc8] sm:$0xff]
        %v779 = vld [vmem:[%s299 + $0xbd0] sm:$0xff]
        %v780 = vld [vmem:[%s299 + $0xbd8] sm:$0xff]
        %v781 = vld [vmem:[%s299 + $0xbe0] sm:$0xff]
        %v782 = vld [vmem:[%s299 + $0xbe8] sm:$0xff]
        %v783 = vld [vmem:[%s299 + $0xbf0] sm:$0xff]
        %v784 = vld [vmem:[%s299 + $0xbf8] sm:$0xff]
        %v785 = vld [vmem:[%s299 + $0xc00] sm:$0xff]
        %v786 = vld [vmem:[%s299 + $0xc08] sm:$0xff]
        %v787 = vld [vmem:[%s299 + $0xc10] sm:$0xff]
        %v788 = vld [vmem:[%s299 + $0xc18] sm:$0xff]
        %v789 = vld [vmem:[%s299 + $0xc20] sm:$0xff]
        %v790 = vld [vmem:[%s299 + $0xc28] sm:$0xff]
        %v791 = vld [vmem:[%s299 + $0xc30] sm:$0xff]
        %v792 = vld [vmem:[%s299 + $0xc38] sm:$0xff]
        %v793 = vld [vmem:[%s299 + $0xc40] sm:$0xff]
        %v794 = vld [vmem:[%s299 + $0xc48] sm:$0xff]
        %v795 = vld [vmem:[%s299 + $0xc50] sm:$0xff]
        %v796 = vld [vmem:[%s299 + $0xc58] sm:$0xff]
        %v797 = vld [vmem:[%s299 + $0xc60] sm:$0xff]
        %v798 = vld [vmem:[%s299 + $0xc68] sm:$0xff]
        %v799 = vld [vmem:[%s299 + $0xc70] sm:$0xff]
        %v800 = vld [vmem:[%s299 + $0xc78] sm:$0xff]
        %v801 = vld [vmem:[%s299 + $0xc80] sm:$0xff]
        %v802 = vld [vmem:[%s299 + $0xc88] sm:$0xff]
        %v803 = vld [vmem:[%s299 + $0xc90] sm:$0xff]
        %v804 = vld [vmem:[%s299 + $0xc98] sm:$0xff]
        %v805 = vld [vmem:[%s299 + $0xca0] sm:$0xff]
        %v806 = vld [vmem:[%s299 + $0xca8] sm:$0xff]
        %v807 = vld [vmem:[%s299 + $0xcb0] sm:$0xff]
        %v808 = vld [vmem:[%s299 + $0xcb8] sm:$0xff]
        %v809 = vld [vmem:[%s299 + $0xcc0] sm:$0xff]
        %v810 = vld [vmem:[%s299 + $0xcc8] sm:$0xff]
        %v811 = vld [vmem:[%s299 + $0xcd0] sm:$0xff]
        %v812 = vld [vmem:[%s299 + $0xcd8] sm:$0xff]
        %v813 = vld [vmem:[%s299 + $0xce0] sm:$0xff]
        %v814 = vld [vmem:[%s299 + $0xce8] sm:$0xff]
        %v815 = vld [vmem:[%s299 + $0xcf0] sm:$0xff]
        %v816 = vld [vmem:[%s299 + $0xcf8] sm:$0xff]
        %v817 = vld [vmem:[%s299 + $0xd00] sm:$0xff]
        %v818 = vld [vmem:[%s299 + $0xd08] sm:$0xff]
        %v819 = vld [vmem:[%s299 + $0xd10] sm:$0xff]
        %v820 = vld [vmem:[%s299 + $0xd18] sm:$0xff]
        %v821 = vld [vmem:[%s299 + $0xd20] sm:$0xff]
        %v822 = vld [vmem:[%s299 + $0xd28] sm:$0xff]
        %v823 = vld [vmem:[%s299 + $0xd30] sm:$0xff]
        %v824 = vld [vmem:[%s299 + $0xd38] sm:$0xff]
        %v825 = vld [vmem:[%s299 + $0xd40] sm:$0xff]
        %v826 = vld [vmem:[%s299 + $0xd48] sm:$0xff]
        %v827 = vld [vmem:[%s299 + $0xd50] sm:$0xff]
        %v828 = vld [vmem:[%s299 + $0xd58] sm:$0xff]
        %v829 = vld [vmem:[%s299 + $0xd60] sm:$0xff]
        %v830 = vld [vmem:[%s299 + $0xd68] sm:$0xff]
        %v831 = vld [vmem:[%s299 + $0xd70] sm:$0xff]
        %v832 = vld [vmem:[%s299 + $0xd78] sm:$0xff]
        %v833 = vld [vmem:[%s299 + $0xd80] sm:$0xff]
        %v834 = vld [vmem:[%s299 + $0xd88] sm:$0xff]
        %v835 = vld [vmem:[%s299 + $0xd90] sm:$0xff]
        %v836 = vld [vmem:[%s299 + $0xd98] sm:$0xff]
        %v837 = vld [vmem:[%s299 + $0xda0] sm:$0xff]
        %v838 = vld [vmem:[%s299 + $0xda8] sm:$0xff]
        %v839 = vld [vmem:[%s299 + $0xdb0] sm:$0xff]
        %v840 = vld [vmem:[%s299 + $0xdb8] sm:$0xff]
        %v841 = vld [vmem:[%s299 + $0xdc0] sm:$0xff]
        %v842 = vld [vmem:[%s299 + $0xdc8] sm:$0xff]
        %v843 = vld [vmem:[%s299 + $0xdd0] sm:$0xff]
        %v844 = vld [vmem:[%s299 + $0xdd8] sm:$0xff]
        %v845 = vld [vmem:[%s299 + $0xde0] sm:$0xff]
        %v846 = vld [vmem:[%s299 + $0xde8] sm:$0xff]
        %v847 = vld [vmem:[%s299 + $0xdf0] sm:$0xff]
        %v848 = vld [vmem:[%s299 + $0xdf8] sm:$0xff]
        %v849 = vld [vmem:[%s299 + $0xe00] sm:$0xff]
        %v850 = vld [vmem:[%s299 + $0xe08] sm:$0xff]
        %v851 = vld [vmem:[%s299 + $0xe10] sm:$0xff]
        %v852 = vld [vmem:[%s299 + $0xe18] sm:$0xff]
        %v853 = vld [vmem:[%s299 + $0xe20] sm:$0xff]
        %v854 = vld [vmem:[%s299 + $0xe28] sm:$0xff]
        %v855 = vld [vmem:[%s299 + $0xe30] sm:$0xff]
        %v856 = vld [vmem:[%s299 + $0xe38] sm:$0xff]
        %v857 = vld [vmem:[%s299 + $0xe40] sm:$0xff]
        %v858 = vld [vmem:[%s299 + $0xe48] sm:$0xff]
        %v859 = vld [vmem:[%s299 + $0xe50] sm:$0xff]
        %v860 = vld [vmem:[%s299 + $0xe58] sm:$0xff]
        %v861 = vld [vmem:[%s299 + $0xe60] sm:$0xff]
        %v862 = vld [vmem:[%s299 + $0xe68] sm:$0xff]
        %v863 = vld [vmem:[%s299 + $0xe70] sm:$0xff]
        %v864 = vld [vmem:[%s299 + $0xe78] sm:$0xff]
        %v865 = vld [vmem:[%s299 + $0xe80] sm:$0xff]
        %v866 = vld [vmem:[%s299 + $0xe88] sm:$0xff]
        %v867 = vld [vmem:[%s299 + $0xe90] sm:$0xff]
        %v868 = vld [vmem:[%s299 + $0xe98] sm:$0xff]
        %v869 = vld [vmem:[%s299 + $0xea0] sm:$0xff]
        %v870 = vld [vmem:[%s299 + $0xea8] sm:$0xff]
        %v871 = vld [vmem:[%s299 + $0xeb0] sm:$0xff]
        %v872 = vld [vmem:[%s299 + $0xeb8] sm:$0xff]
        %v873 = vld [vmem:[%s299 + $0xec0] sm:$0xff]
        %v874 = vld [vmem:[%s299 + $0xec8] sm:$0xff]
        %v875 = vld [vmem:[%s299 + $0xed0] sm:$0xff]
        %v876 = vld [vmem:[%s299 + $0xed8] sm:$0xff]
        %v877 = vld [vmem:[%s299 + $0xee0] sm:$0xff]
        %v878 = vld [vmem:[%s299 + $0xee8] sm:$0xff]
        %v879 = vld [vmem:[%s299 + $0xef0] sm:$0xff]
        %v880 = vld [vmem:[%s299 + $0xef8] sm:$0xff]
        %v881 = vld [vmem:[%s299 + $0xf00] sm:$0xff]
        %v882 = vld [vmem:[%s299 + $0xf08] sm:$0xff]
        %v883 = vld [vmem:[%s299 + $0xf10] sm:$0xff]
        %v884 = vld [vmem:[%s299 + $0xf18] sm:$0xff]
        %v885 = vld [vmem:[%s299 + $0xf20] sm:$0xff]
        %v886 = vld [vmem:[%s299 + $0xf28] sm:$0xff]
        %v887 = vld [vmem:[%s299 + $0xf30] sm:$0xff]
        %v888 = vld [vmem:[%s299 + $0xf38] sm:$0xff]
        %v889 = vld [vmem:[%s299 + $0xf40] sm:$0xff]
        %v890 = vld [vmem:[%s299 + $0xf48] sm:$0xff]
        %v891 = vld [vmem:[%s299 + $0xf50] sm:$0xff]
        %v892 = vld [vmem:[%s299 + $0xf58] sm:$0xff]
        %v893 = vld [vmem:[%s299 + $0xf60] sm:$0xff]
        %v894 = vld [vmem:[%s299 + $0xf68] sm:$0xff]
        %v895 = vld [vmem:[%s299 + $0xf70] sm:$0xff]
        %v896 = vld [vmem:[%s299 + $0xf78] sm:$0xff]
        %v897 = vld [vmem:[%s299 + $0xf80] sm:$0xff]
        %v898 = vld [vmem:[%s299 + $0xf88] sm:$0xff]
        %v899 = vld [vmem:[%s299 + $0xf90] sm:$0xff]
        %v900 = vld [vmem:[%s299 + $0xf98] sm:$0xff]
        %v901 = vld [vmem:[%s299 + $0xfa0] sm:$0xff]
        %v902 = vld [vmem:[%s299 + $0xfa8] sm:$0xff]
        %v903 = vld [vmem:[%s299 + $0xfb0] sm:$0xff]
        %v904 = vld [vmem:[%s299 + $0xfb8] sm:$0xff]
        %v905 = vld [vmem:[%s299 + $0xfc0] sm:$0xff]
        %v906 = vld [vmem:[%s299 + $0xfc8] sm:$0xff]
        %v907 = vld [vmem:[%s299 + $0xfd0] sm:$0xff]
        %v908 = vld [vmem:[%s299 + $0xfd8] sm:$0xff]
        %v909 = vld [vmem:[%s299 + $0xfe0] sm:$0xff]
        %v910 = vld [vmem:[%s299 + $0xfe8] sm:$0xff]
        %v911 = vld [vmem:[%s299 + $0xff0] sm:$0xff]
        %v912 = vld [vmem:[%s299 + $0xff8] sm:$0xff]
        %v941 = vunpack.c.l.b16 %v373
        %v942 = vunpack.c.h.b16 %v373
        %v943 = vunpack.c.l.b16 %v374
        %v944 = vunpack.c.h.b16 %v374
        %v945 = vunpack.c.l.b16 %v375
        %v946 = vunpack.c.h.b16 %v375
        %v947 = vunpack.c.l.b16 %v376
        %v948 = vunpack.c.h.b16 %v376
        %v949 = vunpack.c.l.b16 %v377
        %v950 = vunpack.c.h.b16 %v377
        %v951 = vunpack.c.l.b16 %v378
        %v952 = vunpack.c.h.b16 %v378
        %v953 = vunpack.c.l.b16 %v379
        %v954 = vunpack.c.h.b16 %v379
        %v955 = vunpack.c.l.b16 %v380
        %v956 = vunpack.c.h.b16 %v380
        %v957 = vunpack.c.l.b16 %v381
        %v958 = vunpack.c.h.b16 %v381
        %v959 = vunpack.c.l.b16 %v382
        %v960 = vunpack.c.h.b16 %v382
        %v961 = vunpack.c.l.b16 %v383
        %v962 = vunpack.c.h.b16 %v383
        %v963 = vunpack.c.l.b16 %v384
        %v964 = vunpack.c.h.b16 %v384
        %v965 = vunpack.c.l.b16 %v385
        %v966 = vunpack.c.h.b16 %v385
        %v967 = vunpack.c.l.b16 %v386
        %v968 = vunpack.c.h.b16 %v386
        %v969 = vunpack.c.l.b16 %v387
        %v970 = vunpack.c.h.b16 %v387
        %v971 = vunpack.c.l.b16 %v388
        %v972 = vunpack.c.h.b16 %v388
        %v973 = vunpack.c.l.b16 %v389
        %v974 = vunpack.c.h.b16 %v389
        %v975 = vunpack.c.l.b16 %v390
        %v976 = vunpack.c.h.b16 %v390
        %v977 = vunpack.c.l.b16 %v391
        %v978 = vunpack.c.h.b16 %v391
        %v979 = vunpack.c.l.b16 %v392
        %v980 = vunpack.c.h.b16 %v392
        %v981 = vunpack.c.l.b16 %v393
        %v982 = vunpack.c.h.b16 %v393
        %v983 = vunpack.c.l.b16 %v394
        %v984 = vunpack.c.h.b16 %v394
        %v985 = vunpack.c.l.b16 %v395
        %v986 = vunpack.c.h.b16 %v395
        %v987 = vunpack.c.l.b16 %v396
        %v988 = vunpack.c.h.b16 %v396
        %v989 = vunpack.c.l.b16 %v397
        %v990 = vunpack.c.h.b16 %v397
        %v991 = vunpack.c.l.b16 %v398
        %v992 = vunpack.c.h.b16 %v398
        %v993 = vunpack.c.l.b16 %v399
        %v994 = vunpack.c.h.b16 %v399
        %v995 = vunpack.c.l.b16 %v400
        %v996 = vunpack.c.h.b16 %v400
        %v997 = vpack.c.b16 %v949, %v941
        %v998 = vpack.c.b16 %v950, %v942
        %v999 = vpack.c.b16 %v951, %v943
        %v1000 = vpack.c.b16 %v952, %v944
        %v1001 = vpack.c.b16 %v953, %v945
        %v1002 = vpack.c.b16 %v954, %v946
        %v1003 = vpack.c.b16 %v955, %v947
        %v1004 = vpack.c.b16 %v956, %v948
        %v1005 = vpack.c.b16 %v965, %v957
        %v1006 = vpack.c.b16 %v966, %v958
        %v1007 = vpack.c.b16 %v967, %v959
        %v1008 = vpack.c.b16 %v968, %v960
        %v1009 = vpack.c.b16 %v969, %v961
        %v1010 = vpack.c.b16 %v970, %v962
        %v1011 = vpack.c.b16 %v971, %v963
        %v1012 = vpack.c.b16 %v972, %v964
        %v1013 = vpack.c.b16 %v981, %v973
        %v1014 = vpack.c.b16 %v982, %v974
        %v1015 = vpack.c.b16 %v983, %v975
        %v1016 = vpack.c.b16 %v984, %v976
        %v1017 = vpack.c.b16 %v985, %v977
        %v1018 = vpack.c.b16 %v986, %v978
        %v1019 = vpack.c.b16 %v987, %v979
        %v1020 = vpack.c.b16 %v988, %v980
        %v1021 = vpack.c.b16 %v989, %v989
        %v1022 = vpack.c.b16 %v990, %v990
        %v1023 = vpack.c.b16 %v991, %v991
        %v1024 = vpack.c.b16 %v992, %v992
        %v1025 = vpack.c.b16 %v993, %v993
        %v1026 = vpack.c.b16 %v994, %v994
        %v1027 = vpack.c.b16 %v995, %v995
        %v1028 = vpack.c.b16 %v996, %v996
        %v1573 = vunpack.c.l.b16 %v401
        %v1574 = vunpack.c.h.b16 %v401
        %v1575 = vunpack.c.l.b16 %v402
        %v1576 = vunpack.c.h.b16 %v402
        %v1577 = vunpack.c.l.b16 %v403
        %v1578 = vunpack.c.h.b16 %v403
        %v1579 = vunpack.c.l.b16 %v404
        %v1580 = vunpack.c.h.b16 %v404
        %v1581 = vunpack.c.l.b16 %v405
        %v1582 = vunpack.c.h.b16 %v405
        %v1583 = vunpack.c.l.b16 %v406
        %v1584 = vunpack.c.h.b16 %v406
        %v1585 = vunpack.c.l.b16 %v407
        %v1586 = vunpack.c.h.b16 %v407
        %v1587 = vunpack.c.l.b16 %v408
        %v1588 = vunpack.c.h.b16 %v408
        %v1589 = vunpack.c.l.b16 %v409
        %v1590 = vunpack.c.h.b16 %v409
        %v1591 = vunpack.c.l.b16 %v410
        %v1592 = vunpack.c.h.b16 %v410
        %v1593 = vunpack.c.l.b16 %v411
        %v1594 = vunpack.c.h.b16 %v411
        %v1595 = vunpack.c.l.b16 %v412
        %v1596 = vunpack.c.h.b16 %v412
        %v1597 = vunpack.c.l.b16 %v413
        %v1598 = vunpack.c.h.b16 %v413
        %v1599 = vunpack.c.l.b16 %v414
        %v1600 = vunpack.c.h.b16 %v414
        %v1601 = vunpack.c.l.b16 %v415
        %v1602 = vunpack.c.h.b16 %v415
        %v1603 = vunpack.c.l.b16 %v416
        %v1604 = vunpack.c.h.b16 %v416
        %v1605 = vunpack.c.l.b16 %v417
        %v1606 = vunpack.c.h.b16 %v417
        %v1607 = vunpack.c.l.b16 %v418
        %v1608 = vunpack.c.h.b16 %v418
        %v1609 = vunpack.c.l.b16 %v419
        %v1610 = vunpack.c.h.b16 %v419
        %v1611 = vunpack.c.l.b16 %v420
        %v1612 = vunpack.c.h.b16 %v420
        %v1613 = vunpack.c.l.b16 %v421
        %v1614 = vunpack.c.h.b16 %v421
        %v1615 = vunpack.c.l.b16 %v422
        %v1616 = vunpack.c.h.b16 %v422
        %v1617 = vunpack.c.l.b16 %v423
        %v1618 = vunpack.c.h.b16 %v423
        %v1619 = vunpack.c.l.b16 %v424
        %v1620 = vunpack.c.h.b16 %v424
        %v1621 = vunpack.c.l.b16 %v425
        %v1622 = vunpack.c.h.b16 %v425
        %v1623 = vunpack.c.l.b16 %v426
        %v1624 = vunpack.c.h.b16 %v426
        %v1625 = vunpack.c.l.b16 %v427
        %v1626 = vunpack.c.h.b16 %v427
        %v1627 = vunpack.c.l.b16 %v428
        %v1628 = vunpack.c.h.b16 %v428
        %v1629 = vunpack.c.l.b16 %v429
        %v1630 = vunpack.c.h.b16 %v429
        %v1631 = vunpack.c.l.b16 %v430
        %v1632 = vunpack.c.h.b16 %v430
        %v1633 = vunpack.c.l.b16 %v431
        %v1634 = vunpack.c.h.b16 %v431
        %v1635 = vunpack.c.l.b16 %v432
        %v1636 = vunpack.c.h.b16 %v432
        %v1637 = vunpack.c.l.b16 %v433
        %v1638 = vunpack.c.h.b16 %v433
        %v1639 = vunpack.c.l.b16 %v434
        %v1640 = vunpack.c.h.b16 %v434
        %v1641 = vunpack.c.l.b16 %v435
        %v1642 = vunpack.c.h.b16 %v435
        %v1643 = vunpack.c.l.b16 %v436
        %v1644 = vunpack.c.h.b16 %v436
        %v1645 = vunpack.c.l.b16 %v437
        %v1646 = vunpack.c.h.b16 %v437
        %v1647 = vunpack.c.l.b16 %v438
        %v1648 = vunpack.c.h.b16 %v438
        %v1649 = vunpack.c.l.b16 %v439
        %v1650 = vunpack.c.h.b16 %v439
        %v1651 = vunpack.c.l.b16 %v440
        %v1652 = vunpack.c.h.b16 %v440
        %v1653 = vunpack.c.l.b16 %v441
        %v1654 = vunpack.c.h.b16 %v441
        %v1655 = vunpack.c.l.b16 %v442
        %v1656 = vunpack.c.h.b16 %v442
        %v1657 = vunpack.c.l.b16 %v443
        %v1658 = vunpack.c.h.b16 %v443
        %v1659 = vunpack.c.l.b16 %v444
        %v1660 = vunpack.c.h.b16 %v444
        %v1661 = vunpack.c.l.b16 %v445
        %v1662 = vunpack.c.h.b16 %v445
        %v1663 = vunpack.c.l.b16 %v446
        %v1664 = vunpack.c.h.b16 %v446
        %v1665 = vunpack.c.l.b16 %v447
        %v1666 = vunpack.c.h.b16 %v447
        %v1667 = vunpack.c.l.b16 %v448
        %v1668 = vunpack.c.h.b16 %v448
        %v1669 = vunpack.c.l.b16 %v449
        %v1670 = vunpack.c.h.b16 %v449
        %v1671 = vunpack.c.l.b16 %v450
        %v1672 = vunpack.c.h.b16 %v450
        %v1673 = vunpack.c.l.b16 %v451
        %v1674 = vunpack.c.h.b16 %v451
        %v1675 = vunpack.c.l.b16 %v452
        %v1676 = vunpack.c.h.b16 %v452
        %v1677 = vunpack.c.l.b16 %v453
        %v1678 = vunpack.c.h.b16 %v453
        %v1679 = vunpack.c.l.b16 %v454
        %v1680 = vunpack.c.h.b16 %v454
        %v1681 = vunpack.c.l.b16 %v455
        %v1682 = vunpack.c.h.b16 %v455
        %v1683 = vunpack.c.l.b16 %v456
        %v1684 = vunpack.c.h.b16 %v456
        %v1685 = vunpack.c.l.b16 %v457
        %v1686 = vunpack.c.h.b16 %v457
        %v1687 = vunpack.c.l.b16 %v458
        %v1688 = vunpack.c.h.b16 %v458
        %v1689 = vunpack.c.l.b16 %v459
        %v1690 = vunpack.c.h.b16 %v459
        %v1691 = vunpack.c.l.b16 %v460
        %v1692 = vunpack.c.h.b16 %v460
        %v1693 = vunpack.c.l.b16 %v461
        %v1694 = vunpack.c.h.b16 %v461
        %v1695 = vunpack.c.l.b16 %v462
        %v1696 = vunpack.c.h.b16 %v462
        %v1697 = vunpack.c.l.b16 %v463
        %v1698 = vunpack.c.h.b16 %v463
        %v1699 = vunpack.c.l.b16 %v464
        %v1700 = vunpack.c.h.b16 %v464
        %v1701 = vunpack.c.l.b16 %v465
        %v1702 = vunpack.c.h.b16 %v465
        %v1703 = vunpack.c.l.b16 %v466
        %v1704 = vunpack.c.h.b16 %v466
        %v1705 = vunpack.c.l.b16 %v467
        %v1706 = vunpack.c.h.b16 %v467
        %v1707 = vunpack.c.l.b16 %v468
        %v1708 = vunpack.c.h.b16 %v468
        %v1709 = vunpack.c.l.b16 %v469
        %v1710 = vunpack.c.h.b16 %v469
        %v1711 = vunpack.c.l.b16 %v470
        %v1712 = vunpack.c.h.b16 %v470
        %v1713 = vunpack.c.l.b16 %v471
        %v1714 = vunpack.c.h.b16 %v471
        %v1715 = vunpack.c.l.b16 %v472
        %v1716 = vunpack.c.h.b16 %v472
        %v1717 = vunpack.c.l.b16 %v473
        %v1718 = vunpack.c.h.b16 %v473
        %v1719 = vunpack.c.l.b16 %v474
        %v1720 = vunpack.c.h.b16 %v474
        %v1721 = vunpack.c.l.b16 %v475
        %v1722 = vunpack.c.h.b16 %v475
        %v1723 = vunpack.c.l.b16 %v476
        %v1724 = vunpack.c.h.b16 %v476
        %v1725 = vunpack.c.l.b16 %v477
        %v1726 = vunpack.c.h.b16 %v477
        %v1727 = vunpack.c.l.b16 %v478
        %v1728 = vunpack.c.h.b16 %v478
        %v1729 = vunpack.c.l.b16 %v479
        %v1730 = vunpack.c.h.b16 %v479
        %v1731 = vunpack.c.l.b16 %v480
        %v1732 = vunpack.c.h.b16 %v480
        %v1733 = vunpack.c.l.b16 %v481
        %v1734 = vunpack.c.h.b16 %v481
        %v1735 = vunpack.c.l.b16 %v482
        %v1736 = vunpack.c.h.b16 %v482
        %v1737 = vunpack.c.l.b16 %v483
        %v1738 = vunpack.c.h.b16 %v483
        %v1739 = vunpack.c.l.b16 %v484
        %v1740 = vunpack.c.h.b16 %v484
        %v1741 = vunpack.c.l.b16 %v485
        %v1742 = vunpack.c.h.b16 %v485
        %v1743 = vunpack.c.l.b16 %v486
        %v1744 = vunpack.c.h.b16 %v486
        %v1745 = vunpack.c.l.b16 %v487
        %v1746 = vunpack.c.h.b16 %v487
        %v1747 = vunpack.c.l.b16 %v488
        %v1748 = vunpack.c.h.b16 %v488
        %v1749 = vunpack.c.l.b16 %v489
        %v1750 = vunpack.c.h.b16 %v489
        %v1751 = vunpack.c.l.b16 %v490
        %v1752 = vunpack.c.h.b16 %v490
        %v1753 = vunpack.c.l.b16 %v491
        %v1754 = vunpack.c.h.b16 %v491
        %v1755 = vunpack.c.l.b16 %v492
        %v1756 = vunpack.c.h.b16 %v492
        %v1757 = vunpack.c.l.b16 %v493
        %v1758 = vunpack.c.h.b16 %v493
        %v1759 = vunpack.c.l.b16 %v494
        %v1760 = vunpack.c.h.b16 %v494
        %v1761 = vunpack.c.l.b16 %v495
        %v1762 = vunpack.c.h.b16 %v495
        %v1763 = vunpack.c.l.b16 %v496
        %v1764 = vunpack.c.h.b16 %v496
        %v1765 = vunpack.c.l.b16 %v497
        %v1766 = vunpack.c.h.b16 %v497
        %v1767 = vunpack.c.l.b16 %v498
        %v1768 = vunpack.c.h.b16 %v498
        %v1769 = vunpack.c.l.b16 %v499
        %v1770 = vunpack.c.h.b16 %v499
        %v1771 = vunpack.c.l.b16 %v500
        %v1772 = vunpack.c.h.b16 %v500
        %v1773 = vunpack.c.l.b16 %v501
        %v1774 = vunpack.c.h.b16 %v501
        %v1775 = vunpack.c.l.b16 %v502
        %v1776 = vunpack.c.h.b16 %v502
        %v1777 = vunpack.c.l.b16 %v503
        %v1778 = vunpack.c.h.b16 %v503
        %v1779 = vunpack.c.l.b16 %v504
        %v1780 = vunpack.c.h.b16 %v504
        %v1781 = vunpack.c.l.b16 %v505
        %v1782 = vunpack.c.h.b16 %v505
        %v1783 = vunpack.c.l.b16 %v506
        %v1784 = vunpack.c.h.b16 %v506
        %v1785 = vunpack.c.l.b16 %v507
        %v1786 = vunpack.c.h.b16 %v507
        %v1787 = vunpack.c.l.b16 %v508
        %v1788 = vunpack.c.h.b16 %v508
        %v1789 = vunpack.c.l.b16 %v509
        %v1790 = vunpack.c.h.b16 %v509
        %v1791 = vunpack.c.l.b16 %v510
        %v1792 = vunpack.c.h.b16 %v510
        %v1793 = vunpack.c.l.b16 %v511
        %v1794 = vunpack.c.h.b16 %v511
        %v1795 = vunpack.c.l.b16 %v512
        %v1796 = vunpack.c.h.b16 %v512
        %v1797 = vunpack.c.l.b16 %v513
        %v1798 = vunpack.c.h.b16 %v513
        %v1799 = vunpack.c.l.b16 %v514
        %v1800 = vunpack.c.h.b16 %v514
        %v1801 = vunpack.c.l.b16 %v515
        %v1802 = vunpack.c.h.b16 %v515
        %v1803 = vunpack.c.l.b16 %v516
        %v1804 = vunpack.c.h.b16 %v516
        %v1805 = vunpack.c.l.b16 %v517
        %v1806 = vunpack.c.h.b16 %v517
        %v1807 = vunpack.c.l.b16 %v518
        %v1808 = vunpack.c.h.b16 %v518
        %v1809 = vunpack.c.l.b16 %v519
        %v1810 = vunpack.c.h.b16 %v519
        %v1811 = vunpack.c.l.b16 %v520
        %v1812 = vunpack.c.h.b16 %v520
        %v1813 = vunpack.c.l.b16 %v521
        %v1814 = vunpack.c.h.b16 %v521
        %v1815 = vunpack.c.l.b16 %v522
        %v1816 = vunpack.c.h.b16 %v522
        %v1817 = vunpack.c.l.b16 %v523
        %v1818 = vunpack.c.h.b16 %v523
        %v1819 = vunpack.c.l.b16 %v524
        %v1820 = vunpack.c.h.b16 %v524
        %v1821 = vunpack.c.l.b16 %v525
        %v1822 = vunpack.c.h.b16 %v525
        %v1823 = vunpack.c.l.b16 %v526
        %v1824 = vunpack.c.h.b16 %v526
        %v1825 = vunpack.c.l.b16 %v527
        %v1826 = vunpack.c.h.b16 %v527
        %v1827 = vunpack.c.l.b16 %v528
        %v1828 = vunpack.c.h.b16 %v528
        %v1829 = vunpack.c.l.b16 %v529
        %v1830 = vunpack.c.h.b16 %v529
        %v1831 = vunpack.c.l.b16 %v530
        %v1832 = vunpack.c.h.b16 %v530
        %v1833 = vunpack.c.l.b16 %v531
        %v1834 = vunpack.c.h.b16 %v531
        %v1835 = vunpack.c.l.b16 %v532
        %v1836 = vunpack.c.h.b16 %v532
        %v1837 = vunpack.c.l.b16 %v533
        %v1838 = vunpack.c.h.b16 %v533
        %v1839 = vunpack.c.l.b16 %v534
        %v1840 = vunpack.c.h.b16 %v534
        %v1841 = vunpack.c.l.b16 %v535
        %v1842 = vunpack.c.h.b16 %v535
        %v1843 = vunpack.c.l.b16 %v536
        %v1844 = vunpack.c.h.b16 %v536
        %v1845 = vunpack.c.l.b16 %v537
        %v1846 = vunpack.c.h.b16 %v537
        %v1847 = vunpack.c.l.b16 %v538
        %v1848 = vunpack.c.h.b16 %v538
        %v1849 = vunpack.c.l.b16 %v539
        %v1850 = vunpack.c.h.b16 %v539
        %v1851 = vunpack.c.l.b16 %v540
        %v1852 = vunpack.c.h.b16 %v540
        %v1853 = vunpack.c.l.b16 %v541
        %v1854 = vunpack.c.h.b16 %v541
        %v1855 = vunpack.c.l.b16 %v542
        %v1856 = vunpack.c.h.b16 %v542
        %v1857 = vunpack.c.l.b16 %v543
        %v1858 = vunpack.c.h.b16 %v543
        %v1859 = vunpack.c.l.b16 %v544
        %v1860 = vunpack.c.h.b16 %v544
        %v1861 = vunpack.c.l.b16 %v545
        %v1862 = vunpack.c.h.b16 %v545
        %v1863 = vunpack.c.l.b16 %v546
        %v1864 = vunpack.c.h.b16 %v546
        %v1865 = vunpack.c.l.b16 %v547
        %v1866 = vunpack.c.h.b16 %v547
        %v1867 = vunpack.c.l.b16 %v548
        %v1868 = vunpack.c.h.b16 %v548
        %v1869 = vunpack.c.l.b16 %v549
        %v1870 = vunpack.c.h.b16 %v549
        %v1871 = vunpack.c.l.b16 %v550
        %v1872 = vunpack.c.h.b16 %v550
        %v1873 = vunpack.c.l.b16 %v551
        %v1874 = vunpack.c.h.b16 %v551
        %v1875 = vunpack.c.l.b16 %v552
        %v1876 = vunpack.c.h.b16 %v552
        %v1877 = vunpack.c.l.b16 %v553
        %v1878 = vunpack.c.h.b16 %v553
        %v1879 = vunpack.c.l.b16 %v554
        %v1880 = vunpack.c.h.b16 %v554
        %v1881 = vunpack.c.l.b16 %v555
        %v1882 = vunpack.c.h.b16 %v555
        %v1883 = vunpack.c.l.b16 %v556
        %v1884 = vunpack.c.h.b16 %v556
        %v1885 = vunpack.c.l.b16 %v557
        %v1886 = vunpack.c.h.b16 %v557
        %v1887 = vunpack.c.l.b16 %v558
        %v1888 = vunpack.c.h.b16 %v558
        %v1889 = vunpack.c.l.b16 %v559
        %v1890 = vunpack.c.h.b16 %v559
        %v1891 = vunpack.c.l.b16 %v560
        %v1892 = vunpack.c.h.b16 %v560
        %v1893 = vunpack.c.l.b16 %v561
        %v1894 = vunpack.c.h.b16 %v561
        %v1895 = vunpack.c.l.b16 %v562
        %v1896 = vunpack.c.h.b16 %v562
        %v1897 = vunpack.c.l.b16 %v563
        %v1898 = vunpack.c.h.b16 %v563
        %v1899 = vunpack.c.l.b16 %v564
        %v1900 = vunpack.c.h.b16 %v564
        %v1901 = vunpack.c.l.b16 %v565
        %v1902 = vunpack.c.h.b16 %v565
        %v1903 = vunpack.c.l.b16 %v566
        %v1904 = vunpack.c.h.b16 %v566
        %v1905 = vunpack.c.l.b16 %v567
        %v1906 = vunpack.c.h.b16 %v567
        %v1907 = vunpack.c.l.b16 %v568
        %v1908 = vunpack.c.h.b16 %v568
        %v1909 = vunpack.c.l.b16 %v569
        %v1910 = vunpack.c.h.b16 %v569
        %v1911 = vunpack.c.l.b16 %v570
        %v1912 = vunpack.c.h.b16 %v570
        %v1913 = vunpack.c.l.b16 %v571
        %v1914 = vunpack.c.h.b16 %v571
        %v1915 = vunpack.c.l.b16 %v572
        %v1916 = vunpack.c.h.b16 %v572
        %v1917 = vunpack.c.l.b16 %v573
        %v1918 = vunpack.c.h.b16 %v573
        %v1919 = vunpack.c.l.b16 %v574
        %v1920 = vunpack.c.h.b16 %v574
        %v1921 = vunpack.c.l.b16 %v575
        %v1922 = vunpack.c.h.b16 %v575
        %v1923 = vunpack.c.l.b16 %v576
        %v1924 = vunpack.c.h.b16 %v576
        %v1925 = vunpack.c.l.b16 %v577
        %v1926 = vunpack.c.h.b16 %v577
        %v1927 = vunpack.c.l.b16 %v578
        %v1928 = vunpack.c.h.b16 %v578
        %v1929 = vunpack.c.l.b16 %v579
        %v1930 = vunpack.c.h.b16 %v579
        %v1931 = vunpack.c.l.b16 %v580
        %v1932 = vunpack.c.h.b16 %v580
        %v1933 = vunpack.c.l.b16 %v581
        %v1934 = vunpack.c.h.b16 %v581
        %v1935 = vunpack.c.l.b16 %v582
        %v1936 = vunpack.c.h.b16 %v582
        %v1937 = vunpack.c.l.b16 %v583
        %v1938 = vunpack.c.h.b16 %v583
        %v1939 = vunpack.c.l.b16 %v584
        %v1940 = vunpack.c.h.b16 %v584
        %v1941 = vunpack.c.l.b16 %v585
        %v1942 = vunpack.c.h.b16 %v585
        %v1943 = vunpack.c.l.b16 %v586
        %v1944 = vunpack.c.h.b16 %v586
        %v1945 = vunpack.c.l.b16 %v587
        %v1946 = vunpack.c.h.b16 %v587
        %v1947 = vunpack.c.l.b16 %v588
        %v1948 = vunpack.c.h.b16 %v588
        %v1949 = vunpack.c.l.b16 %v589
        %v1950 = vunpack.c.h.b16 %v589
        %v1951 = vunpack.c.l.b16 %v590
        %v1952 = vunpack.c.h.b16 %v590
        %v1953 = vunpack.c.l.b16 %v591
        %v1954 = vunpack.c.h.b16 %v591
        %v1955 = vunpack.c.l.b16 %v592
        %v1956 = vunpack.c.h.b16 %v592
        %v1957 = vunpack.c.l.b16 %v593
        %v1958 = vunpack.c.h.b16 %v593
        %v1959 = vunpack.c.l.b16 %v594
        %v1960 = vunpack.c.h.b16 %v594
        %v1961 = vunpack.c.l.b16 %v595
        %v1962 = vunpack.c.h.b16 %v595
        %v1963 = vunpack.c.l.b16 %v596
        %v1964 = vunpack.c.h.b16 %v596
        %v1965 = vunpack.c.l.b16 %v597
        %v1966 = vunpack.c.h.b16 %v597
        %v1967 = vunpack.c.l.b16 %v598
        %v1968 = vunpack.c.h.b16 %v598
        %v1969 = vunpack.c.l.b16 %v599
        %v1970 = vunpack.c.h.b16 %v599
        %v1971 = vunpack.c.l.b16 %v600
        %v1972 = vunpack.c.h.b16 %v600
        %v1973 = vunpack.c.l.b16 %v601
        %v1974 = vunpack.c.h.b16 %v601
        %v1975 = vunpack.c.l.b16 %v602
        %v1976 = vunpack.c.h.b16 %v602
        %v1977 = vunpack.c.l.b16 %v603
        %v1978 = vunpack.c.h.b16 %v603
        %v1979 = vunpack.c.l.b16 %v604
        %v1980 = vunpack.c.h.b16 %v604
        %v1981 = vunpack.c.l.b16 %v605
        %v1982 = vunpack.c.h.b16 %v605
        %v1983 = vunpack.c.l.b16 %v606
        %v1984 = vunpack.c.h.b16 %v606
        %v1985 = vunpack.c.l.b16 %v607
        %v1986 = vunpack.c.h.b16 %v607
        %v1987 = vunpack.c.l.b16 %v608
        %v1988 = vunpack.c.h.b16 %v608
        %v1989 = vunpack.c.l.b16 %v609
        %v1990 = vunpack.c.h.b16 %v609
        %v1991 = vunpack.c.l.b16 %v610
        %v1992 = vunpack.c.h.b16 %v610
        %v1993 = vunpack.c.l.b16 %v611
        %v1994 = vunpack.c.h.b16 %v611
        %v1995 = vunpack.c.l.b16 %v612
        %v1996 = vunpack.c.h.b16 %v612
        %v1997 = vunpack.c.l.b16 %v613
        %v1998 = vunpack.c.h.b16 %v613
        %v1999 = vunpack.c.l.b16 %v614
        %v2000 = vunpack.c.h.b16 %v614
        %v2001 = vunpack.c.l.b16 %v615
        %v2002 = vunpack.c.h.b16 %v615
        %v2003 = vunpack.c.l.b16 %v616
        %v2004 = vunpack.c.h.b16 %v616
        %v2005 = vunpack.c.l.b16 %v617
        %v2006 = vunpack.c.h.b16 %v617
        %v2007 = vunpack.c.l.b16 %v618
        %v2008 = vunpack.c.h.b16 %v618
        %v2009 = vunpack.c.l.b16 %v619
        %v2010 = vunpack.c.h.b16 %v619
        %v2011 = vunpack.c.l.b16 %v620
        %v2012 = vunpack.c.h.b16 %v620
        %v2013 = vunpack.c.l.b16 %v621
        %v2014 = vunpack.c.h.b16 %v621
        %v2015 = vunpack.c.l.b16 %v622
        %v2016 = vunpack.c.h.b16 %v622
        %v2017 = vunpack.c.l.b16 %v623
        %v2018 = vunpack.c.h.b16 %v623
        %v2019 = vunpack.c.l.b16 %v624
        %v2020 = vunpack.c.h.b16 %v624
        %v2021 = vunpack.c.l.b16 %v625
        %v2022 = vunpack.c.h.b16 %v625
        %v2023 = vunpack.c.l.b16 %v626
        %v2024 = vunpack.c.h.b16 %v626
        %v2025 = vunpack.c.l.b16 %v627
        %v2026 = vunpack.c.h.b16 %v627
        %v2027 = vunpack.c.l.b16 %v628
        %v2028 = vunpack.c.h.b16 %v628
        %v2029 = vunpack.c.l.b16 %v629
        %v2030 = vunpack.c.h.b16 %v629
        %v2031 = vunpack.c.l.b16 %v630
        %v2032 = vunpack.c.h.b16 %v630
        %v2033 = vunpack.c.l.b16 %v631
        %v2034 = vunpack.c.h.b16 %v631
        %v2035 = vunpack.c.l.b16 %v632
        %v2036 = vunpack.c.h.b16 %v632
        %v2037 = vunpack.c.l.b16 %v633
        %v2038 = vunpack.c.h.b16 %v633
        %v2039 = vunpack.c.l.b16 %v634
        %v2040 = vunpack.c.h.b16 %v634
        %v2041 = vunpack.c.l.b16 %v635
        %v2042 = vunpack.c.h.b16 %v635
        %v2043 = vunpack.c.l.b16 %v636
        %v2044 = vunpack.c.h.b16 %v636
        %v2045 = vunpack.c.l.b16 %v637
        %v2046 = vunpack.c.h.b16 %v637
        %v2047 = vunpack.c.l.b16 %v638
        %v2048 = vunpack.c.h.b16 %v638
        %v2049 = vunpack.c.l.b16 %v639
        %v2050 = vunpack.c.h.b16 %v639
        %v2051 = vunpack.c.l.b16 %v640
        %v2052 = vunpack.c.h.b16 %v640
        %v2053 = vunpack.c.l.b16 %v641
        %v2054 = vunpack.c.h.b16 %v641
        %v2055 = vunpack.c.l.b16 %v642
        %v2056 = vunpack.c.h.b16 %v642
        %v2057 = vunpack.c.l.b16 %v643
        %v2058 = vunpack.c.h.b16 %v643
        %v2059 = vunpack.c.l.b16 %v644
        %v2060 = vunpack.c.h.b16 %v644
        %v2061 = vunpack.c.l.b16 %v645
        %v2062 = vunpack.c.h.b16 %v645
        %v2063 = vunpack.c.l.b16 %v646
        %v2064 = vunpack.c.h.b16 %v646
        %v2065 = vunpack.c.l.b16 %v647
        %v2066 = vunpack.c.h.b16 %v647
        %v2067 = vunpack.c.l.b16 %v648
        %v2068 = vunpack.c.h.b16 %v648
        %v2069 = vunpack.c.l.b16 %v649
        %v2070 = vunpack.c.h.b16 %v649
        %v2071 = vunpack.c.l.b16 %v650
        %v2072 = vunpack.c.h.b16 %v650
        %v2073 = vunpack.c.l.b16 %v651
        %v2074 = vunpack.c.h.b16 %v651
        %v2075 = vunpack.c.l.b16 %v652
        %v2076 = vunpack.c.h.b16 %v652
        %v2077 = vunpack.c.l.b16 %v653
        %v2078 = vunpack.c.h.b16 %v653
        %v2079 = vunpack.c.l.b16 %v654
        %v2080 = vunpack.c.h.b16 %v654
        %v2081 = vunpack.c.l.b16 %v655
        %v2082 = vunpack.c.h.b16 %v655
        %v2083 = vunpack.c.l.b16 %v656
        %v2084 = vunpack.c.h.b16 %v656
        %v2085 = vunpack.c.l.b16 %v657
        %v2086 = vunpack.c.h.b16 %v657
        %v2087 = vunpack.c.l.b16 %v658
        %v2088 = vunpack.c.h.b16 %v658
        %v2089 = vunpack.c.l.b16 %v659
        %v2090 = vunpack.c.h.b16 %v659
        %v2091 = vunpack.c.l.b16 %v660
        %v2092 = vunpack.c.h.b16 %v660
        %v2093 = vunpack.c.l.b16 %v661
        %v2094 = vunpack.c.h.b16 %v661
        %v2095 = vunpack.c.l.b16 %v662
        %v2096 = vunpack.c.h.b16 %v662
        %v2097 = vunpack.c.l.b16 %v663
        %v2098 = vunpack.c.h.b16 %v663
        %v2099 = vunpack.c.l.b16 %v664
        %v2100 = vunpack.c.h.b16 %v664
        %v2101 = vunpack.c.l.b16 %v665
        %v2102 = vunpack.c.h.b16 %v665
        %v2103 = vunpack.c.l.b16 %v666
        %v2104 = vunpack.c.h.b16 %v666
        %v2105 = vunpack.c.l.b16 %v667
        %v2106 = vunpack.c.h.b16 %v667
        %v2107 = vunpack.c.l.b16 %v668
        %v2108 = vunpack.c.h.b16 %v668
        %v2109 = vunpack.c.l.b16 %v669
        %v2110 = vunpack.c.h.b16 %v669
        %v2111 = vunpack.c.l.b16 %v670
        %v2112 = vunpack.c.h.b16 %v670
        %v2113 = vunpack.c.l.b16 %v671
        %v2114 = vunpack.c.h.b16 %v671
        %v2115 = vunpack.c.l.b16 %v672
        %v2116 = vunpack.c.h.b16 %v672
        %v2117 = vunpack.c.l.b16 %v673
        %v2118 = vunpack.c.h.b16 %v673
        %v2119 = vunpack.c.l.b16 %v674
        %v2120 = vunpack.c.h.b16 %v674
        %v2121 = vunpack.c.l.b16 %v675
        %v2122 = vunpack.c.h.b16 %v675
        %v2123 = vunpack.c.l.b16 %v676
        %v2124 = vunpack.c.h.b16 %v676
        %v2125 = vunpack.c.l.b16 %v677
        %v2126 = vunpack.c.h.b16 %v677
        %v2127 = vunpack.c.l.b16 %v678
        %v2128 = vunpack.c.h.b16 %v678
        %v2129 = vunpack.c.l.b16 %v679
        %v2130 = vunpack.c.h.b16 %v679
        %v2131 = vunpack.c.l.b16 %v680
        %v2132 = vunpack.c.h.b16 %v680
        %v2133 = vunpack.c.l.b16 %v681
        %v2134 = vunpack.c.h.b16 %v681
        %v2135 = vunpack.c.l.b16 %v682
        %v2136 = vunpack.c.h.b16 %v682
        %v2137 = vunpack.c.l.b16 %v683
        %v2138 = vunpack.c.h.b16 %v683
        %v2139 = vunpack.c.l.b16 %v684
        %v2140 = vunpack.c.h.b16 %v684
        %v2141 = vunpack.c.l.b16 %v685
        %v2142 = vunpack.c.h.b16 %v685
        %v2143 = vunpack.c.l.b16 %v686
        %v2144 = vunpack.c.h.b16 %v686
        %v2145 = vunpack.c.l.b16 %v687
        %v2146 = vunpack.c.h.b16 %v687
        %v2147 = vunpack.c.l.b16 %v688
        %v2148 = vunpack.c.h.b16 %v688
        %v2149 = vunpack.c.l.b16 %v689
        %v2150 = vunpack.c.h.b16 %v689
        %v2151 = vunpack.c.l.b16 %v690
        %v2152 = vunpack.c.h.b16 %v690
        %v2153 = vunpack.c.l.b16 %v691
        %v2154 = vunpack.c.h.b16 %v691
        %v2155 = vunpack.c.l.b16 %v692
        %v2156 = vunpack.c.h.b16 %v692
        %v2157 = vunpack.c.l.b16 %v693
        %v2158 = vunpack.c.h.b16 %v693
        %v2159 = vunpack.c.l.b16 %v694
        %v2160 = vunpack.c.h.b16 %v694
        %v2161 = vunpack.c.l.b16 %v695
        %v2162 = vunpack.c.h.b16 %v695
        %v2163 = vunpack.c.l.b16 %v696
        %v2164 = vunpack.c.h.b16 %v696
        %v2165 = vunpack.c.l.b16 %v697
        %v2166 = vunpack.c.h.b16 %v697
        %v2167 = vunpack.c.l.b16 %v698
        %v2168 = vunpack.c.h.b16 %v698
        %v2169 = vunpack.c.l.b16 %v699
        %v2170 = vunpack.c.h.b16 %v699
        %v2171 = vunpack.c.l.b16 %v700
        %v2172 = vunpack.c.h.b16 %v700
        %v2173 = vunpack.c.l.b16 %v701
        %v2174 = vunpack.c.h.b16 %v701
        %v2175 = vunpack.c.l.b16 %v702
        %v2176 = vunpack.c.h.b16 %v702
        %v2177 = vunpack.c.l.b16 %v703
        %v2178 = vunpack.c.h.b16 %v703
        %v2179 = vunpack.c.l.b16 %v704
        %v2180 = vunpack.c.h.b16 %v704
        %v2181 = vunpack.c.l.b16 %v705
        %v2182 = vunpack.c.h.b16 %v705
        %v2183 = vunpack.c.l.b16 %v706
        %v2184 = vunpack.c.h.b16 %v706
        %v2185 = vunpack.c.l.b16 %v707
        %v2186 = vunpack.c.h.b16 %v707
        %v2187 = vunpack.c.l.b16 %v708
        %v2188 = vunpack.c.h.b16 %v708
        %v2189 = vunpack.c.l.b16 %v709
        %v2190 = vunpack.c.h.b16 %v709
        %v2191 = vunpack.c.l.b16 %v710
        %v2192 = vunpack.c.h.b16 %v710
        %v2193 = vunpack.c.l.b16 %v711
        %v2194 = vunpack.c.h.b16 %v711
        %v2195 = vunpack.c.l.b16 %v712
        %v2196 = vunpack.c.h.b16 %v712
        %v2197 = vunpack.c.l.b16 %v713
        %v2198 = vunpack.c.h.b16 %v713
        %v2199 = vunpack.c.l.b16 %v714
        %v2200 = vunpack.c.h.b16 %v714
        %v2201 = vunpack.c.l.b16 %v715
        %v2202 = vunpack.c.h.b16 %v715
        %v2203 = vunpack.c.l.b16 %v716
        %v2204 = vunpack.c.h.b16 %v716
        %v2205 = vunpack.c.l.b16 %v717
        %v2206 = vunpack.c.h.b16 %v717
        %v2207 = vunpack.c.l.b16 %v718
        %v2208 = vunpack.c.h.b16 %v718
        %v2209 = vunpack.c.l.b16 %v719
        %v2210 = vunpack.c.h.b16 %v719
        %v2211 = vunpack.c.l.b16 %v720
        %v2212 = vunpack.c.h.b16 %v720
        %v2213 = vunpack.c.l.b16 %v721
        %v2214 = vunpack.c.h.b16 %v721
        %v2215 = vunpack.c.l.b16 %v722
        %v2216 = vunpack.c.h.b16 %v722
        %v2217 = vunpack.c.l.b16 %v723
        %v2218 = vunpack.c.h.b16 %v723
        %v2219 = vunpack.c.l.b16 %v724
        %v2220 = vunpack.c.h.b16 %v724
        %v2221 = vunpack.c.l.b16 %v725
        %v2222 = vunpack.c.h.b16 %v725
        %v2223 = vunpack.c.l.b16 %v726
        %v2224 = vunpack.c.h.b16 %v726
        %v2225 = vunpack.c.l.b16 %v727
        %v2226 = vunpack.c.h.b16 %v727
        %v2227 = vunpack.c.l.b16 %v728
        %v2228 = vunpack.c.h.b16 %v728
        %v2229 = vunpack.c.l.b16 %v729
        %v2230 = vunpack.c.h.b16 %v729
        %v2231 = vunpack.c.l.b16 %v730
        %v2232 = vunpack.c.h.b16 %v730
        %v2233 = vunpack.c.l.b16 %v731
        %v2234 = vunpack.c.h.b16 %v731
        %v2235 = vunpack.c.l.b16 %v732
        %v2236 = vunpack.c.h.b16 %v732
        %v2237 = vunpack.c.l.b16 %v733
        %v2238 = vunpack.c.h.b16 %v733
        %v2239 = vunpack.c.l.b16 %v734
        %v2240 = vunpack.c.h.b16 %v734
        %v2241 = vunpack.c.l.b16 %v735
        %v2242 = vunpack.c.h.b16 %v735
        %v2243 = vunpack.c.l.b16 %v736
        %v2244 = vunpack.c.h.b16 %v736
        %v2245 = vunpack.c.l.b16 %v737
        %v2246 = vunpack.c.h.b16 %v737
        %v2247 = vunpack.c.l.b16 %v738
        %v2248 = vunpack.c.h.b16 %v738
        %v2249 = vunpack.c.l.b16 %v739
        %v2250 = vunpack.c.h.b16 %v739
        %v2251 = vunpack.c.l.b16 %v740
        %v2252 = vunpack.c.h.b16 %v740
        %v2253 = vunpack.c.l.b16 %v741
        %v2254 = vunpack.c.h.b16 %v741
        %v2255 = vunpack.c.l.b16 %v742
        %v2256 = vunpack.c.h.b16 %v742
        %v2257 = vunpack.c.l.b16 %v743
        %v2258 = vunpack.c.h.b16 %v743
        %v2259 = vunpack.c.l.b16 %v744
        %v2260 = vunpack.c.h.b16 %v744
        %v2261 = vunpack.c.l.b16 %v745
        %v2262 = vunpack.c.h.b16 %v745
        %v2263 = vunpack.c.l.b16 %v746
        %v2264 = vunpack.c.h.b16 %v746
        %v2265 = vunpack.c.l.b16 %v747
        %v2266 = vunpack.c.h.b16 %v747
        %v2267 = vunpack.c.l.b16 %v748
        %v2268 = vunpack.c.h.b16 %v748
        %v2269 = vunpack.c.l.b16 %v749
        %v2270 = vunpack.c.h.b16 %v749
        %v2271 = vunpack.c.l.b16 %v750
        %v2272 = vunpack.c.h.b16 %v750
        %v2273 = vunpack.c.l.b16 %v751
        %v2274 = vunpack.c.h.b16 %v751
        %v2275 = vunpack.c.l.b16 %v752
        %v2276 = vunpack.c.h.b16 %v752
        %v2277 = vunpack.c.l.b16 %v753
        %v2278 = vunpack.c.h.b16 %v753
        %v2279 = vunpack.c.l.b16 %v754
        %v2280 = vunpack.c.h.b16 %v754
        %v2281 = vunpack.c.l.b16 %v755
        %v2282 = vunpack.c.h.b16 %v755
        %v2283 = vunpack.c.l.b16 %v756
        %v2284 = vunpack.c.h.b16 %v756
        %v2285 = vunpack.c.l.b16 %v757
        %v2286 = vunpack.c.h.b16 %v757
        %v2287 = vunpack.c.l.b16 %v758
        %v2288 = vunpack.c.h.b16 %v758
        %v2289 = vunpack.c.l.b16 %v759
        %v2290 = vunpack.c.h.b16 %v759
        %v2291 = vunpack.c.l.b16 %v760
        %v2292 = vunpack.c.h.b16 %v760
        %v2293 = vunpack.c.l.b16 %v761
        %v2294 = vunpack.c.h.b16 %v761
        %v2295 = vunpack.c.l.b16 %v762
        %v2296 = vunpack.c.h.b16 %v762
        %v2297 = vunpack.c.l.b16 %v763
        %v2298 = vunpack.c.h.b16 %v763
        %v2299 = vunpack.c.l.b16 %v764
        %v2300 = vunpack.c.h.b16 %v764
        %v2301 = vunpack.c.l.b16 %v765
        %v2302 = vunpack.c.h.b16 %v765
        %v2303 = vunpack.c.l.b16 %v766
        %v2304 = vunpack.c.h.b16 %v766
        %v2305 = vunpack.c.l.b16 %v767
        %v2306 = vunpack.c.h.b16 %v767
        %v2307 = vunpack.c.l.b16 %v768
        %v2308 = vunpack.c.h.b16 %v768
        %v2309 = vunpack.c.l.b16 %v769
        %v2310 = vunpack.c.h.b16 %v769
        %v2311 = vunpack.c.l.b16 %v770
        %v2312 = vunpack.c.h.b16 %v770
        %v2313 = vunpack.c.l.b16 %v771
        %v2314 = vunpack.c.h.b16 %v771
        %v2315 = vunpack.c.l.b16 %v772
        %v2316 = vunpack.c.h.b16 %v772
        %v2317 = vunpack.c.l.b16 %v773
        %v2318 = vunpack.c.h.b16 %v773
        %v2319 = vunpack.c.l.b16 %v774
        %v2320 = vunpack.c.h.b16 %v774
        %v2321 = vunpack.c.l.b16 %v775
        %v2322 = vunpack.c.h.b16 %v775
        %v2323 = vunpack.c.l.b16 %v776
        %v2324 = vunpack.c.h.b16 %v776
        %v2325 = vunpack.c.l.b16 %v777
        %v2326 = vunpack.c.h.b16 %v777
        %v2327 = vunpack.c.l.b16 %v778
        %v2328 = vunpack.c.h.b16 %v778
        %v2329 = vunpack.c.l.b16 %v779
        %v2330 = vunpack.c.h.b16 %v779
        %v2331 = vunpack.c.l.b16 %v780
        %v2332 = vunpack.c.h.b16 %v780
        %v2333 = vunpack.c.l.b16 %v781
        %v2334 = vunpack.c.h.b16 %v781
        %v2335 = vunpack.c.l.b16 %v782
        %v2336 = vunpack.c.h.b16 %v782
        %v2337 = vunpack.c.l.b16 %v783
        %v2338 = vunpack.c.h.b16 %v783
        %v2339 = vunpack.c.l.b16 %v784
        %v2340 = vunpack.c.h.b16 %v784
        %v2341 = vunpack.c.l.b16 %v785
        %v2342 = vunpack.c.h.b16 %v785
        %v2343 = vunpack.c.l.b16 %v786
        %v2344 = vunpack.c.h.b16 %v786
        %v2345 = vunpack.c.l.b16 %v787
        %v2346 = vunpack.c.h.b16 %v787
        %v2347 = vunpack.c.l.b16 %v788
        %v2348 = vunpack.c.h.b16 %v788
        %v2349 = vunpack.c.l.b16 %v789
        %v2350 = vunpack.c.h.b16 %v789
        %v2351 = vunpack.c.l.b16 %v790
        %v2352 = vunpack.c.h.b16 %v790
        %v2353 = vunpack.c.l.b16 %v791
        %v2354 = vunpack.c.h.b16 %v791
        %v2355 = vunpack.c.l.b16 %v792
        %v2356 = vunpack.c.h.b16 %v792
        %v2357 = vunpack.c.l.b16 %v793
        %v2358 = vunpack.c.h.b16 %v793
        %v2359 = vunpack.c.l.b16 %v794
        %v2360 = vunpack.c.h.b16 %v794
        %v2361 = vunpack.c.l.b16 %v795
        %v2362 = vunpack.c.h.b16 %v795
        %v2363 = vunpack.c.l.b16 %v796
        %v2364 = vunpack.c.h.b16 %v796
        %v2365 = vunpack.c.l.b16 %v797
        %v2366 = vunpack.c.h.b16 %v797
        %v2367 = vunpack.c.l.b16 %v798
        %v2368 = vunpack.c.h.b16 %v798
        %v2369 = vunpack.c.l.b16 %v799
        %v2370 = vunpack.c.h.b16 %v799
        %v2371 = vunpack.c.l.b16 %v800
        %v2372 = vunpack.c.h.b16 %v800
        %v2373 = vunpack.c.l.b16 %v801
        %v2374 = vunpack.c.h.b16 %v801
        %v2375 = vunpack.c.l.b16 %v802
        %v2376 = vunpack.c.h.b16 %v802
        %v2377 = vunpack.c.l.b16 %v803
        %v2378 = vunpack.c.h.b16 %v803
        %v2379 = vunpack.c.l.b16 %v804
        %v2380 = vunpack.c.h.b16 %v804
        %v2381 = vunpack.c.l.b16 %v805
        %v2382 = vunpack.c.h.b16 %v805
        %v2383 = vunpack.c.l.b16 %v806
        %v2384 = vunpack.c.h.b16 %v806
        %v2385 = vunpack.c.l.b16 %v807
        %v2386 = vunpack.c.h.b16 %v807
        %v2387 = vunpack.c.l.b16 %v808
        %v2388 = vunpack.c.h.b16 %v808
        %v2389 = vunpack.c.l.b16 %v809
        %v2390 = vunpack.c.h.b16 %v809
        %v2391 = vunpack.c.l.b16 %v810
        %v2392 = vunpack.c.h.b16 %v810
        %v2393 = vunpack.c.l.b16 %v811
        %v2394 = vunpack.c.h.b16 %v811
        %v2395 = vunpack.c.l.b16 %v812
        %v2396 = vunpack.c.h.b16 %v812
        %v2397 = vunpack.c.l.b16 %v813
        %v2398 = vunpack.c.h.b16 %v813
        %v2399 = vunpack.c.l.b16 %v814
        %v2400 = vunpack.c.h.b16 %v814
        %v2401 = vunpack.c.l.b16 %v815
        %v2402 = vunpack.c.h.b16 %v815
        %v2403 = vunpack.c.l.b16 %v816
        %v2404 = vunpack.c.h.b16 %v816
        %v2405 = vunpack.c.l.b16 %v817
        %v2406 = vunpack.c.h.b16 %v817
        %v2407 = vunpack.c.l.b16 %v818
        %v2408 = vunpack.c.h.b16 %v818
        %v2409 = vunpack.c.l.b16 %v819
        %v2410 = vunpack.c.h.b16 %v819
        %v2411 = vunpack.c.l.b16 %v820
        %v2412 = vunpack.c.h.b16 %v820
        %v2413 = vunpack.c.l.b16 %v821
        %v2414 = vunpack.c.h.b16 %v821
        %v2415 = vunpack.c.l.b16 %v822
        %v2416 = vunpack.c.h.b16 %v822
        %v2417 = vunpack.c.l.b16 %v823
        %v2418 = vunpack.c.h.b16 %v823
        %v2419 = vunpack.c.l.b16 %v824
        %v2420 = vunpack.c.h.b16 %v824
        %v2421 = vunpack.c.l.b16 %v825
        %v2422 = vunpack.c.h.b16 %v825
        %v2423 = vunpack.c.l.b16 %v826
        %v2424 = vunpack.c.h.b16 %v826
        %v2425 = vunpack.c.l.b16 %v827
        %v2426 = vunpack.c.h.b16 %v827
        %v2427 = vunpack.c.l.b16 %v828
        %v2428 = vunpack.c.h.b16 %v828
        %v2429 = vunpack.c.l.b16 %v829
        %v2430 = vunpack.c.h.b16 %v829
        %v2431 = vunpack.c.l.b16 %v830
        %v2432 = vunpack.c.h.b16 %v830
        %v2433 = vunpack.c.l.b16 %v831
        %v2434 = vunpack.c.h.b16 %v831
        %v2435 = vunpack.c.l.b16 %v832
        %v2436 = vunpack.c.h.b16 %v832
        %v2437 = vunpack.c.l.b16 %v833
        %v2438 = vunpack.c.h.b16 %v833
        %v2439 = vunpack.c.l.b16 %v834
        %v2440 = vunpack.c.h.b16 %v834
        %v2441 = vunpack.c.l.b16 %v835
        %v2442 = vunpack.c.h.b16 %v835
        %v2443 = vunpack.c.l.b16 %v836
        %v2444 = vunpack.c.h.b16 %v836
        %v2445 = vunpack.c.l.b16 %v837
        %v2446 = vunpack.c.h.b16 %v837
        %v2447 = vunpack.c.l.b16 %v838
        %v2448 = vunpack.c.h.b16 %v838
        %v2449 = vunpack.c.l.b16 %v839
        %v2450 = vunpack.c.h.b16 %v839
        %v2451 = vunpack.c.l.b16 %v840
        %v2452 = vunpack.c.h.b16 %v840
        %v2453 = vunpack.c.l.b16 %v841
        %v2454 = vunpack.c.h.b16 %v841
        %v2455 = vunpack.c.l.b16 %v842
        %v2456 = vunpack.c.h.b16 %v842
        %v2457 = vunpack.c.l.b16 %v843
        %v2458 = vunpack.c.h.b16 %v843
        %v2459 = vunpack.c.l.b16 %v844
        %v2460 = vunpack.c.h.b16 %v844
        %v2461 = vunpack.c.l.b16 %v845
        %v2462 = vunpack.c.h.b16 %v845
        %v2463 = vunpack.c.l.b16 %v846
        %v2464 = vunpack.c.h.b16 %v846
        %v2465 = vunpack.c.l.b16 %v847
        %v2466 = vunpack.c.h.b16 %v847
        %v2467 = vunpack.c.l.b16 %v848
        %v2468 = vunpack.c.h.b16 %v848
        %v2469 = vunpack.c.l.b16 %v849
        %v2470 = vunpack.c.h.b16 %v849
        %v2471 = vunpack.c.l.b16 %v850
        %v2472 = vunpack.c.h.b16 %v850
        %v2473 = vunpack.c.l.b16 %v851
        %v2474 = vunpack.c.h.b16 %v851
        %v2475 = vunpack.c.l.b16 %v852
        %v2476 = vunpack.c.h.b16 %v852
        %v2477 = vunpack.c.l.b16 %v853
        %v2478 = vunpack.c.h.b16 %v853
        %v2479 = vunpack.c.l.b16 %v854
        %v2480 = vunpack.c.h.b16 %v854
        %v2481 = vunpack.c.l.b16 %v855
        %v2482 = vunpack.c.h.b16 %v855
        %v2483 = vunpack.c.l.b16 %v856
        %v2484 = vunpack.c.h.b16 %v856
        %v2485 = vunpack.c.l.b16 %v857
        %v2486 = vunpack.c.h.b16 %v857
        %v2487 = vunpack.c.l.b16 %v858
        %v2488 = vunpack.c.h.b16 %v858
        %v2489 = vunpack.c.l.b16 %v859
        %v2490 = vunpack.c.h.b16 %v859
        %v2491 = vunpack.c.l.b16 %v860
        %v2492 = vunpack.c.h.b16 %v860
        %v2493 = vunpack.c.l.b16 %v861
        %v2494 = vunpack.c.h.b16 %v861
        %v2495 = vunpack.c.l.b16 %v862
        %v2496 = vunpack.c.h.b16 %v862
        %v2497 = vunpack.c.l.b16 %v863
        %v2498 = vunpack.c.h.b16 %v863
        %v2499 = vunpack.c.l.b16 %v864
        %v2500 = vunpack.c.h.b16 %v864
        %v2501 = vunpack.c.l.b16 %v865
        %v2502 = vunpack.c.h.b16 %v865
        %v2503 = vunpack.c.l.b16 %v866
        %v2504 = vunpack.c.h.b16 %v866
        %v2505 = vunpack.c.l.b16 %v867
        %v2506 = vunpack.c.h.b16 %v867
        %v2507 = vunpack.c.l.b16 %v868
        %v2508 = vunpack.c.h.b16 %v868
        %v2509 = vunpack.c.l.b16 %v869
        %v2510 = vunpack.c.h.b16 %v869
        %v2511 = vunpack.c.l.b16 %v870
        %v2512 = vunpack.c.h.b16 %v870
        %v2513 = vunpack.c.l.b16 %v871
        %v2514 = vunpack.c.h.b16 %v871
        %v2515 = vunpack.c.l.b16 %v872
        %v2516 = vunpack.c.h.b16 %v872
        %v2517 = vunpack.c.l.b16 %v873
        %v2518 = vunpack.c.h.b16 %v873
        %v2519 = vunpack.c.l.b16 %v874
        %v2520 = vunpack.c.h.b16 %v874
        %v2521 = vunpack.c.l.b16 %v875
        %v2522 = vunpack.c.h.b16 %v875
        %v2523 = vunpack.c.l.b16 %v876
        %v2524 = vunpack.c.h.b16 %v876
        %v2525 = vunpack.c.l.b16 %v877
        %v2526 = vunpack.c.h.b16 %v877
        %v2527 = vunpack.c.l.b16 %v878
        %v2528 = vunpack.c.h.b16 %v878
        %v2529 = vunpack.c.l.b16 %v879
        %v2530 = vunpack.c.h.b16 %v879
        %v2531 = vunpack.c.l.b16 %v880
        %v2532 = vunpack.c.h.b16 %v880
        %v2533 = vunpack.c.l.b16 %v881
        %v2534 = vunpack.c.h.b16 %v881
        %v2535 = vunpack.c.l.b16 %v882
        %v2536 = vunpack.c.h.b16 %v882
        %v2537 = vunpack.c.l.b16 %v883
        %v2538 = vunpack.c.h.b16 %v883
        %v2539 = vunpack.c.l.b16 %v884
        %v2540 = vunpack.c.h.b16 %v884
        %v2541 = vunpack.c.l.b16 %v885
        %v2542 = vunpack.c.h.b16 %v885
        %v2543 = vunpack.c.l.b16 %v886
        %v2544 = vunpack.c.h.b16 %v886
        %v2545 = vunpack.c.l.b16 %v887
        %v2546 = vunpack.c.h.b16 %v887
        %v2547 = vunpack.c.l.b16 %v888
        %v2548 = vunpack.c.h.b16 %v888
        %v2549 = vunpack.c.l.b16 %v889
        %v2550 = vunpack.c.h.b16 %v889
        %v2551 = vunpack.c.l.b16 %v890
        %v2552 = vunpack.c.h.b16 %v890
        %v2553 = vunpack.c.l.b16 %v891
        %v2554 = vunpack.c.h.b16 %v891
        %v2555 = vunpack.c.l.b16 %v892
        %v2556 = vunpack.c.h.b16 %v892
        %v2557 = vunpack.c.l.b16 %v893
        %v2558 = vunpack.c.h.b16 %v893
        %v2559 = vunpack.c.l.b16 %v894
        %v2560 = vunpack.c.h.b16 %v894
        %v2561 = vunpack.c.l.b16 %v895
        %v2562 = vunpack.c.h.b16 %v895
        %v2563 = vunpack.c.l.b16 %v896
        %v2564 = vunpack.c.h.b16 %v896
        %v2565 = vunpack.c.l.b16 %v897
        %v2566 = vunpack.c.h.b16 %v897
        %v2567 = vunpack.c.l.b16 %v898
        %v2568 = vunpack.c.h.b16 %v898
        %v2569 = vunpack.c.l.b16 %v899
        %v2570 = vunpack.c.h.b16 %v899
        %v2571 = vunpack.c.l.b16 %v900
        %v2572 = vunpack.c.h.b16 %v900
        %v2573 = vunpack.c.l.b16 %v901
        %v2574 = vunpack.c.h.b16 %v901
        %v2575 = vunpack.c.l.b16 %v902
        %v2576 = vunpack.c.h.b16 %v902
        %v2577 = vunpack.c.l.b16 %v903
        %v2578 = vunpack.c.h.b16 %v903
        %v2579 = vunpack.c.l.b16 %v904
        %v2580 = vunpack.c.h.b16 %v904
        %v2581 = vunpack.c.l.b16 %v905
        %v2582 = vunpack.c.h.b16 %v905
        %v2583 = vunpack.c.l.b16 %v906
        %v2584 = vunpack.c.h.b16 %v906
        %v2585 = vunpack.c.l.b16 %v907
        %v2586 = vunpack.c.h.b16 %v907
        %v2587 = vunpack.c.l.b16 %v908
        %v2588 = vunpack.c.h.b16 %v908
        %v2589 = vunpack.c.l.b16 %v909
        %v2590 = vunpack.c.h.b16 %v909
        %v2591 = vunpack.c.l.b16 %v910
        %v2592 = vunpack.c.h.b16 %v910
        %v2593 = vunpack.c.l.b16 %v911
        %v2594 = vunpack.c.h.b16 %v911
        %v2595 = vunpack.c.l.b16 %v912
        %v2596 = vunpack.c.h.b16 %v912
        %v2597 = vpack.c.b16 %v1581, %v1573
        %v2598 = vpack.c.b16 %v1582, %v1574
        %v2599 = vpack.c.b16 %v1583, %v1575
        %v2600 = vpack.c.b16 %v1584, %v1576
        %v2601 = vpack.c.b16 %v1585, %v1577
        %v2602 = vpack.c.b16 %v1586, %v1578
        %v2603 = vpack.c.b16 %v1587, %v1579
        %v2604 = vpack.c.b16 %v1588, %v1580
        %v2605 = vpack.c.b16 %v1597, %v1589
        %v2606 = vpack.c.b16 %v1598, %v1590
        %v2607 = vpack.c.b16 %v1599, %v1591
        %v2608 = vpack.c.b16 %v1600, %v1592
        %v2609 = vpack.c.b16 %v1601, %v1593
        %v2610 = vpack.c.b16 %v1602, %v1594
        %v2611 = vpack.c.b16 %v1603, %v1595
        %v2612 = vpack.c.b16 %v1604, %v1596
        %v2613 = vpack.c.b16 %v1613, %v1605
        %v2614 = vpack.c.b16 %v1614, %v1606
        %v2615 = vpack.c.b16 %v1615, %v1607
        %v2616 = vpack.c.b16 %v1616, %v1608
        %v2617 = vpack.c.b16 %v1617, %v1609
        %v2618 = vpack.c.b16 %v1618, %v1610
        %v2619 = vpack.c.b16 %v1619, %v1611
        %v2620 = vpack.c.b16 %v1620, %v1612
        %v2621 = vpack.c.b16 %v1629, %v1621
        %v2622 = vpack.c.b16 %v1630, %v1622
        %v2623 = vpack.c.b16 %v1631, %v1623
        %v2624 = vpack.c.b16 %v1632, %v1624
        %v2625 = vpack.c.b16 %v1633, %v1625
        %v2626 = vpack.c.b16 %v1634, %v1626
        %v2627 = vpack.c.b16 %v1635, %v1627
        %v2628 = vpack.c.b16 %v1636, %v1628
        %v2629 = vpack.c.b16 %v1645, %v1637
        %v2630 = vpack.c.b16 %v1646, %v1638
        %v2631 = vpack.c.b16 %v1647, %v1639
        %v2632 = vpack.c.b16 %v1648, %v1640
        %v2633 = vpack.c.b16 %v1649, %v1641
        %v2634 = vpack.c.b16 %v1650, %v1642
        %v2635 = vpack.c.b16 %v1651, %v1643
        %v2636 = vpack.c.b16 %v1652, %v1644
        %v2637 = vpack.c.b16 %v1661, %v1653
        %v2638 = vpack.c.b16 %v1662, %v1654
        %v2639 = vpack.c.b16 %v1663, %v1655
        %v2640 = vpack.c.b16 %v1664, %v1656
        %v2641 = vpack.c.b16 %v1665, %v1657
        %v2642 = vpack.c.b16 %v1666, %v1658
        %v2643 = vpack.c.b16 %v1667, %v1659
        %v2644 = vpack.c.b16 %v1668, %v1660
        %v2645 = vpack.c.b16 %v1677, %v1669
        %v2646 = vpack.c.b16 %v1678, %v1670
        %v2647 = vpack.c.b16 %v1679, %v1671
        %v2648 = vpack.c.b16 %v1680, %v1672
        %v2649 = vpack.c.b16 %v1681, %v1673
        %v2650 = vpack.c.b16 %v1682, %v1674
        %v2651 = vpack.c.b16 %v1683, %v1675
        %v2652 = vpack.c.b16 %v1684, %v1676
        %v2653 = vpack.c.b16 %v1693, %v1685
        %v2654 = vpack.c.b16 %v1694, %v1686
        %v2655 = vpack.c.b16 %v1695, %v1687
        %v2656 = vpack.c.b16 %v1696, %v1688
        %v2657 = vpack.c.b16 %v1697, %v1689
        %v2658 = vpack.c.b16 %v1698, %v1690
        %v2659 = vpack.c.b16 %v1699, %v1691
        %v2660 = vpack.c.b16 %v1700, %v1692
        %v2661 = vpack.c.b16 %v1709, %v1701
        %v2662 = vpack.c.b16 %v1710, %v1702
        %v2663 = vpack.c.b16 %v1711, %v1703
        %v2664 = vpack.c.b16 %v1712, %v1704
        %v2665 = vpack.c.b16 %v1713, %v1705
        %v2666 = vpack.c.b16 %v1714, %v1706
        %v2667 = vpack.c.b16 %v1715, %v1707
        %v2668 = vpack.c.b16 %v1716, %v1708
        %v2669 = vpack.c.b16 %v1725, %v1717
        %v2670 = vpack.c.b16 %v1726, %v1718
        %v2671 = vpack.c.b16 %v1727, %v1719
        %v2672 = vpack.c.b16 %v1728, %v1720
        %v2673 = vpack.c.b16 %v1729, %v1721
        %v2674 = vpack.c.b16 %v1730, %v1722
        %v2675 = vpack.c.b16 %v1731, %v1723
        %v2676 = vpack.c.b16 %v1732, %v1724
        %v2677 = vpack.c.b16 %v1741, %v1733
        %v2678 = vpack.c.b16 %v1742, %v1734
        %v2679 = vpack.c.b16 %v1743, %v1735
        %v2680 = vpack.c.b16 %v1744, %v1736
        %v2681 = vpack.c.b16 %v1745, %v1737
        %v2682 = vpack.c.b16 %v1746, %v1738
        %v2683 = vpack.c.b16 %v1747, %v1739
        %v2684 = vpack.c.b16 %v1748, %v1740
        %v2685 = vpack.c.b16 %v1757, %v1749
        %v2686 = vpack.c.b16 %v1758, %v1750
        %v2687 = vpack.c.b16 %v1759, %v1751
        %v2688 = vpack.c.b16 %v1760, %v1752
        %v2689 = vpack.c.b16 %v1761, %v1753
        %v2690 = vpack.c.b16 %v1762, %v1754
        %v2691 = vpack.c.b16 %v1763, %v1755
        %v2692 = vpack.c.b16 %v1764, %v1756
        %v2693 = vpack.c.b16 %v1773, %v1765
        %v2694 = vpack.c.b16 %v1774, %v1766
        %v2695 = vpack.c.b16 %v1775, %v1767
        %v2696 = vpack.c.b16 %v1776, %v1768
        %v2697 = vpack.c.b16 %v1777, %v1769
        %v2698 = vpack.c.b16 %v1778, %v1770
        %v2699 = vpack.c.b16 %v1779, %v1771
        %v2700 = vpack.c.b16 %v1780, %v1772
        %v2701 = vpack.c.b16 %v1789, %v1781
        %v2702 = vpack.c.b16 %v1790, %v1782
        %v2703 = vpack.c.b16 %v1791, %v1783
        %v2704 = vpack.c.b16 %v1792, %v1784
        %v2705 = vpack.c.b16 %v1793, %v1785
        %v2706 = vpack.c.b16 %v1794, %v1786
        %v2707 = vpack.c.b16 %v1795, %v1787
        %v2708 = vpack.c.b16 %v1796, %v1788
        %v2709 = vpack.c.b16 %v1805, %v1797
        %v2710 = vpack.c.b16 %v1806, %v1798
        %v2711 = vpack.c.b16 %v1807, %v1799
        %v2712 = vpack.c.b16 %v1808, %v1800
        %v2713 = vpack.c.b16 %v1809, %v1801
        %v2714 = vpack.c.b16 %v1810, %v1802
        %v2715 = vpack.c.b16 %v1811, %v1803
        %v2716 = vpack.c.b16 %v1812, %v1804
        %v2717 = vpack.c.b16 %v1821, %v1813
        %v2718 = vpack.c.b16 %v1822, %v1814
        %v2719 = vpack.c.b16 %v1823, %v1815
        %v2720 = vpack.c.b16 %v1824, %v1816
        %v2721 = vpack.c.b16 %v1825, %v1817
        %v2722 = vpack.c.b16 %v1826, %v1818
        %v2723 = vpack.c.b16 %v1827, %v1819
        %v2724 = vpack.c.b16 %v1828, %v1820
        %v2725 = vpack.c.b16 %v1837, %v1829
        %v2726 = vpack.c.b16 %v1838, %v1830
        %v2727 = vpack.c.b16 %v1839, %v1831
        %v2728 = vpack.c.b16 %v1840, %v1832
        %v2729 = vpack.c.b16 %v1841, %v1833
        %v2730 = vpack.c.b16 %v1842, %v1834
        %v2731 = vpack.c.b16 %v1843, %v1835
        %v2732 = vpack.c.b16 %v1844, %v1836
        %v2733 = vpack.c.b16 %v1853, %v1845
        %v2734 = vpack.c.b16 %v1854, %v1846
        %v2735 = vpack.c.b16 %v1855, %v1847
        %v2736 = vpack.c.b16 %v1856, %v1848
        %v2737 = vpack.c.b16 %v1857, %v1849
        %v2738 = vpack.c.b16 %v1858, %v1850
        %v2739 = vpack.c.b16 %v1859, %v1851
        %v2740 = vpack.c.b16 %v1860, %v1852
        %v2741 = vpack.c.b16 %v1869, %v1861
        %v2742 = vpack.c.b16 %v1870, %v1862
        %v2743 = vpack.c.b16 %v1871, %v1863
        %v2744 = vpack.c.b16 %v1872, %v1864
        %v2745 = vpack.c.b16 %v1873, %v1865
        %v2746 = vpack.c.b16 %v1874, %v1866
        %v2747 = vpack.c.b16 %v1875, %v1867
        %v2748 = vpack.c.b16 %v1876, %v1868
        %v2749 = vpack.c.b16 %v1885, %v1877
        %v2750 = vpack.c.b16 %v1886, %v1878
        %v2751 = vpack.c.b16 %v1887, %v1879
        %v2752 = vpack.c.b16 %v1888, %v1880
        %v2753 = vpack.c.b16 %v1889, %v1881
        %v2754 = vpack.c.b16 %v1890, %v1882
        %v2755 = vpack.c.b16 %v1891, %v1883
        %v2756 = vpack.c.b16 %v1892, %v1884
        %v2757 = vpack.c.b16 %v1901, %v1893
        %v2758 = vpack.c.b16 %v1902, %v1894
        %v2759 = vpack.c.b16 %v1903, %v1895
        %v2760 = vpack.c.b16 %v1904, %v1896
        %v2761 = vpack.c.b16 %v1905, %v1897
        %v2762 = vpack.c.b16 %v1906, %v1898
        %v2763 = vpack.c.b16 %v1907, %v1899
        %v2764 = vpack.c.b16 %v1908, %v1900
        %v2765 = vpack.c.b16 %v1917, %v1909
        %v2766 = vpack.c.b16 %v1918, %v1910
        %v2767 = vpack.c.b16 %v1919, %v1911
        %v2768 = vpack.c.b16 %v1920, %v1912
        %v2769 = vpack.c.b16 %v1921, %v1913
        %v2770 = vpack.c.b16 %v1922, %v1914
        %v2771 = vpack.c.b16 %v1923, %v1915
        %v2772 = vpack.c.b16 %v1924, %v1916
        %v2773 = vpack.c.b16 %v1933, %v1925
        %v2774 = vpack.c.b16 %v1934, %v1926
        %v2775 = vpack.c.b16 %v1935, %v1927
        %v2776 = vpack.c.b16 %v1936, %v1928
        %v2777 = vpack.c.b16 %v1937, %v1929
        %v2778 = vpack.c.b16 %v1938, %v1930
        %v2779 = vpack.c.b16 %v1939, %v1931
        %v2780 = vpack.c.b16 %v1940, %v1932
        %v2781 = vpack.c.b16 %v1949, %v1941
        %v2782 = vpack.c.b16 %v1950, %v1942
        %v2783 = vpack.c.b16 %v1951, %v1943
        %v2784 = vpack.c.b16 %v1952, %v1944
        %v2785 = vpack.c.b16 %v1953, %v1945
        %v2786 = vpack.c.b16 %v1954, %v1946
        %v2787 = vpack.c.b16 %v1955, %v1947
        %v2788 = vpack.c.b16 %v1956, %v1948
        %v2789 = vpack.c.b16 %v1965, %v1957
        %v2790 = vpack.c.b16 %v1966, %v1958
        %v2791 = vpack.c.b16 %v1967, %v1959
        %v2792 = vpack.c.b16 %v1968, %v1960
        %v2793 = vpack.c.b16 %v1969, %v1961
        %v2794 = vpack.c.b16 %v1970, %v1962
        %v2795 = vpack.c.b16 %v1971, %v1963
        %v2796 = vpack.c.b16 %v1972, %v1964
        %v2797 = vpack.c.b16 %v1981, %v1973
        %v2798 = vpack.c.b16 %v1982, %v1974
        %v2799 = vpack.c.b16 %v1983, %v1975
        %v2800 = vpack.c.b16 %v1984, %v1976
        %v2801 = vpack.c.b16 %v1985, %v1977
        %v2802 = vpack.c.b16 %v1986, %v1978
        %v2803 = vpack.c.b16 %v1987, %v1979
        %v2804 = vpack.c.b16 %v1988, %v1980
        %v2805 = vpack.c.b16 %v1997, %v1989
        %v2806 = vpack.c.b16 %v1998, %v1990
        %v2807 = vpack.c.b16 %v1999, %v1991
        %v2808 = vpack.c.b16 %v2000, %v1992
        %v2809 = vpack.c.b16 %v2001, %v1993
        %v2810 = vpack.c.b16 %v2002, %v1994
        %v2811 = vpack.c.b16 %v2003, %v1995
        %v2812 = vpack.c.b16 %v2004, %v1996
        %v2813 = vpack.c.b16 %v2013, %v2005
        %v2814 = vpack.c.b16 %v2014, %v2006
        %v2815 = vpack.c.b16 %v2015, %v2007
        %v2816 = vpack.c.b16 %v2016, %v2008
        %v2817 = vpack.c.b16 %v2017, %v2009
        %v2818 = vpack.c.b16 %v2018, %v2010
        %v2819 = vpack.c.b16 %v2019, %v2011
        %v2820 = vpack.c.b16 %v2020, %v2012
        %v2821 = vpack.c.b16 %v2029, %v2021
        %v2822 = vpack.c.b16 %v2030, %v2022
        %v2823 = vpack.c.b16 %v2031, %v2023
        %v2824 = vpack.c.b16 %v2032, %v2024
        %v2825 = vpack.c.b16 %v2033, %v2025
        %v2826 = vpack.c.b16 %v2034, %v2026
        %v2827 = vpack.c.b16 %v2035, %v2027
        %v2828 = vpack.c.b16 %v2036, %v2028
        %v2829 = vpack.c.b16 %v2045, %v2037
        %v2830 = vpack.c.b16 %v2046, %v2038
        %v2831 = vpack.c.b16 %v2047, %v2039
        %v2832 = vpack.c.b16 %v2048, %v2040
        %v2833 = vpack.c.b16 %v2049, %v2041
        %v2834 = vpack.c.b16 %v2050, %v2042
        %v2835 = vpack.c.b16 %v2051, %v2043
        %v2836 = vpack.c.b16 %v2052, %v2044
        %v2837 = vpack.c.b16 %v2061, %v2053
        %v2838 = vpack.c.b16 %v2062, %v2054
        %v2839 = vpack.c.b16 %v2063, %v2055
        %v2840 = vpack.c.b16 %v2064, %v2056
        %v2841 = vpack.c.b16 %v2065, %v2057
        %v2842 = vpack.c.b16 %v2066, %v2058
        %v2843 = vpack.c.b16 %v2067, %v2059
        %v2844 = vpack.c.b16 %v2068, %v2060
        %v2845 = vpack.c.b16 %v2077, %v2069
        %v2846 = vpack.c.b16 %v2078, %v2070
        %v2847 = vpack.c.b16 %v2079, %v2071
        %v2848 = vpack.c.b16 %v2080, %v2072
        %v2849 = vpack.c.b16 %v2081, %v2073
        %v2850 = vpack.c.b16 %v2082, %v2074
        %v2851 = vpack.c.b16 %v2083, %v2075
        %v2852 = vpack.c.b16 %v2084, %v2076
        %v2853 = vpack.c.b16 %v2093, %v2085
        %v2854 = vpack.c.b16 %v2094, %v2086
        %v2855 = vpack.c.b16 %v2095, %v2087
        %v2856 = vpack.c.b16 %v2096, %v2088
        %v2857 = vpack.c.b16 %v2097, %v2089
        %v2858 = vpack.c.b16 %v2098, %v2090
        %v2859 = vpack.c.b16 %v2099, %v2091
        %v2860 = vpack.c.b16 %v2100, %v2092
        %v2861 = vpack.c.b16 %v2109, %v2101
        %v2862 = vpack.c.b16 %v2110, %v2102
        %v2863 = vpack.c.b16 %v2111, %v2103
        %v2864 = vpack.c.b16 %v2112, %v2104
        %v2865 = vpack.c.b16 %v2113, %v2105
        %v2866 = vpack.c.b16 %v2114, %v2106
        %v2867 = vpack.c.b16 %v2115, %v2107
        %v2868 = vpack.c.b16 %v2116, %v2108
        %v2869 = vpack.c.b16 %v2125, %v2117
        %v2870 = vpack.c.b16 %v2126, %v2118
        %v2871 = vpack.c.b16 %v2127, %v2119
        %v2872 = vpack.c.b16 %v2128, %v2120
        %v2873 = vpack.c.b16 %v2129, %v2121
        %v2874 = vpack.c.b16 %v2130, %v2122
        %v2875 = vpack.c.b16 %v2131, %v2123
        %v2876 = vpack.c.b16 %v2132, %v2124
        %v2877 = vpack.c.b16 %v2141, %v2133
        %v2878 = vpack.c.b16 %v2142, %v2134
        %v2879 = vpack.c.b16 %v2143, %v2135
        %v2880 = vpack.c.b16 %v2144, %v2136
        %v2881 = vpack.c.b16 %v2145, %v2137
        %v2882 = vpack.c.b16 %v2146, %v2138
        %v2883 = vpack.c.b16 %v2147, %v2139
        %v2884 = vpack.c.b16 %v2148, %v2140
        %v2885 = vpack.c.b16 %v2157, %v2149
        %v2886 = vpack.c.b16 %v2158, %v2150
        %v2887 = vpack.c.b16 %v2159, %v2151
        %v2888 = vpack.c.b16 %v2160, %v2152
        %v2889 = vpack.c.b16 %v2161, %v2153
        %v2890 = vpack.c.b16 %v2162, %v2154
        %v2891 = vpack.c.b16 %v2163, %v2155
        %v2892 = vpack.c.b16 %v2164, %v2156
        %v2893 = vpack.c.b16 %v2173, %v2165
        %v2894 = vpack.c.b16 %v2174, %v2166
        %v2895 = vpack.c.b16 %v2175, %v2167
        %v2896 = vpack.c.b16 %v2176, %v2168
        %v2897 = vpack.c.b16 %v2177, %v2169
        %v2898 = vpack.c.b16 %v2178, %v2170
        %v2899 = vpack.c.b16 %v2179, %v2171
        %v2900 = vpack.c.b16 %v2180, %v2172
        %v2901 = vpack.c.b16 %v2189, %v2181
        %v2902 = vpack.c.b16 %v2190, %v2182
        %v2903 = vpack.c.b16 %v2191, %v2183
        %v2904 = vpack.c.b16 %v2192, %v2184
        %v2905 = vpack.c.b16 %v2193, %v2185
        %v2906 = vpack.c.b16 %v2194, %v2186
        %v2907 = vpack.c.b16 %v2195, %v2187
        %v2908 = vpack.c.b16 %v2196, %v2188
        %v2909 = vpack.c.b16 %v2205, %v2197
        %v2910 = vpack.c.b16 %v2206, %v2198
        %v2911 = vpack.c.b16 %v2207, %v2199
        %v2912 = vpack.c.b16 %v2208, %v2200
        %v2913 = vpack.c.b16 %v2209, %v2201
        %v2914 = vpack.c.b16 %v2210, %v2202
        %v2915 = vpack.c.b16 %v2211, %v2203
        %v2916 = vpack.c.b16 %v2212, %v2204
        %v2917 = vpack.c.b16 %v2221, %v2213
        %v2918 = vpack.c.b16 %v2222, %v2214
        %v2919 = vpack.c.b16 %v2223, %v2215
        %v2920 = vpack.c.b16 %v2224, %v2216
        %v2921 = vpack.c.b16 %v2225, %v2217
        %v2922 = vpack.c.b16 %v2226, %v2218
        %v2923 = vpack.c.b16 %v2227, %v2219
        %v2924 = vpack.c.b16 %v2228, %v2220
        %v2925 = vpack.c.b16 %v2237, %v2229
        %v2926 = vpack.c.b16 %v2238, %v2230
        %v2927 = vpack.c.b16 %v2239, %v2231
        %v2928 = vpack.c.b16 %v2240, %v2232
        %v2929 = vpack.c.b16 %v2241, %v2233
        %v2930 = vpack.c.b16 %v2242, %v2234
        %v2931 = vpack.c.b16 %v2243, %v2235
        %v2932 = vpack.c.b16 %v2244, %v2236
        %v2933 = vpack.c.b16 %v2253, %v2245
        %v2934 = vpack.c.b16 %v2254, %v2246
        %v2935 = vpack.c.b16 %v2255, %v2247
        %v2936 = vpack.c.b16 %v2256, %v2248
        %v2937 = vpack.c.b16 %v2257, %v2249
        %v2938 = vpack.c.b16 %v2258, %v2250
        %v2939 = vpack.c.b16 %v2259, %v2251
        %v2940 = vpack.c.b16 %v2260, %v2252
        %v2941 = vpack.c.b16 %v2269, %v2261
        %v2942 = vpack.c.b16 %v2270, %v2262
        %v2943 = vpack.c.b16 %v2271, %v2263
        %v2944 = vpack.c.b16 %v2272, %v2264
        %v2945 = vpack.c.b16 %v2273, %v2265
        %v2946 = vpack.c.b16 %v2274, %v2266
        %v2947 = vpack.c.b16 %v2275, %v2267
        %v2948 = vpack.c.b16 %v2276, %v2268
        %v2949 = vpack.c.b16 %v2285, %v2277
        %v2950 = vpack.c.b16 %v2286, %v2278
        %v2951 = vpack.c.b16 %v2287, %v2279
        %v2952 = vpack.c.b16 %v2288, %v2280
        %v2953 = vpack.c.b16 %v2289, %v2281
        %v2954 = vpack.c.b16 %v2290, %v2282
        %v2955 = vpack.c.b16 %v2291, %v2283
        %v2956 = vpack.c.b16 %v2292, %v2284
        %v2957 = vpack.c.b16 %v2301, %v2293
        %v2958 = vpack.c.b16 %v2302, %v2294
        %v2959 = vpack.c.b16 %v2303, %v2295
        %v2960 = vpack.c.b16 %v2304, %v2296
        %v2961 = vpack.c.b16 %v2305, %v2297
        %v2962 = vpack.c.b16 %v2306, %v2298
        %v2963 = vpack.c.b16 %v2307, %v2299
        %v2964 = vpack.c.b16 %v2308, %v2300
        %v2965 = vpack.c.b16 %v2317, %v2309
        %v2966 = vpack.c.b16 %v2318, %v2310
        %v2967 = vpack.c.b16 %v2319, %v2311
        %v2968 = vpack.c.b16 %v2320, %v2312
        %v2969 = vpack.c.b16 %v2321, %v2313
        %v2970 = vpack.c.b16 %v2322, %v2314
        %v2971 = vpack.c.b16 %v2323, %v2315
        %v2972 = vpack.c.b16 %v2324, %v2316
        %v2973 = vpack.c.b16 %v2333, %v2325
        %v2974 = vpack.c.b16 %v2334, %v2326
        %v2975 = vpack.c.b16 %v2335, %v2327
        %v2976 = vpack.c.b16 %v2336, %v2328
        %v2977 = vpack.c.b16 %v2337, %v2329
        %v2978 = vpack.c.b16 %v2338, %v2330
        %v2979 = vpack.c.b16 %v2339, %v2331
        %v2980 = vpack.c.b16 %v2340, %v2332
        %v2981 = vpack.c.b16 %v2349, %v2341
        %v2982 = vpack.c.b16 %v2350, %v2342
        %v2983 = vpack.c.b16 %v2351, %v2343
        %v2984 = vpack.c.b16 %v2352, %v2344
        %v2985 = vpack.c.b16 %v2353, %v2345
        %v2986 = vpack.c.b16 %v2354, %v2346
        %v2987 = vpack.c.b16 %v2355, %v2347
        %v2988 = vpack.c.b16 %v2356, %v2348
        %v2989 = vpack.c.b16 %v2365, %v2357
        %v2990 = vpack.c.b16 %v2366, %v2358
        %v2991 = vpack.c.b16 %v2367, %v2359
        %v2992 = vpack.c.b16 %v2368, %v2360
        %v2993 = vpack.c.b16 %v2369, %v2361
        %v2994 = vpack.c.b16 %v2370, %v2362
        %v2995 = vpack.c.b16 %v2371, %v2363
        %v2996 = vpack.c.b16 %v2372, %v2364
        %v2997 = vpack.c.b16 %v2381, %v2373
        %v2998 = vpack.c.b16 %v2382, %v2374
        %v2999 = vpack.c.b16 %v2383, %v2375
        %v3000 = vpack.c.b16 %v2384, %v2376
        %v3001 = vpack.c.b16 %v2385, %v2377
        %v3002 = vpack.c.b16 %v2386, %v2378
        %v3003 = vpack.c.b16 %v2387, %v2379
        %v3004 = vpack.c.b16 %v2388, %v2380
        %v3005 = vpack.c.b16 %v2397, %v2389
        %v3006 = vpack.c.b16 %v2398, %v2390
        %v3007 = vpack.c.b16 %v2399, %v2391
        %v3008 = vpack.c.b16 %v2400, %v2392
        %v3009 = vpack.c.b16 %v2401, %v2393
        %v3010 = vpack.c.b16 %v2402, %v2394
        %v3011 = vpack.c.b16 %v2403, %v2395
        %v3012 = vpack.c.b16 %v2404, %v2396
        %v3013 = vpack.c.b16 %v2413, %v2405
        %v3014 = vpack.c.b16 %v2414, %v2406
        %v3015 = vpack.c.b16 %v2415, %v2407
        %v3016 = vpack.c.b16 %v2416, %v2408
        %v3017 = vpack.c.b16 %v2417, %v2409
        %v3018 = vpack.c.b16 %v2418, %v2410
        %v3019 = vpack.c.b16 %v2419, %v2411
        %v3020 = vpack.c.b16 %v2420, %v2412
        %v3021 = vpack.c.b16 %v2429, %v2421
        %v3022 = vpack.c.b16 %v2430, %v2422
        %v3023 = vpack.c.b16 %v2431, %v2423
        %v3024 = vpack.c.b16 %v2432, %v2424
        %v3025 = vpack.c.b16 %v2433, %v2425
        %v3026 = vpack.c.b16 %v2434, %v2426
        %v3027 = vpack.c.b16 %v2435, %v2427
        %v3028 = vpack.c.b16 %v2436, %v2428
        %v3029 = vpack.c.b16 %v2445, %v2437
        %v3030 = vpack.c.b16 %v2446, %v2438
        %v3031 = vpack.c.b16 %v2447, %v2439
        %v3032 = vpack.c.b16 %v2448, %v2440
        %v3033 = vpack.c.b16 %v2449, %v2441
        %v3034 = vpack.c.b16 %v2450, %v2442
        %v3035 = vpack.c.b16 %v2451, %v2443
        %v3036 = vpack.c.b16 %v2452, %v2444
        %v3037 = vpack.c.b16 %v2461, %v2453
        %v3038 = vpack.c.b16 %v2462, %v2454
        %v3039 = vpack.c.b16 %v2463, %v2455
        %v3040 = vpack.c.b16 %v2464, %v2456
        %v3041 = vpack.c.b16 %v2465, %v2457
        %v3042 = vpack.c.b16 %v2466, %v2458
        %v3043 = vpack.c.b16 %v2467, %v2459
        %v3044 = vpack.c.b16 %v2468, %v2460
        %v3045 = vpack.c.b16 %v2477, %v2469
        %v3046 = vpack.c.b16 %v2478, %v2470
        %v3047 = vpack.c.b16 %v2479, %v2471
        %v3048 = vpack.c.b16 %v2480, %v2472
        %v3049 = vpack.c.b16 %v2481, %v2473
        %v3050 = vpack.c.b16 %v2482, %v2474
        %v3051 = vpack.c.b16 %v2483, %v2475
        %v3052 = vpack.c.b16 %v2484, %v2476
        %v3053 = vpack.c.b16 %v2493, %v2485
        %v3054 = vpack.c.b16 %v2494, %v2486
        %v3055 = vpack.c.b16 %v2495, %v2487
        %v3056 = vpack.c.b16 %v2496, %v2488
        %v3057 = vpack.c.b16 %v2497, %v2489
        %v3058 = vpack.c.b16 %v2498, %v2490
        %v3059 = vpack.c.b16 %v2499, %v2491
        %v3060 = vpack.c.b16 %v2500, %v2492
        %v3061 = vpack.c.b16 %v2509, %v2501
        %v3062 = vpack.c.b16 %v2510, %v2502
        %v3063 = vpack.c.b16 %v2511, %v2503
        %v3064 = vpack.c.b16 %v2512, %v2504
        %v3065 = vpack.c.b16 %v2513, %v2505
        %v3066 = vpack.c.b16 %v2514, %v2506
        %v3067 = vpack.c.b16 %v2515, %v2507
        %v3068 = vpack.c.b16 %v2516, %v2508
        %v3069 = vpack.c.b16 %v2525, %v2517
        %v3070 = vpack.c.b16 %v2526, %v2518
        %v3071 = vpack.c.b16 %v2527, %v2519
        %v3072 = vpack.c.b16 %v2528, %v2520
        %v3073 = vpack.c.b16 %v2529, %v2521
        %v3074 = vpack.c.b16 %v2530, %v2522
        %v3075 = vpack.c.b16 %v2531, %v2523
        %v3076 = vpack.c.b16 %v2532, %v2524
        %v3077 = vpack.c.b16 %v2541, %v2533
        %v3078 = vpack.c.b16 %v2542, %v2534
        %v3079 = vpack.c.b16 %v2543, %v2535
        %v3080 = vpack.c.b16 %v2544, %v2536
        %v3081 = vpack.c.b16 %v2545, %v2537
        %v3082 = vpack.c.b16 %v2546, %v2538
        %v3083 = vpack.c.b16 %v2547, %v2539
        %v3084 = vpack.c.b16 %v2548, %v2540
        %v3085 = vpack.c.b16 %v2557, %v2549
        %v3086 = vpack.c.b16 %v2558, %v2550
        %v3087 = vpack.c.b16 %v2559, %v2551
        %v3088 = vpack.c.b16 %v2560, %v2552
        %v3089 = vpack.c.b16 %v2561, %v2553
        %v3090 = vpack.c.b16 %v2562, %v2554
        %v3091 = vpack.c.b16 %v2563, %v2555
        %v3092 = vpack.c.b16 %v2564, %v2556
        %v3093 = vpack.c.b16 %v2573, %v2565
        %v3094 = vpack.c.b16 %v2574, %v2566
        %v3095 = vpack.c.b16 %v2575, %v2567
        %v3096 = vpack.c.b16 %v2576, %v2568
        %v3097 = vpack.c.b16 %v2577, %v2569
        %v3098 = vpack.c.b16 %v2578, %v2570
        %v3099 = vpack.c.b16 %v2579, %v2571
        %v3100 = vpack.c.b16 %v2580, %v2572
        %v3101 = vpack.c.b16 %v2589, %v2581
        %v3102 = vpack.c.b16 %v2590, %v2582
        %v3103 = vpack.c.b16 %v2591, %v2583
        %v3104 = vpack.c.b16 %v2592, %v2584
        %v3105 = vpack.c.b16 %v2593, %v2585
        %v3106 = vpack.c.b16 %v2594, %v2586
        %v3107 = vpack.c.b16 %v2595, %v2587
        %v3108 = vpack.c.b16 %v2596, %v2588
        %3621 = vmatprep.subr.bf16.mxu0 %v2654
        %3622 = vmatpush1.bf16.msra.mxu0 %v2653
        %3623 = vmatprep.subr.bf16.mxu0 %v2646
        %3624 = vmatpush1.bf16.msra.mxu0 %v2645
        %3625 = vmatprep.subr.bf16.mxu0 %v2638
        %3626 = vmatpush1.bf16.msra.mxu0 %v2637
        %3627 = vmatprep.subr.bf16.mxu0 %v2630
        %3628 = vmatpush1.bf16.msra.mxu0 %v2629
        %3629 = vmatprep.subr.bf16.mxu0 %v2622
        %3630 = vmatpush1.bf16.msra.mxu0 %v2621
        %3631 = vmatprep.subr.bf16.mxu0 %v2614
        %3632 = vmatpush1.bf16.msra.mxu0 %v2613
        %3633 = vmatprep.subr.bf16.mxu0 %v2606
        %3634 = vmatpush1.bf16.msra.mxu0 %v2605
        %3635 = vmatprep.subr.bf16.mxu0 %v2598
        %3636 = vmatpush1.bf16.msra.mxu0 %v2597
        %3637 = vmatprep.subr.bf16.mxu0 %v2718
        %3638 = vmatpush2.bf16.msra.mxu0 %v2717
        %3639 = vmatprep.subr.bf16.mxu0 %v2710
        %3640 = vmatpush2.bf16.msra.mxu0 %v2709
        %3641 = vmatprep.subr.bf16.mxu0 %v2702
        %3642 = vmatpush2.bf16.msra.mxu0 %v2701
        %3643 = vmatprep.subr.bf16.mxu0 %v2694
        %3644 = vmatpush2.bf16.msra.mxu0 %v2693
        %3645 = vmatprep.subr.bf16.mxu0 %v2686
        %3646 = vmatpush2.bf16.msra.mxu0 %v2685
        %3647 = vmatprep.subr.bf16.mxu0 %v2678
        %3648 = vmatpush2.bf16.msra.mxu0 %v2677
        %3649 = vmatprep.subr.bf16.mxu0 %v2670
        %3650 = vmatpush2.bf16.msra.mxu0 %v2669
        %3651 = vmatprep.subr.bf16.mxu0 %v2662
        %3652 = vmatpush2.bf16.msra.mxu0 %v2661
        %3653 = vmatprep.mubr.bf16.mxu0 %v998
        %3654 = vmatmul.mubr.bf16.gmra.mxu0 %v997
        %v3655 = vpop.f32.mrf.mxu0
        %v3656 = vadd.f32 0.0, %v3655
        %v3657 = vpop.f32.mrf.mxu0
        %v3658 = vadd.f32 0.0, %v3657
        %v3659 = vpop.f32.mrf.mxu0
        %v3660 = vadd.f32 0.0, %v3659
        %v3661 = vpop.f32.mrf.mxu0
        %v3662 = vadd.f32 0.0, %v3661
        %3663 = vmatprep.mubr.bf16.mxu0 %v1006
        %3664 = vmatmul.mubr.bf16.gmra.mxu0 %v1005
        %v3665 = vpop.f32.mrf.mxu0
        %v3666 = vadd.f32 0.0, %v3665
        %v3667 = vpop.f32.mrf.mxu0
        %v3668 = vadd.f32 0.0, %v3667
        %v3669 = vpop.f32.mrf.mxu0
        %v3670 = vadd.f32 0.0, %v3669
        %v3671 = vpop.f32.mrf.mxu0
        %v3672 = vadd.f32 0.0, %v3671
        %3673 = vmatprep.mubr.bf16.mxu0 %v1014
        %3674 = vmatmul.mubr.bf16.gmra.mxu0 %v1013
        %v3675 = vpop.f32.mrf.mxu0
        %v3676 = vadd.f32 0.0, %v3675
        %v3677 = vpop.f32.mrf.mxu0
        %v3678 = vadd.f32 0.0, %v3677
        %v3679 = vpop.f32.mrf.mxu0
        %v3680 = vadd.f32 0.0, %v3679
        %v3681 = vpop.f32.mrf.mxu0
        %v3682 = vadd.f32 0.0, %v3681
        %3683 = vmatprep.mubr.bf16.mxu0 %v1022
        %3684 = vmatmul.mubr.bf16.gmra.mxu0 %v1021
        %v3685 = vpop.f32.mrf.mxu0
        %v3686 = vadd.f32 0.0, %v3685
        %v3687 = vpop.f32.mrf.mxu0
        %v3688 = vadd.f32 0.0, %v3687
        %v3689 = vpop.f32.mrf.mxu0
        %v3690 = vpop.f32.mrf.mxu0
        %3691 = vdwg.mxu0
        %3692 = vmatprep.subr.bf16.mxu0 %v2782
        %3693 = vmatpush1.bf16.msra.mxu0 %v2781
        %3694 = vmatprep.subr.bf16.mxu0 %v2774
        %3695 = vmatpush1.bf16.msra.mxu0 %v2773
        %3696 = vmatprep.subr.bf16.mxu0 %v2766
        %3697 = vmatpush1.bf16.msra.mxu0 %v2765
        %3698 = vmatprep.subr.bf16.mxu0 %v2758
        %3699 = vmatpush1.bf16.msra.mxu0 %v2757
        %3700 = vmatprep.subr.bf16.mxu0 %v2750
        %3701 = vmatpush1.bf16.msra.mxu0 %v2749
        %3702 = vmatprep.subr.bf16.mxu0 %v2742
        %3703 = vmatpush1.bf16.msra.mxu0 %v2741
        %3704 = vmatprep.subr.bf16.mxu0 %v2734
        %3705 = vmatpush1.bf16.msra.mxu0 %v2733
        %3706 = vmatprep.subr.bf16.mxu0 %v2726
        %3707 = vmatpush1.bf16.msra.mxu0 %v2725
        %3708 = vmatprep.subr.bf16.mxu0 %v2846
        %3709 = vmatpush2.bf16.msra.mxu0 %v2845
        %3710 = vmatprep.subr.bf16.mxu0 %v2838
        %3711 = vmatpush2.bf16.msra.mxu0 %v2837
        %3712 = vmatprep.subr.bf16.mxu0 %v2830
        %3713 = vmatpush2.bf16.msra.mxu0 %v2829
        %3714 = vmatprep.subr.bf16.mxu0 %v2822
        %3715 = vmatpush2.bf16.msra.mxu0 %v2821
        %3716 = vmatprep.subr.bf16.mxu0 %v2814
        %3717 = vmatpush2.bf16.msra.mxu0 %v2813
        %3718 = vmatprep.subr.bf16.mxu0 %v2806
        %3719 = vmatpush2.bf16.msra.mxu0 %v2805
        %3720 = vmatprep.subr.bf16.mxu0 %v2798
        %3721 = vmatpush2.bf16.msra.mxu0 %v2797
        %3722 = vmatprep.subr.bf16.mxu0 %v2790
        %3723 = vmatpush2.bf16.msra.mxu0 %v2789
        %3724 = vmatprep.mubr.bf16.mxu0 %v1000
        %3725 = vmatmul.mubr.bf16.gmra.mxu0 %v999
        %v3726 = vpop.f32.mrf.mxu0
        %v3727 = vadd.f32 %v3656, %v3726
        %v3728 = vpop.f32.mrf.mxu0
        %v3729 = vadd.f32 %v3658, %v3728
        %v3730 = vpop.f32.mrf.mxu0
        %v3731 = vadd.f32 %v3660, %v3730
        %v3732 = vpop.f32.mrf.mxu0
        %v3733 = vadd.f32 %v3662, %v3732
        %3734 = vmatprep.mubr.bf16.mxu0 %v1008
        %3735 = vmatmul.mubr.bf16.gmra.mxu0 %v1007
        %v3736 = vpop.f32.mrf.mxu0
        %v3737 = vadd.f32 %v3666, %v3736
        %v3738 = vpop.f32.mrf.mxu0
        %v3739 = vadd.f32 %v3668, %v3738
        %v3740 = vpop.f32.mrf.mxu0
        %v3741 = vadd.f32 %v3670, %v3740
        %v3742 = vpop.f32.mrf.mxu0
        %v3743 = vadd.f32 %v3672, %v3742
        %3744 = vmatprep.mubr.bf16.mxu0 %v1016
        %3745 = vmatmul.mubr.bf16.gmra.mxu0 %v1015
        %v3746 = vpop.f32.mrf.mxu0
        %v3747 = vadd.f32 %v3676, %v3746
        %v3748 = vpop.f32.mrf.mxu0
        %v3749 = vadd.f32 %v3678, %v3748
        %v3750 = vpop.f32.mrf.mxu0
        %v3751 = vadd.f32 %v3680, %v3750
        %v3752 = vpop.f32.mrf.mxu0
        %v3753 = vadd.f32 %v3682, %v3752
        %3754 = vmatprep.mubr.bf16.mxu0 %v1024
        %3755 = vmatmul.mubr.bf16.gmra.mxu0 %v1023
        %v3756 = vpop.f32.mrf.mxu0
        %v3757 = vadd.f32 %v3686, %v3756
        %v3758 = vpop.f32.mrf.mxu0
        %v3759 = vadd.f32 %v3688, %v3758
        %v3760 = vpop.f32.mrf.mxu0
        %v3761 = vpop.f32.mrf.mxu0
        %3762 = vdwg.mxu0
        %3763 = vmatprep.subr.bf16.mxu0 %v2910
        %3764 = vmatpush1.bf16.msra.mxu0 %v2909
        %3765 = vmatprep.subr.bf16.mxu0 %v2902
        %3766 = vmatpush1.bf16.msra.mxu0 %v2901
        %3767 = vmatprep.subr.bf16.mxu0 %v2894
        %3768 = vmatpush1.bf16.msra.mxu0 %v2893
        %3769 = vmatprep.subr.bf16.mxu0 %v2886
        %3770 = vmatpush1.bf16.msra.mxu0 %v2885
        %3771 = vmatprep.subr.bf16.mxu0 %v2878
        %3772 = vmatpush1.bf16.msra.mxu0 %v2877
        %3773 = vmatprep.subr.bf16.mxu0 %v2870
        %3774 = vmatpush1.bf16.msra.mxu0 %v2869
        %3775 = vmatprep.subr.bf16.mxu0 %v2862
        %3776 = vmatpush1.bf16.msra.mxu0 %v2861
        %3777 = vmatprep.subr.bf16.mxu0 %v2854
        %3778 = vmatpush1.bf16.msra.mxu0 %v2853
        %3779 = vmatprep.subr.bf16.mxu0 %v2974
        %3780 = vmatpush2.bf16.msra.mxu0 %v2973
        %3781 = vmatprep.subr.bf16.mxu0 %v2966
        %3782 = vmatpush2.bf16.msra.mxu0 %v2965
        %3783 = vmatprep.subr.bf16.mxu0 %v2958
        %3784 = vmatpush2.bf16.msra.mxu0 %v2957
        %3785 = vmatprep.subr.bf16.mxu0 %v2950
        %3786 = vmatpush2.bf16.msra.mxu0 %v2949
        %3787 = vmatprep.subr.bf16.mxu0 %v2942
        %3788 = vmatpush2.bf16.msra.mxu0 %v2941
        %3789 = vmatprep.subr.bf16.mxu0 %v2934
        %3790 = vmatpush2.bf16.msra.mxu0 %v2933
        %3791 = vmatprep.subr.bf16.mxu0 %v2926
        %3792 = vmatpush2.bf16.msra.mxu0 %v2925
        %3793 = vmatprep.subr.bf16.mxu0 %v2918
        %3794 = vmatpush2.bf16.msra.mxu0 %v2917
        %3795 = vmatprep.mubr.bf16.mxu0 %v1002
        %3796 = vmatmul.mubr.bf16.gmra.mxu0 %v1001
        %v3797 = vpop.f32.mrf.mxu0
        %v3798 = vadd.f32 %v3727, %v3797
        %v3799 = vpop.f32.mrf.mxu0
        %v3800 = vadd.f32 %v3729, %v3799
        %v3801 = vpop.f32.mrf.mxu0
        %v3802 = vadd.f32 %v3731, %v3801
        %v3803 = vpop.f32.mrf.mxu0
        %v3804 = vadd.f32 %v3733, %v3803
        %3805 = vmatprep.mubr.bf16.mxu0 %v1010
        %3806 = vmatmul.mubr.bf16.gmra.mxu0 %v1009
        %v3807 = vpop.f32.mrf.mxu0
        %v3808 = vadd.f32 %v3737, %v3807
        %v3809 = vpop.f32.mrf.mxu0
        %v3810 = vadd.f32 %v3739, %v3809
        %v3811 = vpop.f32.mrf.mxu0
        %v3812 = vadd.f32 %v3741, %v3811
        %v3813 = vpop.f32.mrf.mxu0
        %v3814 = vadd.f32 %v3743, %v3813
        %3815 = vmatprep.mubr.bf16.mxu0 %v1018
        %3816 = vmatmul.mubr.bf16.gmra.mxu0 %v1017
        %v3817 = vpop.f32.mrf.mxu0
        %v3818 = vadd.f32 %v3747, %v3817
        %v3819 = vpop.f32.mrf.mxu0
        %v3820 = vadd.f32 %v3749, %v3819
        %v3821 = vpop.f32.mrf.mxu0
        %v3822 = vadd.f32 %v3751, %v3821
        %v3823 = vpop.f32.mrf.mxu0
        %v3824 = vadd.f32 %v3753, %v3823
        %3825 = vmatprep.mubr.bf16.mxu0 %v1026
        %3826 = vmatmul.mubr.bf16.gmra.mxu0 %v1025
        %v3827 = vpop.f32.mrf.mxu0
        %v3828 = vadd.f32 %v3757, %v3827
        %v3829 = vpop.f32.mrf.mxu0
        %v3830 = vadd.f32 %v3759, %v3829
        %v3831 = vpop.f32.mrf.mxu0
        %v3832 = vpop.f32.mrf.mxu0
        %3833 = vdwg.mxu0
        %3834 = vmatprep.subr.bf16.mxu0 %v3038
        %3835 = vmatpush1.bf16.msra.mxu0 %v3037
        %3836 = vmatprep.subr.bf16.mxu0 %v3030
        %3837 = vmatpush1.bf16.msra.mxu0 %v3029
        %3838 = vmatprep.subr.bf16.mxu0 %v3022
        %3839 = vmatpush1.bf16.msra.mxu0 %v3021
        %3840 = vmatprep.subr.bf16.mxu0 %v3014
        %3841 = vmatpush1.bf16.msra.mxu0 %v3013
        %3842 = vmatprep.subr.bf16.mxu0 %v3006
        %3843 = vmatpush1.bf16.msra.mxu0 %v3005
        %3844 = vmatprep.subr.bf16.mxu0 %v2998
        %3845 = vmatpush1.bf16.msra.mxu0 %v2997
        %3846 = vmatprep.subr.bf16.mxu0 %v2990
        %3847 = vmatpush1.bf16.msra.mxu0 %v2989
        %3848 = vmatprep.subr.bf16.mxu0 %v2982
        %3849 = vmatpush1.bf16.msra.mxu0 %v2981
        %3850 = vmatprep.subr.bf16.mxu0 %v3102
        %3851 = vmatpush2.bf16.msra.mxu0 %v3101
        %3852 = vmatprep.subr.bf16.mxu0 %v3094
        %3853 = vmatpush2.bf16.msra.mxu0 %v3093
        %3854 = vmatprep.subr.bf16.mxu0 %v3086
        %3855 = vmatpush2.bf16.msra.mxu0 %v3085
        %3856 = vmatprep.subr.bf16.mxu0 %v3078
        %3857 = vmatpush2.bf16.msra.mxu0 %v3077
        %3858 = vmatprep.subr.bf16.mxu0 %v3070
        %3859 = vmatpush2.bf16.msra.mxu0 %v3069
        %3860 = vmatprep.subr.bf16.mxu0 %v3062
        %3861 = vmatpush2.bf16.msra.mxu0 %v3061
        %3862 = vmatprep.subr.bf16.mxu0 %v3054
        %3863 = vmatpush2.bf16.msra.mxu0 %v3053
        %3864 = vmatprep.subr.bf16.mxu0 %v3046
        %3865 = vmatpush2.bf16.msra.mxu0 %v3045
        %3866 = vmatprep.mubr.bf16.mxu0 %v1004
        %3867 = vmatmul.mubr.bf16.gmra.mxu0 %v1003
        %v3868 = vpop.f32.mrf.mxu0
        %v3869 = vadd.f32 %v3798, %v3868
        %v3870 = vpop.f32.mrf.mxu0
        %v3871 = vadd.f32 %v3800, %v3870
        %v3872 = vpop.f32.mrf.mxu0
        %v3873 = vadd.f32 %v3802, %v3872
        %v3874 = vpop.f32.mrf.mxu0
        %v3875 = vadd.f32 %v3804, %v3874
        %3876 = vmatprep.mubr.bf16.mxu0 %v1012
        %3877 = vmatmul.mubr.bf16.gmra.mxu0 %v1011
        %v3878 = vpop.f32.mrf.mxu0
        %v3879 = vadd.f32 %v3808, %v3878
        %v3880 = vpop.f32.mrf.mxu0
        %v3881 = vadd.f32 %v3810, %v3880
        %v3882 = vpop.f32.mrf.mxu0
        %v3883 = vadd.f32 %v3812, %v3882
        %v3884 = vpop.f32.mrf.mxu0
        %v3885 = vadd.f32 %v3814, %v3884
        %3886 = vmatprep.mubr.bf16.mxu0 %v1020
        %3887 = vmatmul.mubr.bf16.gmra.mxu0 %v1019
        %v3888 = vpop.f32.mrf.mxu0
        %v3889 = vadd.f32 %v3818, %v3888
        %v3890 = vpop.f32.mrf.mxu0
        %v3891 = vadd.f32 %v3820, %v3890
        %v3892 = vpop.f32.mrf.mxu0
        %v3893 = vadd.f32 %v3822, %v3892
        %v3894 = vpop.f32.mrf.mxu0
        %v3895 = vadd.f32 %v3824, %v3894
        %3896 = vmatprep.mubr.bf16.mxu0 %v1028
        %3897 = vmatmul.mubr.bf16.gmra.mxu0 %v1027
        %v3898 = vpop.f32.mrf.mxu0
        %v3899 = vadd.f32 %v3828, %v3898
        %v3900 = vpop.f32.mrf.mxu0
        %v3901 = vadd.f32 %v3830, %v3900
        %v3902 = vpop.f32.mrf.mxu0
        %v3903 = vpop.f32.mrf.mxu0
        %3904 = vdwg.mxu0
        %3905 = vmatprep.subr.bf16.mxu0 %v2656
        %3906 = vmatpush1.bf16.msra.mxu0 %v2655
        %3907 = vmatprep.subr.bf16.mxu0 %v2648
        %3908 = vmatpush1.bf16.msra.mxu0 %v2647
        %3909 = vmatprep.subr.bf16.mxu0 %v2640
        %3910 = vmatpush1.bf16.msra.mxu0 %v2639
        %3911 = vmatprep.subr.bf16.mxu0 %v2632
        %3912 = vmatpush1.bf16.msra.mxu0 %v2631
        %3913 = vmatprep.subr.bf16.mxu0 %v2624
        %3914 = vmatpush1.bf16.msra.mxu0 %v2623
        %3915 = vmatprep.subr.bf16.mxu0 %v2616
        %3916 = vmatpush1.bf16.msra.mxu0 %v2615
        %3917 = vmatprep.subr.bf16.mxu0 %v2608
        %3918 = vmatpush1.bf16.msra.mxu0 %v2607
        %3919 = vmatprep.subr.bf16.mxu0 %v2600
        %3920 = vmatpush1.bf16.msra.mxu0 %v2599
        %3921 = vmatprep.subr.bf16.mxu0 %v2720
        %3922 = vmatpush2.bf16.msra.mxu0 %v2719
        %3923 = vmatprep.subr.bf16.mxu0 %v2712
        %3924 = vmatpush2.bf16.msra.mxu0 %v2711
        %3925 = vmatprep.subr.bf16.mxu0 %v2704
        %3926 = vmatpush2.bf16.msra.mxu0 %v2703
        %3927 = vmatprep.subr.bf16.mxu0 %v2696
        %3928 = vmatpush2.bf16.msra.mxu0 %v2695
        %3929 = vmatprep.subr.bf16.mxu0 %v2688
        %3930 = vmatpush2.bf16.msra.mxu0 %v2687
        %3931 = vmatprep.subr.bf16.mxu0 %v2680
        %3932 = vmatpush2.bf16.msra.mxu0 %v2679
        %3933 = vmatprep.subr.bf16.mxu0 %v2672
        %3934 = vmatpush2.bf16.msra.mxu0 %v2671
        %3935 = vmatprep.subr.bf16.mxu0 %v2664
        %3936 = vmatpush2.bf16.msra.mxu0 %v2663
        %3937 = vmatprep.mubr.bf16.mxu0 %v998
        %3938 = vmatmul.mubr.bf16.gmra.mxu0 %v997
        %v3939 = vpop.f32.mrf.mxu0
        %v3940 = vadd.f32 0.0, %v3939
        %v3941 = vpop.f32.mrf.mxu0
        %v3942 = vadd.f32 0.0, %v3941
        %v3943 = vpop.f32.mrf.mxu0
        %v3944 = vadd.f32 0.0, %v3943
        %v3945 = vpop.f32.mrf.mxu0
        %v3946 = vadd.f32 0.0, %v3945
        %3947 = vmatprep.mubr.bf16.mxu0 %v1006
        %3948 = vmatmul.mubr.bf16.gmra.mxu0 %v1005
        %v3949 = vpop.f32.mrf.mxu0
        %v3950 = vadd.f32 0.0, %v3949
        %v3951 = vpop.f32.mrf.mxu0
        %v3952 = vadd.f32 0.0, %v3951
        %v3953 = vpop.f32.mrf.mxu0
        %v3954 = vadd.f32 0.0, %v3953
        %v3955 = vpop.f32.mrf.mxu0
        %v3956 = vadd.f32 0.0, %v3955
        %3957 = vmatprep.mubr.bf16.mxu0 %v1014
        %3958 = vmatmul.mubr.bf16.gmra.mxu0 %v1013
        %v3959 = vpop.f32.mrf.mxu0
        %v3960 = vadd.f32 0.0, %v3959
        %v3961 = vpop.f32.mrf.mxu0
        %v3962 = vadd.f32 0.0, %v3961
        %v3963 = vpop.f32.mrf.mxu0
        %v3964 = vadd.f32 0.0, %v3963
        %v3965 = vpop.f32.mrf.mxu0
        %v3966 = vadd.f32 0.0, %v3965
        %3967 = vmatprep.mubr.bf16.mxu0 %v1022
        %3968 = vmatmul.mubr.bf16.gmra.mxu0 %v1021
        %v3969 = vpop.f32.mrf.mxu0
        %v3970 = vadd.f32 0.0, %v3969
        %v3971 = vpop.f32.mrf.mxu0
        %v3972 = vadd.f32 0.0, %v3971
        %v3973 = vpop.f32.mrf.mxu0
        %v3974 = vpop.f32.mrf.mxu0
        %3975 = vdwg.mxu0
        %3976 = vmatprep.subr.bf16.mxu0 %v2784
        %3977 = vmatpush1.bf16.msra.mxu0 %v2783
        %3978 = vmatprep.subr.bf16.mxu0 %v2776
        %3979 = vmatpush1.bf16.msra.mxu0 %v2775
        %3980 = vmatprep.subr.bf16.mxu0 %v2768
        %3981 = vmatpush1.bf16.msra.mxu0 %v2767
        %3982 = vmatprep.subr.bf16.mxu0 %v2760
        %3983 = vmatpush1.bf16.msra.mxu0 %v2759
        %3984 = vmatprep.subr.bf16.mxu0 %v2752
        %3985 = vmatpush1.bf16.msra.mxu0 %v2751
        %3986 = vmatprep.subr.bf16.mxu0 %v2744
        %3987 = vmatpush1.bf16.msra.mxu0 %v2743
        %3988 = vmatprep.subr.bf16.mxu0 %v2736
        %3989 = vmatpush1.bf16.msra.mxu0 %v2735
        %3990 = vmatprep.subr.bf16.mxu0 %v2728
        %3991 = vmatpush1.bf16.msra.mxu0 %v2727
        %3992 = vmatprep.subr.bf16.mxu0 %v2848
        %3993 = vmatpush2.bf16.msra.mxu0 %v2847
        %3994 = vmatprep.subr.bf16.mxu0 %v2840
        %3995 = vmatpush2.bf16.msra.mxu0 %v2839
        %3996 = vmatprep.subr.bf16.mxu0 %v2832
        %3997 = vmatpush2.bf16.msra.mxu0 %v2831
        %3998 = vmatprep.subr.bf16.mxu0 %v2824
        %3999 = vmatpush2.bf16.msra.mxu0 %v2823
        %4000 = vmatprep.subr.bf16.mxu0 %v2816
        %4001 = vmatpush2.bf16.msra.mxu0 %v2815
        %4002 = vmatprep.subr.bf16.mxu0 %v2808
        %4003 = vmatpush2.bf16.msra.mxu0 %v2807
        %4004 = vmatprep.subr.bf16.mxu0 %v2800
        %4005 = vmatpush2.bf16.msra.mxu0 %v2799
        %4006 = vmatprep.subr.bf16.mxu0 %v2792
        %4007 = vmatpush2.bf16.msra.mxu0 %v2791
        %4008 = vmatprep.mubr.bf16.mxu0 %v1000
        %4009 = vmatmul.mubr.bf16.gmra.mxu0 %v999
        %v4010 = vpop.f32.mrf.mxu0
        %v4011 = vadd.f32 %v3940, %v4010
        %v4012 = vpop.f32.mrf.mxu0
        %v4013 = vadd.f32 %v3942, %v4012
        %v4014 = vpop.f32.mrf.mxu0
        %v4015 = vadd.f32 %v3944, %v4014
        %v4016 = vpop.f32.mrf.mxu0
        %v4017 = vadd.f32 %v3946, %v4016
        %4018 = vmatprep.mubr.bf16.mxu0 %v1008
        %4019 = vmatmul.mubr.bf16.gmra.mxu0 %v1007
        %v4020 = vpop.f32.mrf.mxu0
        %v4021 = vadd.f32 %v3950, %v4020
        %v4022 = vpop.f32.mrf.mxu0
        %v4023 = vadd.f32 %v3952, %v4022
        %v4024 = vpop.f32.mrf.mxu0
        %v4025 = vadd.f32 %v3954, %v4024
        %v4026 = vpop.f32.mrf.mxu0
        %v4027 = vadd.f32 %v3956, %v4026
        %4028 = vmatprep.mubr.bf16.mxu0 %v1016
        %4029 = vmatmul.mubr.bf16.gmra.mxu0 %v1015
        %v4030 = vpop.f32.mrf.mxu0
        %v4031 = vadd.f32 %v3960, %v4030
        %v4032 = vpop.f32.mrf.mxu0
        %v4033 = vadd.f32 %v3962, %v4032
        %v4034 = vpop.f32.mrf.mxu0
        %v4035 = vadd.f32 %v3964, %v4034
        %v4036 = vpop.f32.mrf.mxu0
        %v4037 = vadd.f32 %v3966, %v4036
        %4038 = vmatprep.mubr.bf16.mxu0 %v1024
        %4039 = vmatmul.mubr.bf16.gmra.mxu0 %v1023
        %v4040 = vpop.f32.mrf.mxu0
        %v4041 = vadd.f32 %v3970, %v4040
        %v4042 = vpop.f32.mrf.mxu0
        %v4043 = vadd.f32 %v3972, %v4042
        %v4044 = vpop.f32.mrf.mxu0
        %v4045 = vpop.f32.mrf.mxu0
        %4046 = vdwg.mxu0
        %4047 = vmatprep.subr.bf16.mxu0 %v2912
        %4048 = vmatpush1.bf16.msra.mxu0 %v2911
        %4049 = vmatprep.subr.bf16.mxu0 %v2904
        %4050 = vmatpush1.bf16.msra.mxu0 %v2903
        %4051 = vmatprep.subr.bf16.mxu0 %v2896
        %4052 = vmatpush1.bf16.msra.mxu0 %v2895
        %4053 = vmatprep.subr.bf16.mxu0 %v2888
        %4054 = vmatpush1.bf16.msra.mxu0 %v2887
        %4055 = vmatprep.subr.bf16.mxu0 %v2880
        %4056 = vmatpush1.bf16.msra.mxu0 %v2879
        %4057 = vmatprep.subr.bf16.mxu0 %v2872
        %4058 = vmatpush1.bf16.msra.mxu0 %v2871
        %4059 = vmatprep.subr.bf16.mxu0 %v2864
        %4060 = vmatpush1.bf16.msra.mxu0 %v2863
        %4061 = vmatprep.subr.bf16.mxu0 %v2856
        %4062 = vmatpush1.bf16.msra.mxu0 %v2855
        %4063 = vmatprep.subr.bf16.mxu0 %v2976
        %4064 = vmatpush2.bf16.msra.mxu0 %v2975
        %4065 = vmatprep.subr.bf16.mxu0 %v2968
        %4066 = vmatpush2.bf16.msra.mxu0 %v2967
        %4067 = vmatprep.subr.bf16.mxu0 %v2960
        %4068 = vmatpush2.bf16.msra.mxu0 %v2959
        %4069 = vmatprep.subr.bf16.mxu0 %v2952
        %4070 = vmatpush2.bf16.msra.mxu0 %v2951
        %4071 = vmatprep.subr.bf16.mxu0 %v2944
        %4072 = vmatpush2.bf16.msra.mxu0 %v2943
        %4073 = vmatprep.subr.bf16.mxu0 %v2936
        %4074 = vmatpush2.bf16.msra.mxu0 %v2935
        %4075 = vmatprep.subr.bf16.mxu0 %v2928
        %4076 = vmatpush2.bf16.msra.mxu0 %v2927
        %4077 = vmatprep.subr.bf16.mxu0 %v2920
        %4078 = vmatpush2.bf16.msra.mxu0 %v2919
        %4079 = vmatprep.mubr.bf16.mxu0 %v1002
        %4080 = vmatmul.mubr.bf16.gmra.mxu0 %v1001
        %v4081 = vpop.f32.mrf.mxu0
        %v4082 = vadd.f32 %v4011, %v4081
        %v4083 = vpop.f32.mrf.mxu0
        %v4084 = vadd.f32 %v4013, %v4083
        %v4085 = vpop.f32.mrf.mxu0
        %v4086 = vadd.f32 %v4015, %v4085
        %v4087 = vpop.f32.mrf.mxu0
        %v4088 = vadd.f32 %v4017, %v4087
        %4089 = vmatprep.mubr.bf16.mxu0 %v1010
        %4090 = vmatmul.mubr.bf16.gmra.mxu0 %v1009
        %v4091 = vpop.f32.mrf.mxu0
        %v4092 = vadd.f32 %v4021, %v4091
        %v4093 = vpop.f32.mrf.mxu0
        %v4094 = vadd.f32 %v4023, %v4093
        %v4095 = vpop.f32.mrf.mxu0
        %v4096 = vadd.f32 %v4025, %v4095
        %v4097 = vpop.f32.mrf.mxu0
        %v4098 = vadd.f32 %v4027, %v4097
        %4099 = vmatprep.mubr.bf16.mxu0 %v1018
        %4100 = vmatmul.mubr.bf16.gmra.mxu0 %v1017
        %v4101 = vpop.f32.mrf.mxu0
        %v4102 = vadd.f32 %v4031, %v4101
        %v4103 = vpop.f32.mrf.mxu0
        %v4104 = vadd.f32 %v4033, %v4103
        %v4105 = vpop.f32.mrf.mxu0
        %v4106 = vadd.f32 %v4035, %v4105
        %v4107 = vpop.f32.mrf.mxu0
        %v4108 = vadd.f32 %v4037, %v4107
        %4109 = vmatprep.mubr.bf16.mxu0 %v1026
        %4110 = vmatmul.mubr.bf16.gmra.mxu0 %v1025
        %v4111 = vpop.f32.mrf.mxu0
        %v4112 = vadd.f32 %v4041, %v4111
        %v4113 = vpop.f32.mrf.mxu0
        %v4114 = vadd.f32 %v4043, %v4113
        %v4115 = vpop.f32.mrf.mxu0
        %v4116 = vpop.f32.mrf.mxu0
        %4117 = vdwg.mxu0
        %4118 = vmatprep.subr.bf16.mxu0 %v3040
        %4119 = vmatpush1.bf16.msra.mxu0 %v3039
        %4120 = vmatprep.subr.bf16.mxu0 %v3032
        %4121 = vmatpush1.bf16.msra.mxu0 %v3031
        %4122 = vmatprep.subr.bf16.mxu0 %v3024
        %4123 = vmatpush1.bf16.msra.mxu0 %v3023
        %4124 = vmatprep.subr.bf16.mxu0 %v3016
        %4125 = vmatpush1.bf16.msra.mxu0 %v3015
        %4126 = vmatprep.subr.bf16.mxu0 %v3008
        %4127 = vmatpush1.bf16.msra.mxu0 %v3007
        %4128 = vmatprep.subr.bf16.mxu0 %v3000
        %4129 = vmatpush1.bf16.msra.mxu0 %v2999
        %4130 = vmatprep.subr.bf16.mxu0 %v2992
        %4131 = vmatpush1.bf16.msra.mxu0 %v2991
        %4132 = vmatprep.subr.bf16.mxu0 %v2984
        %4133 = vmatpush1.bf16.msra.mxu0 %v2983
        %4134 = vmatprep.subr.bf16.mxu0 %v3104
        %4135 = vmatpush2.bf16.msra.mxu0 %v3103
        %4136 = vmatprep.subr.bf16.mxu0 %v3096
        %4137 = vmatpush2.bf16.msra.mxu0 %v3095
        %4138 = vmatprep.subr.bf16.mxu0 %v3088
        %4139 = vmatpush2.bf16.msra.mxu0 %v3087
        %4140 = vmatprep.subr.bf16.mxu0 %v3080
        %4141 = vmatpush2.bf16.msra.mxu0 %v3079
        %4142 = vmatprep.subr.bf16.mxu0 %v3072
        %4143 = vmatpush2.bf16.msra.mxu0 %v3071
        %4144 = vmatprep.subr.bf16.mxu0 %v3064
        %4145 = vmatpush2.bf16.msra.mxu0 %v3063
        %4146 = vmatprep.subr.bf16.mxu0 %v3056
        %4147 = vmatpush2.bf16.msra.mxu0 %v3055
        %4148 = vmatprep.subr.bf16.mxu0 %v3048
        %4149 = vmatpush2.bf16.msra.mxu0 %v3047
        %4150 = vmatprep.mubr.bf16.mxu0 %v1004
        %4151 = vmatmul.mubr.bf16.gmra.mxu0 %v1003
        %v4152 = vpop.f32.mrf.mxu0
        %v4153 = vadd.f32 %v4082, %v4152
        %v4154 = vpop.f32.mrf.mxu0
        %v4155 = vadd.f32 %v4084, %v4154
        %v4156 = vpop.f32.mrf.mxu0
        %v4157 = vadd.f32 %v4086, %v4156
        %v4158 = vpop.f32.mrf.mxu0
        %v4159 = vadd.f32 %v4088, %v4158
        %4160 = vmatprep.mubr.bf16.mxu0 %v1012
        %4161 = vmatmul.mubr.bf16.gmra.mxu0 %v1011
        %v4162 = vpop.f32.mrf.mxu0
        %v4163 = vadd.f32 %v4092, %v4162
        %v4164 = vpop.f32.mrf.mxu0
        %v4165 = vadd.f32 %v4094, %v4164
        %v4166 = vpop.f32.mrf.mxu0
        %v4167 = vadd.f32 %v4096, %v4166
        %v4168 = vpop.f32.mrf.mxu0
        %v4169 = vadd.f32 %v4098, %v4168
        %4170 = vmatprep.mubr.bf16.mxu0 %v1020
        %4171 = vmatmul.mubr.bf16.gmra.mxu0 %v1019
        %v4172 = vpop.f32.mrf.mxu0
        %v4173 = vadd.f32 %v4102, %v4172
        %v4174 = vpop.f32.mrf.mxu0
        %v4175 = vadd.f32 %v4104, %v4174
        %v4176 = vpop.f32.mrf.mxu0
        %v4177 = vadd.f32 %v4106, %v4176
        %v4178 = vpop.f32.mrf.mxu0
        %v4179 = vadd.f32 %v4108, %v4178
        %4180 = vmatprep.mubr.bf16.mxu0 %v1028
        %4181 = vmatmul.mubr.bf16.gmra.mxu0 %v1027
        %v4182 = vpop.f32.mrf.mxu0
        %v4183 = vadd.f32 %v4112, %v4182
        %v4184 = vpop.f32.mrf.mxu0
        %v4185 = vadd.f32 %v4114, %v4184
        %v4186 = vpop.f32.mrf.mxu0
        %v4187 = vpop.f32.mrf.mxu0
        %4188 = vdwg.mxu0
        %4189 = vmatprep.subr.bf16.mxu0 %v2658
        %4190 = vmatpush1.bf16.msra.mxu0 %v2657
        %4191 = vmatprep.subr.bf16.mxu0 %v2650
        %4192 = vmatpush1.bf16.msra.mxu0 %v2649
        %4193 = vmatprep.subr.bf16.mxu0 %v2642
        %4194 = vmatpush1.bf16.msra.mxu0 %v2641
        %4195 = vmatprep.subr.bf16.mxu0 %v2634
        %4196 = vmatpush1.bf16.msra.mxu0 %v2633
        %4197 = vmatprep.subr.bf16.mxu0 %v2626
        %4198 = vmatpush1.bf16.msra.mxu0 %v2625
        %4199 = vmatprep.subr.bf16.mxu0 %v2618
        %4200 = vmatpush1.bf16.msra.mxu0 %v2617
        %4201 = vmatprep.subr.bf16.mxu0 %v2610
        %4202 = vmatpush1.bf16.msra.mxu0 %v2609
        %4203 = vmatprep.subr.bf16.mxu0 %v2602
        %4204 = vmatpush1.bf16.msra.mxu0 %v2601
        %4205 = vmatprep.subr.bf16.mxu0 %v2722
        %4206 = vmatpush2.bf16.msra.mxu0 %v2721
        %4207 = vmatprep.subr.bf16.mxu0 %v2714
        %4208 = vmatpush2.bf16.msra.mxu0 %v2713
        %4209 = vmatprep.subr.bf16.mxu0 %v2706
        %4210 = vmatpush2.bf16.msra.mxu0 %v2705
        %4211 = vmatprep.subr.bf16.mxu0 %v2698
        %4212 = vmatpush2.bf16.msra.mxu0 %v2697
        %4213 = vmatprep.subr.bf16.mxu0 %v2690
        %4214 = vmatpush2.bf16.msra.mxu0 %v2689
        %4215 = vmatprep.subr.bf16.mxu0 %v2682
        %4216 = vmatpush2.bf16.msra.mxu0 %v2681
        %4217 = vmatprep.subr.bf16.mxu0 %v2674
        %4218 = vmatpush2.bf16.msra.mxu0 %v2673
        %4219 = vmatprep.subr.bf16.mxu0 %v2666
        %4220 = vmatpush2.bf16.msra.mxu0 %v2665
        %4221 = vmatprep.mubr.bf16.mxu0 %v998
        %4222 = vmatmul.mubr.bf16.gmra.mxu0 %v997
        %v4223 = vpop.f32.mrf.mxu0
        %v4224 = vadd.f32 0.0, %v4223
        %v4225 = vpop.f32.mrf.mxu0
        %v4226 = vadd.f32 0.0, %v4225
        %v4227 = vpop.f32.mrf.mxu0
        %v4228 = vadd.f32 0.0, %v4227
        %v4229 = vpop.f32.mrf.mxu0
        %v4230 = vadd.f32 0.0, %v4229
        %4231 = vmatprep.mubr.bf16.mxu0 %v1006
        %4232 = vmatmul.mubr.bf16.gmra.mxu0 %v1005
        %v4233 = vpop.f32.mrf.mxu0
        %v4234 = vadd.f32 0.0, %v4233
        %v4235 = vpop.f32.mrf.mxu0
        %v4236 = vadd.f32 0.0, %v4235
        %v4237 = vpop.f32.mrf.mxu0
        %v4238 = vadd.f32 0.0, %v4237
        %v4239 = vpop.f32.mrf.mxu0
        %v4240 = vadd.f32 0.0, %v4239
        %4241 = vmatprep.mubr.bf16.mxu0 %v1014
        %4242 = vmatmul.mubr.bf16.gmra.mxu0 %v1013
        %v4243 = vpop.f32.mrf.mxu0
        %v4244 = vadd.f32 0.0, %v4243
        %v4245 = vpop.f32.mrf.mxu0
        %v4246 = vadd.f32 0.0, %v4245
        %v4247 = vpop.f32.mrf.mxu0
        %v4248 = vadd.f32 0.0, %v4247
        %v4249 = vpop.f32.mrf.mxu0
        %v4250 = vadd.f32 0.0, %v4249
        %4251 = vmatprep.mubr.bf16.mxu0 %v1022
        %4252 = vmatmul.mubr.bf16.gmra.mxu0 %v1021
        %v4253 = vpop.f32.mrf.mxu0
        %v4254 = vadd.f32 0.0, %v4253
        %v4255 = vpop.f32.mrf.mxu0
        %v4256 = vadd.f32 0.0, %v4255
        %v4257 = vpop.f32.mrf.mxu0
        %v4258 = vpop.f32.mrf.mxu0
        %4259 = vdwg.mxu0
        %4260 = vmatprep.subr.bf16.mxu0 %v2786
        %4261 = vmatpush1.bf16.msra.mxu0 %v2785
        %4262 = vmatprep.subr.bf16.mxu0 %v2778
        %4263 = vmatpush1.bf16.msra.mxu0 %v2777
        %4264 = vmatprep.subr.bf16.mxu0 %v2770
        %4265 = vmatpush1.bf16.msra.mxu0 %v2769
        %4266 = vmatprep.subr.bf16.mxu0 %v2762
        %4267 = vmatpush1.bf16.msra.mxu0 %v2761
        %4268 = vmatprep.subr.bf16.mxu0 %v2754
        %4269 = vmatpush1.bf16.msra.mxu0 %v2753
        %4270 = vmatprep.subr.bf16.mxu0 %v2746
        %4271 = vmatpush1.bf16.msra.mxu0 %v2745
        %4272 = vmatprep.subr.bf16.mxu0 %v2738
        %4273 = vmatpush1.bf16.msra.mxu0 %v2737
        %4274 = vmatprep.subr.bf16.mxu0 %v2730
        %4275 = vmatpush1.bf16.msra.mxu0 %v2729
        %4276 = vmatprep.subr.bf16.mxu0 %v2850
        %4277 = vmatpush2.bf16.msra.mxu0 %v2849
        %4278 = vmatprep.subr.bf16.mxu0 %v2842
        %4279 = vmatpush2.bf16.msra.mxu0 %v2841
        %4280 = vmatprep.subr.bf16.mxu0 %v2834
        %4281 = vmatpush2.bf16.msra.mxu0 %v2833
        %4282 = vmatprep.subr.bf16.mxu0 %v2826
        %4283 = vmatpush2.bf16.msra.mxu0 %v2825
        %4284 = vmatprep.subr.bf16.mxu0 %v2818
        %4285 = vmatpush2.bf16.msra.mxu0 %v2817
        %4286 = vmatprep.subr.bf16.mxu0 %v2810
        %4287 = vmatpush2.bf16.msra.mxu0 %v2809
        %4288 = vmatprep.subr.bf16.mxu0 %v2802
        %4289 = vmatpush2.bf16.msra.mxu0 %v2801
        %4290 = vmatprep.subr.bf16.mxu0 %v2794
        %4291 = vmatpush2.bf16.msra.mxu0 %v2793
        %4292 = vmatprep.mubr.bf16.mxu0 %v1000
        %4293 = vmatmul.mubr.bf16.gmra.mxu0 %v999
        %v4294 = vpop.f32.mrf.mxu0
        %v4295 = vadd.f32 %v4224, %v4294
        %v4296 = vpop.f32.mrf.mxu0
        %v4297 = vadd.f32 %v4226, %v4296
        %v4298 = vpop.f32.mrf.mxu0
        %v4299 = vadd.f32 %v4228, %v4298
        %v4300 = vpop.f32.mrf.mxu0
        %v4301 = vadd.f32 %v4230, %v4300
        %4302 = vmatprep.mubr.bf16.mxu0 %v1008
        %4303 = vmatmul.mubr.bf16.gmra.mxu0 %v1007
        %v4304 = vpop.f32.mrf.mxu0
        %v4305 = vadd.f32 %v4234, %v4304
        %v4306 = vpop.f32.mrf.mxu0
        %v4307 = vadd.f32 %v4236, %v4306
        %v4308 = vpop.f32.mrf.mxu0
        %v4309 = vadd.f32 %v4238, %v4308
        %v4310 = vpop.f32.mrf.mxu0
        %v4311 = vadd.f32 %v4240, %v4310
        %4312 = vmatprep.mubr.bf16.mxu0 %v1016
        %4313 = vmatmul.mubr.bf16.gmra.mxu0 %v1015
        %v4314 = vpop.f32.mrf.mxu0
        %v4315 = vadd.f32 %v4244, %v4314
        %v4316 = vpop.f32.mrf.mxu0
        %v4317 = vadd.f32 %v4246, %v4316
        %v4318 = vpop.f32.mrf.mxu0
        %v4319 = vadd.f32 %v4248, %v4318
        %v4320 = vpop.f32.mrf.mxu0
        %v4321 = vadd.f32 %v4250, %v4320
        %4322 = vmatprep.mubr.bf16.mxu0 %v1024
        %4323 = vmatmul.mubr.bf16.gmra.mxu0 %v1023
        %v4324 = vpop.f32.mrf.mxu0
        %v4325 = vadd.f32 %v4254, %v4324
        %v4326 = vpop.f32.mrf.mxu0
        %v4327 = vadd.f32 %v4256, %v4326
        %v4328 = vpop.f32.mrf.mxu0
        %v4329 = vpop.f32.mrf.mxu0
        %4330 = vdwg.mxu0
        %4331 = vmatprep.subr.bf16.mxu0 %v2914
        %4332 = vmatpush1.bf16.msra.mxu0 %v2913
        %4333 = vmatprep.subr.bf16.mxu0 %v2906
        %4334 = vmatpush1.bf16.msra.mxu0 %v2905
        %4335 = vmatprep.subr.bf16.mxu0 %v2898
        %4336 = vmatpush1.bf16.msra.mxu0 %v2897
        %4337 = vmatprep.subr.bf16.mxu0 %v2890
        %4338 = vmatpush1.bf16.msra.mxu0 %v2889
        %4339 = vmatprep.subr.bf16.mxu0 %v2882
        %4340 = vmatpush1.bf16.msra.mxu0 %v2881
        %4341 = vmatprep.subr.bf16.mxu0 %v2874
        %4342 = vmatpush1.bf16.msra.mxu0 %v2873
        %4343 = vmatprep.subr.bf16.mxu0 %v2866
        %4344 = vmatpush1.bf16.msra.mxu0 %v2865
        %4345 = vmatprep.subr.bf16.mxu0 %v2858
        %4346 = vmatpush1.bf16.msra.mxu0 %v2857
        %4347 = vmatprep.subr.bf16.mxu0 %v2978
        %4348 = vmatpush2.bf16.msra.mxu0 %v2977
        %4349 = vmatprep.subr.bf16.mxu0 %v2970
        %4350 = vmatpush2.bf16.msra.mxu0 %v2969
        %4351 = vmatprep.subr.bf16.mxu0 %v2962
        %4352 = vmatpush2.bf16.msra.mxu0 %v2961
        %4353 = vmatprep.subr.bf16.mxu0 %v2954
        %4354 = vmatpush2.bf16.msra.mxu0 %v2953
        %4355 = vmatprep.subr.bf16.mxu0 %v2946
        %4356 = vmatpush2.bf16.msra.mxu0 %v2945
        %4357 = vmatprep.subr.bf16.mxu0 %v2938
        %4358 = vmatpush2.bf16.msra.mxu0 %v2937
        %4359 = vmatprep.subr.bf16.mxu0 %v2930
        %4360 = vmatpush2.bf16.msra.mxu0 %v2929
        %4361 = vmatprep.subr.bf16.mxu0 %v2922
        %4362 = vmatpush2.bf16.msra.mxu0 %v2921
        %4363 = vmatprep.mubr.bf16.mxu0 %v1002
        %4364 = vmatmul.mubr.bf16.gmra.mxu0 %v1001
        %v4365 = vpop.f32.mrf.mxu0
        %v4366 = vadd.f32 %v4295, %v4365
        %v4367 = vpop.f32.mrf.mxu0
        %v4368 = vadd.f32 %v4297, %v4367
        %v4369 = vpop.f32.mrf.mxu0
        %v4370 = vadd.f32 %v4299, %v4369
        %v4371 = vpop.f32.mrf.mxu0
        %v4372 = vadd.f32 %v4301, %v4371
        %4373 = vmatprep.mubr.bf16.mxu0 %v1010
        %4374 = vmatmul.mubr.bf16.gmra.mxu0 %v1009
        %v4375 = vpop.f32.mrf.mxu0
        %v4376 = vadd.f32 %v4305, %v4375
        %v4377 = vpop.f32.mrf.mxu0
        %v4378 = vadd.f32 %v4307, %v4377
        %v4379 = vpop.f32.mrf.mxu0
        %v4380 = vadd.f32 %v4309, %v4379
        %v4381 = vpop.f32.mrf.mxu0
        %v4382 = vadd.f32 %v4311, %v4381
        %4383 = vmatprep.mubr.bf16.mxu0 %v1018
        %4384 = vmatmul.mubr.bf16.gmra.mxu0 %v1017
        %v4385 = vpop.f32.mrf.mxu0
        %v4386 = vadd.f32 %v4315, %v4385
        %v4387 = vpop.f32.mrf.mxu0
        %v4388 = vadd.f32 %v4317, %v4387
        %v4389 = vpop.f32.mrf.mxu0
        %v4390 = vadd.f32 %v4319, %v4389
        %v4391 = vpop.f32.mrf.mxu0
        %v4392 = vadd.f32 %v4321, %v4391
        %4393 = vmatprep.mubr.bf16.mxu0 %v1026
        %4394 = vmatmul.mubr.bf16.gmra.mxu0 %v1025
        %v4395 = vpop.f32.mrf.mxu0
        %v4396 = vadd.f32 %v4325, %v4395
        %v4397 = vpop.f32.mrf.mxu0
        %v4398 = vadd.f32 %v4327, %v4397
        %v4399 = vpop.f32.mrf.mxu0
        %v4400 = vpop.f32.mrf.mxu0
        %4401 = vdwg.mxu0
        %4402 = vmatprep.subr.bf16.mxu0 %v3042
        %4403 = vmatpush1.bf16.msra.mxu0 %v3041
        %4404 = vmatprep.subr.bf16.mxu0 %v3034
        %4405 = vmatpush1.bf16.msra.mxu0 %v3033
        %4406 = vmatprep.subr.bf16.mxu0 %v3026
        %4407 = vmatpush1.bf16.msra.mxu0 %v3025
        %4408 = vmatprep.subr.bf16.mxu0 %v3018
        %4409 = vmatpush1.bf16.msra.mxu0 %v3017
        %4410 = vmatprep.subr.bf16.mxu0 %v3010
        %4411 = vmatpush1.bf16.msra.mxu0 %v3009
        %4412 = vmatprep.subr.bf16.mxu0 %v3002
        %4413 = vmatpush1.bf16.msra.mxu0 %v3001
        %4414 = vmatprep.subr.bf16.mxu0 %v2994
        %4415 = vmatpush1.bf16.msra.mxu0 %v2993
        %4416 = vmatprep.subr.bf16.mxu0 %v2986
        %4417 = vmatpush1.bf16.msra.mxu0 %v2985
        %4418 = vmatprep.subr.bf16.mxu0 %v3106
        %4419 = vmatpush2.bf16.msra.mxu0 %v3105
        %4420 = vmatprep.subr.bf16.mxu0 %v3098
        %4421 = vmatpush2.bf16.msra.mxu0 %v3097
        %4422 = vmatprep.subr.bf16.mxu0 %v3090
        %4423 = vmatpush2.bf16.msra.mxu0 %v3089
        %4424 = vmatprep.subr.bf16.mxu0 %v3082
        %4425 = vmatpush2.bf16.msra.mxu0 %v3081
        %4426 = vmatprep.subr.bf16.mxu0 %v3074
        %4427 = vmatpush2.bf16.msra.mxu0 %v3073
        %4428 = vmatprep.subr.bf16.mxu0 %v3066
        %4429 = vmatpush2.bf16.msra.mxu0 %v3065
        %4430 = vmatprep.subr.bf16.mxu0 %v3058
        %4431 = vmatpush2.bf16.msra.mxu0 %v3057
        %4432 = vmatprep.subr.bf16.mxu0 %v3050
        %4433 = vmatpush2.bf16.msra.mxu0 %v3049
        %4434 = vmatprep.mubr.bf16.mxu0 %v1004
        %4435 = vmatmul.mubr.bf16.gmra.mxu0 %v1003
        %v4436 = vpop.f32.mrf.mxu0
        %v4437 = vadd.f32 %v4366, %v4436
        %v4438 = vpop.f32.mrf.mxu0
        %v4439 = vadd.f32 %v4368, %v4438
        %v4440 = vpop.f32.mrf.mxu0
        %v4441 = vadd.f32 %v4370, %v4440
        %v4442 = vpop.f32.mrf.mxu0
        %v4443 = vadd.f32 %v4372, %v4442
        %4444 = vmatprep.mubr.bf16.mxu0 %v1012
        %4445 = vmatmul.mubr.bf16.gmra.mxu0 %v1011
        %v4446 = vpop.f32.mrf.mxu0
        %v4447 = vadd.f32 %v4376, %v4446
        %v4448 = vpop.f32.mrf.mxu0
        %v4449 = vadd.f32 %v4378, %v4448
        %v4450 = vpop.f32.mrf.mxu0
        %v4451 = vadd.f32 %v4380, %v4450
        %v4452 = vpop.f32.mrf.mxu0
        %v4453 = vadd.f32 %v4382, %v4452
        %4454 = vmatprep.mubr.bf16.mxu0 %v1020
        %4455 = vmatmul.mubr.bf16.gmra.mxu0 %v1019
        %v4456 = vpop.f32.mrf.mxu0
        %v4457 = vadd.f32 %v4386, %v4456
        %v4458 = vpop.f32.mrf.mxu0
        %v4459 = vadd.f32 %v4388, %v4458
        %v4460 = vpop.f32.mrf.mxu0
        %v4461 = vadd.f32 %v4390, %v4460
        %v4462 = vpop.f32.mrf.mxu0
        %v4463 = vadd.f32 %v4392, %v4462
        %4464 = vmatprep.mubr.bf16.mxu0 %v1028
        %4465 = vmatmul.mubr.bf16.gmra.mxu0 %v1027
        %v4466 = vpop.f32.mrf.mxu0
        %v4467 = vadd.f32 %v4396, %v4466
        %v4468 = vpop.f32.mrf.mxu0
        %v4469 = vadd.f32 %v4398, %v4468
        %v4470 = vpop.f32.mrf.mxu0
        %v4471 = vpop.f32.mrf.mxu0
        %4472 = vdwg.mxu0
        %4473 = vmatprep.subr.bf16.mxu0 %v2660
        %4474 = vmatpush1.bf16.msra.mxu0 %v2659
        %4475 = vmatprep.subr.bf16.mxu0 %v2652
        %4476 = vmatpush1.bf16.msra.mxu0 %v2651
        %4477 = vmatprep.subr.bf16.mxu0 %v2644
        %4478 = vmatpush1.bf16.msra.mxu0 %v2643
        %4479 = vmatprep.subr.bf16.mxu0 %v2636
        %4480 = vmatpush1.bf16.msra.mxu0 %v2635
        %4481 = vmatprep.subr.bf16.mxu0 %v2628
        %4482 = vmatpush1.bf16.msra.mxu0 %v2627
        %4483 = vmatprep.subr.bf16.mxu0 %v2620
        %4484 = vmatpush1.bf16.msra.mxu0 %v2619
        %4485 = vmatprep.subr.bf16.mxu0 %v2612
        %4486 = vmatpush1.bf16.msra.mxu0 %v2611
        %4487 = vmatprep.subr.bf16.mxu0 %v2604
        %4488 = vmatpush1.bf16.msra.mxu0 %v2603
        %4489 = vmatprep.subr.bf16.mxu0 %v2724
        %4490 = vmatpush2.bf16.msra.mxu0 %v2723
        %4491 = vmatprep.subr.bf16.mxu0 %v2716
        %4492 = vmatpush2.bf16.msra.mxu0 %v2715
        %4493 = vmatprep.subr.bf16.mxu0 %v2708
        %4494 = vmatpush2.bf16.msra.mxu0 %v2707
        %4495 = vmatprep.subr.bf16.mxu0 %v2700
        %4496 = vmatpush2.bf16.msra.mxu0 %v2699
        %4497 = vmatprep.subr.bf16.mxu0 %v2692
        %4498 = vmatpush2.bf16.msra.mxu0 %v2691
        %4499 = vmatprep.subr.bf16.mxu0 %v2684
        %4500 = vmatpush2.bf16.msra.mxu0 %v2683
        %4501 = vmatprep.subr.bf16.mxu0 %v2676
        %4502 = vmatpush2.bf16.msra.mxu0 %v2675
        %4503 = vmatprep.subr.bf16.mxu0 %v2668
        %4504 = vmatpush2.bf16.msra.mxu0 %v2667
        %4505 = vmatprep.mubr.bf16.mxu0 %v998
        %4506 = vmatmul.mubr.bf16.gmra.mxu0 %v997
        %v4507 = vpop.f32.mrf.mxu0
        %v4508 = vadd.f32 0.0, %v4507
        %v4509 = vpop.f32.mrf.mxu0
        %v4510 = vadd.f32 0.0, %v4509
        %v4511 = vpop.f32.mrf.mxu0
        %v4512 = vadd.f32 0.0, %v4511
        %v4513 = vpop.f32.mrf.mxu0
        %v4514 = vadd.f32 0.0, %v4513
        %4515 = vmatprep.mubr.bf16.mxu0 %v1006
        %4516 = vmatmul.mubr.bf16.gmra.mxu0 %v1005
        %v4517 = vpop.f32.mrf.mxu0
        %v4518 = vadd.f32 0.0, %v4517
        %v4519 = vpop.f32.mrf.mxu0
        %v4520 = vadd.f32 0.0, %v4519
        %v4521 = vpop.f32.mrf.mxu0
        %v4522 = vadd.f32 0.0, %v4521
        %v4523 = vpop.f32.mrf.mxu0
        %v4524 = vadd.f32 0.0, %v4523
        %4525 = vmatprep.mubr.bf16.mxu0 %v1014
        %4526 = vmatmul.mubr.bf16.gmra.mxu0 %v1013
        %v4527 = vpop.f32.mrf.mxu0
        %v4528 = vadd.f32 0.0, %v4527
        %v4529 = vpop.f32.mrf.mxu0
        %v4530 = vadd.f32 0.0, %v4529
        %v4531 = vpop.f32.mrf.mxu0
        %v4532 = vadd.f32 0.0, %v4531
        %v4533 = vpop.f32.mrf.mxu0
        %v4534 = vadd.f32 0.0, %v4533
        %4535 = vmatprep.mubr.bf16.mxu0 %v1022
        %4536 = vmatmul.mubr.bf16.gmra.mxu0 %v1021
        %v4537 = vpop.f32.mrf.mxu0
        %v4538 = vadd.f32 0.0, %v4537
        %v4539 = vpop.f32.mrf.mxu0
        %v4540 = vadd.f32 0.0, %v4539
        %v4541 = vpop.f32.mrf.mxu0
        %v4542 = vpop.f32.mrf.mxu0
        %4543 = vdwg.mxu0
        %4544 = vmatprep.subr.bf16.mxu0 %v2788
        %4545 = vmatpush1.bf16.msra.mxu0 %v2787
        %4546 = vmatprep.subr.bf16.mxu0 %v2780
        %4547 = vmatpush1.bf16.msra.mxu0 %v2779
        %4548 = vmatprep.subr.bf16.mxu0 %v2772
        %4549 = vmatpush1.bf16.msra.mxu0 %v2771
        %4550 = vmatprep.subr.bf16.mxu0 %v2764
        %4551 = vmatpush1.bf16.msra.mxu0 %v2763
        %4552 = vmatprep.subr.bf16.mxu0 %v2756
        %4553 = vmatpush1.bf16.msra.mxu0 %v2755
        %4554 = vmatprep.subr.bf16.mxu0 %v2748
        %4555 = vmatpush1.bf16.msra.mxu0 %v2747
        %4556 = vmatprep.subr.bf16.mxu0 %v2740
        %4557 = vmatpush1.bf16.msra.mxu0 %v2739
        %4558 = vmatprep.subr.bf16.mxu0 %v2732
        %4559 = vmatpush1.bf16.msra.mxu0 %v2731
        %4560 = vmatprep.subr.bf16.mxu0 %v2852
        %4561 = vmatpush2.bf16.msra.mxu0 %v2851
        %4562 = vmatprep.subr.bf16.mxu0 %v2844
        %4563 = vmatpush2.bf16.msra.mxu0 %v2843
        %4564 = vmatprep.subr.bf16.mxu0 %v2836
        %4565 = vmatpush2.bf16.msra.mxu0 %v2835
        %4566 = vmatprep.subr.bf16.mxu0 %v2828
        %4567 = vmatpush2.bf16.msra.mxu0 %v2827
        %4568 = vmatprep.subr.bf16.mxu0 %v2820
        %4569 = vmatpush2.bf16.msra.mxu0 %v2819
        %4570 = vmatprep.subr.bf16.mxu0 %v2812
        %4571 = vmatpush2.bf16.msra.mxu0 %v2811
        %4572 = vmatprep.subr.bf16.mxu0 %v2804
        %4573 = vmatpush2.bf16.msra.mxu0 %v2803
        %4574 = vmatprep.subr.bf16.mxu0 %v2796
        %4575 = vmatpush2.bf16.msra.mxu0 %v2795
        %4576 = vmatprep.mubr.bf16.mxu0 %v1000
        %4577 = vmatmul.mubr.bf16.gmra.mxu0 %v999
        %v4578 = vpop.f32.mrf.mxu0
        %v4579 = vadd.f32 %v4508, %v4578
        %v4580 = vpop.f32.mrf.mxu0
        %v4581 = vadd.f32 %v4510, %v4580
        %v4582 = vpop.f32.mrf.mxu0
        %v4583 = vadd.f32 %v4512, %v4582
        %v4584 = vpop.f32.mrf.mxu0
        %v4585 = vadd.f32 %v4514, %v4584
        %4586 = vmatprep.mubr.bf16.mxu0 %v1008
        %4587 = vmatmul.mubr.bf16.gmra.mxu0 %v1007
        %v4588 = vpop.f32.mrf.mxu0
        %v4589 = vadd.f32 %v4518, %v4588
        %v4590 = vpop.f32.mrf.mxu0
        %v4591 = vadd.f32 %v4520, %v4590
        %v4592 = vpop.f32.mrf.mxu0
        %v4593 = vadd.f32 %v4522, %v4592
        %v4594 = vpop.f32.mrf.mxu0
        %v4595 = vadd.f32 %v4524, %v4594
        %4596 = vmatprep.mubr.bf16.mxu0 %v1016
        %4597 = vmatmul.mubr.bf16.gmra.mxu0 %v1015
        %v4598 = vpop.f32.mrf.mxu0
        %v4599 = vadd.f32 %v4528, %v4598
        %v4600 = vpop.f32.mrf.mxu0
        %v4601 = vadd.f32 %v4530, %v4600
        %v4602 = vpop.f32.mrf.mxu0
        %v4603 = vadd.f32 %v4532, %v4602
        %v4604 = vpop.f32.mrf.mxu0
        %v4605 = vadd.f32 %v4534, %v4604
        %4606 = vmatprep.mubr.bf16.mxu0 %v1024
        %4607 = vmatmul.mubr.bf16.gmra.mxu0 %v1023
        %v4608 = vpop.f32.mrf.mxu0
        %v4609 = vadd.f32 %v4538, %v4608
        %v4610 = vpop.f32.mrf.mxu0
        %v4611 = vadd.f32 %v4540, %v4610
        %v4612 = vpop.f32.mrf.mxu0
        %v4613 = vpop.f32.mrf.mxu0
        %4614 = vdwg.mxu0
        %4615 = vmatprep.subr.bf16.mxu0 %v2916
        %4616 = vmatpush1.bf16.msra.mxu0 %v2915
        %4617 = vmatprep.subr.bf16.mxu0 %v2908
        %4618 = vmatpush1.bf16.msra.mxu0 %v2907
        %4619 = vmatprep.subr.bf16.mxu0 %v2900
        %4620 = vmatpush1.bf16.msra.mxu0 %v2899
        %4621 = vmatprep.subr.bf16.mxu0 %v2892
        %4622 = vmatpush1.bf16.msra.mxu0 %v2891
        %4623 = vmatprep.subr.bf16.mxu0 %v2884
        %4624 = vmatpush1.bf16.msra.mxu0 %v2883
        %4625 = vmatprep.subr.bf16.mxu0 %v2876
        %4626 = vmatpush1.bf16.msra.mxu0 %v2875
        %4627 = vmatprep.subr.bf16.mxu0 %v2868
        %4628 = vmatpush1.bf16.msra.mxu0 %v2867
        %4629 = vmatprep.subr.bf16.mxu0 %v2860
        %4630 = vmatpush1.bf16.msra.mxu0 %v2859
        %4631 = vmatprep.subr.bf16.mxu0 %v2980
        %4632 = vmatpush2.bf16.msra.mxu0 %v2979
        %4633 = vmatprep.subr.bf16.mxu0 %v2972
        %4634 = vmatpush2.bf16.msra.mxu0 %v2971
        %4635 = vmatprep.subr.bf16.mxu0 %v2964
        %4636 = vmatpush2.bf16.msra.mxu0 %v2963
        %4637 = vmatprep.subr.bf16.mxu0 %v2956
        %4638 = vmatpush2.bf16.msra.mxu0 %v2955
        %4639 = vmatprep.subr.bf16.mxu0 %v2948
        %4640 = vmatpush2.bf16.msra.mxu0 %v2947
        %4641 = vmatprep.subr.bf16.mxu0 %v2940
        %4642 = vmatpush2.bf16.msra.mxu0 %v2939
        %4643 = vmatprep.subr.bf16.mxu0 %v2932
        %4644 = vmatpush2.bf16.msra.mxu0 %v2931
        %4645 = vmatprep.subr.bf16.mxu0 %v2924
        %4646 = vmatpush2.bf16.msra.mxu0 %v2923
        %4647 = vmatprep.mubr.bf16.mxu0 %v1002
        %4648 = vmatmul.mubr.bf16.gmra.mxu0 %v1001
        %v4649 = vpop.f32.mrf.mxu0
        %v4650 = vadd.f32 %v4579, %v4649
        %v4651 = vpop.f32.mrf.mxu0
        %v4652 = vadd.f32 %v4581, %v4651
        %v4653 = vpop.f32.mrf.mxu0
        %v4654 = vadd.f32 %v4583, %v4653
        %v4655 = vpop.f32.mrf.mxu0
        %v4656 = vadd.f32 %v4585, %v4655
        %4657 = vmatprep.mubr.bf16.mxu0 %v1010
        %4658 = vmatmul.mubr.bf16.gmra.mxu0 %v1009
        %v4659 = vpop.f32.mrf.mxu0
        %v4660 = vadd.f32 %v4589, %v4659
        %v4661 = vpop.f32.mrf.mxu0
        %v4662 = vadd.f32 %v4591, %v4661
        %v4663 = vpop.f32.mrf.mxu0
        %v4664 = vadd.f32 %v4593, %v4663
        %v4665 = vpop.f32.mrf.mxu0
        %v4666 = vadd.f32 %v4595, %v4665
        %4667 = vmatprep.mubr.bf16.mxu0 %v1018
        %4668 = vmatmul.mubr.bf16.gmra.mxu0 %v1017
        %v4669 = vpop.f32.mrf.mxu0
        %v4670 = vadd.f32 %v4599, %v4669
        %v4671 = vpop.f32.mrf.mxu0
        %v4672 = vadd.f32 %v4601, %v4671
        %v4673 = vpop.f32.mrf.mxu0
        %v4674 = vadd.f32 %v4603, %v4673
        %v4675 = vpop.f32.mrf.mxu0
        %v4676 = vadd.f32 %v4605, %v4675
        %4677 = vmatprep.mubr.bf16.mxu0 %v1026
        %4678 = vmatmul.mubr.bf16.gmra.mxu0 %v1025
        %v4679 = vpop.f32.mrf.mxu0
        %v4680 = vadd.f32 %v4609, %v4679
        %v4681 = vpop.f32.mrf.mxu0
        %v4682 = vadd.f32 %v4611, %v4681
        %v4683 = vpop.f32.mrf.mxu0
        %v4684 = vpop.f32.mrf.mxu0
        %4685 = vdwg.mxu0
        %4686 = vmatprep.subr.bf16.mxu0 %v3044
        %4687 = vmatpush1.bf16.msra.mxu0 %v3043
        %4688 = vmatprep.subr.bf16.mxu0 %v3036
        %4689 = vmatpush1.bf16.msra.mxu0 %v3035
        %4690 = vmatprep.subr.bf16.mxu0 %v3028
        %4691 = vmatpush1.bf16.msra.mxu0 %v3027
        %4692 = vmatprep.subr.bf16.mxu0 %v3020
        %4693 = vmatpush1.bf16.msra.mxu0 %v3019
        %4694 = vmatprep.subr.bf16.mxu0 %v3012
        %4695 = vmatpush1.bf16.msra.mxu0 %v3011
        %4696 = vmatprep.subr.bf16.mxu0 %v3004
        %4697 = vmatpush1.bf16.msra.mxu0 %v3003
        %4698 = vmatprep.subr.bf16.mxu0 %v2996
        %4699 = vmatpush1.bf16.msra.mxu0 %v2995
        %4700 = vmatprep.subr.bf16.mxu0 %v2988
        %4701 = vmatpush1.bf16.msra.mxu0 %v2987
        %4702 = vmatprep.subr.bf16.mxu0 %v3108
        %4703 = vmatpush2.bf16.msra.mxu0 %v3107
        %4704 = vmatprep.subr.bf16.mxu0 %v3100
        %4705 = vmatpush2.bf16.msra.mxu0 %v3099
        %4706 = vmatprep.subr.bf16.mxu0 %v3092
        %4707 = vmatpush2.bf16.msra.mxu0 %v3091
        %4708 = vmatprep.subr.bf16.mxu0 %v3084
        %4709 = vmatpush2.bf16.msra.mxu0 %v3083
        %4710 = vmatprep.subr.bf16.mxu0 %v3076
        %4711 = vmatpush2.bf16.msra.mxu0 %v3075
        %4712 = vmatprep.subr.bf16.mxu0 %v3068
        %4713 = vmatpush2.bf16.msra.mxu0 %v3067
        %4714 = vmatprep.subr.bf16.mxu0 %v3060
        %4715 = vmatpush2.bf16.msra.mxu0 %v3059
        %4716 = vmatprep.subr.bf16.mxu0 %v3052
        %4717 = vmatpush2.bf16.msra.mxu0 %v3051
        %4718 = vmatprep.mubr.bf16.mxu0 %v1004
        %4719 = vmatmul.mubr.bf16.gmra.mxu0 %v1003
        %v4720 = vpop.f32.mrf.mxu0
        %v4721 = vadd.f32 %v4650, %v4720
        %v4722 = vpop.f32.mrf.mxu0
        %v4723 = vadd.f32 %v4652, %v4722
        %v4724 = vpop.f32.mrf.mxu0
        %v4725 = vadd.f32 %v4654, %v4724
        %v4726 = vpop.f32.mrf.mxu0
        %v4727 = vadd.f32 %v4656, %v4726
        %4728 = vmatprep.mubr.bf16.mxu0 %v1012
        %4729 = vmatmul.mubr.bf16.gmra.mxu0 %v1011
        %v4730 = vpop.f32.mrf.mxu0
        %v4731 = vadd.f32 %v4660, %v4730
        %v4732 = vpop.f32.mrf.mxu0
        %v4733 = vadd.f32 %v4662, %v4732
        %v4734 = vpop.f32.mrf.mxu0
        %v4735 = vadd.f32 %v4664, %v4734
        %v4736 = vpop.f32.mrf.mxu0
        %v4737 = vadd.f32 %v4666, %v4736
        %4738 = vmatprep.mubr.bf16.mxu0 %v1020
        %4739 = vmatmul.mubr.bf16.gmra.mxu0 %v1019
        %v4740 = vpop.f32.mrf.mxu0
        %v4741 = vadd.f32 %v4670, %v4740
        %v4742 = vpop.f32.mrf.mxu0
        %v4743 = vadd.f32 %v4672, %v4742
        %v4744 = vpop.f32.mrf.mxu0
        %v4745 = vadd.f32 %v4674, %v4744
        %v4746 = vpop.f32.mrf.mxu0
        %v4747 = vadd.f32 %v4676, %v4746
        %4748 = vmatprep.mubr.bf16.mxu0 %v1028
        %4749 = vmatmul.mubr.bf16.gmra.mxu0 %v1027
        %v4750 = vpop.f32.mrf.mxu0
        %v4751 = vadd.f32 %v4680, %v4750
        %v4752 = vpop.f32.mrf.mxu0
        %v4753 = vadd.f32 %v4682, %v4752
        %v4754 = vpop.f32.mrf.mxu0
        %v4755 = vpop.f32.mrf.mxu0
        %4756 = vdwg.mxu0
        %v4757 = vadd.f32 %v3869, %v3873
        %v4758 = vadd.f32 %v4757, %v3879
        %v4759 = vadd.f32 %v4758, %v3883
        %v4760 = vadd.f32 %v4759, %v3889
        %v4761 = vadd.f32 %v4760, %v3893
        %vm4762 = vcmask 1040384
        %v4763 = vsel %vm4762, %v3899, 0.0
        %v4764 = vadd.f32 %v4761, %v4763
        %v4765 = vrot.slane %v4764, 4
        %v4766 = vadd.f32 %v4764, %v4765
        %v4767 = vrot.slane %v4766, 2
        %v4768 = vadd.f32 %v4766, %v4767
        %v4769 = vrot.slane %v4768, 1
        %v4770 = vadd.f32 %v4768, %v4769
        %v4771 = vadd.f32 %v3871, %v3875
        %v4772 = vadd.f32 %v4771, %v3881
        %v4773 = vadd.f32 %v4772, %v3885
        %v4774 = vadd.f32 %v4773, %v3891
        %v4775 = vadd.f32 %v4774, %v3895
        %v4776 = vsel %vm4762, %v3901, 0.0
        %v4777 = vadd.f32 %v4775, %v4776
        %v4778 = vrot.slane %v4777, 4
        %v4779 = vadd.f32 %v4777, %v4778
        %v4780 = vrot.slane %v4779, 2
        %v4781 = vadd.f32 %v4779, %v4780
        %v4782 = vrot.slane %v4781, 1
        %v4783 = vadd.f32 %v4781, %v4782
        %v4784 = vadd.f32 %v4153, %v4157
        %v4785 = vadd.f32 %v4784, %v4163
        %v4786 = vadd.f32 %v4785, %v4167
        %v4787 = vadd.f32 %v4786, %v4173
        %v4788 = vadd.f32 %v4787, %v4177
        %v4789 = vsel %vm4762, %v4183, 0.0
        %v4790 = vadd.f32 %v4788, %v4789
        %v4791 = vrot.slane %v4790, 4
        %v4792 = vadd.f32 %v4790, %v4791
        %v4793 = vrot.slane %v4792, 2
        %v4794 = vadd.f32 %v4792, %v4793
        %v4795 = vrot.slane %v4794, 1
        %v4796 = vadd.f32 %v4794, %v4795
        %v4797 = vadd.f32 %v4155, %v4159
        %v4798 = vadd.f32 %v4797, %v4165
        %v4799 = vadd.f32 %v4798, %v4169
        %v4800 = vadd.f32 %v4799, %v4175
        %v4801 = vadd.f32 %v4800, %v4179
        %v4802 = vsel %vm4762, %v4185, 0.0
        %v4803 = vadd.f32 %v4801, %v4802
        %v4804 = vrot.slane %v4803, 4
        %v4805 = vadd.f32 %v4803, %v4804
        %v4806 = vrot.slane %v4805, 2
        %v4807 = vadd.f32 %v4805, %v4806
        %v4808 = vrot.slane %v4807, 1
        %v4809 = vadd.f32 %v4807, %v4808
        %v4810 = vadd.f32 %v4437, %v4441
        %v4811 = vadd.f32 %v4810, %v4447
        %v4812 = vadd.f32 %v4811, %v4451
        %v4813 = vadd.f32 %v4812, %v4457
        %v4814 = vadd.f32 %v4813, %v4461
        %v4815 = vsel %vm4762, %v4467, 0.0
        %v4816 = vadd.f32 %v4814, %v4815
        %v4817 = vrot.slane %v4816, 4
        %v4818 = vadd.f32 %v4816, %v4817
        %v4819 = vrot.slane %v4818, 2
        %v4820 = vadd.f32 %v4818, %v4819
        %v4821 = vrot.slane %v4820, 1
        %v4822 = vadd.f32 %v4820, %v4821
        %v4823 = vadd.f32 %v4439, %v4443
        %v4824 = vadd.f32 %v4823, %v4449
        %v4825 = vadd.f32 %v4824, %v4453
        %v4826 = vadd.f32 %v4825, %v4459
        %v4827 = vadd.f32 %v4826, %v4463
        %v4828 = vsel %vm4762, %v4469, 0.0
        %v4829 = vadd.f32 %v4827, %v4828
        %v4830 = vrot.slane %v4829, 4
        %v4831 = vadd.f32 %v4829, %v4830
        %v4832 = vrot.slane %v4831, 2
        %v4833 = vadd.f32 %v4831, %v4832
        %v4834 = vrot.slane %v4833, 1
        %v4835 = vadd.f32 %v4833, %v4834
        %v4836 = vadd.f32 %v4721, %v4725
        %v4837 = vadd.f32 %v4836, %v4731
        %v4838 = vadd.f32 %v4837, %v4735
        %v4839 = vadd.f32 %v4838, %v4741
        %v4840 = vadd.f32 %v4839, %v4745
        %v4841 = vsel %vm4762, %v4751, 0.0
        %v4842 = vadd.f32 %v4840, %v4841
        %v4843 = vrot.slane %v4842, 4
        %v4844 = vadd.f32 %v4842, %v4843
        %v4845 = vrot.slane %v4844, 2
        %v4846 = vadd.f32 %v4844, %v4845
        %v4847 = vrot.slane %v4846, 1
        %v4848 = vadd.f32 %v4846, %v4847
        %v4849 = vadd.f32 %v4723, %v4727
        %v4850 = vadd.f32 %v4849, %v4733
        %v4851 = vadd.f32 %v4850, %v4737
        %v4852 = vadd.f32 %v4851, %v4743
        %v4853 = vadd.f32 %v4852, %v4747
        %v4854 = vsel %vm4762, %v4753, 0.0
        %v4855 = vadd.f32 %v4853, %v4854
        %v4856 = vrot.slane %v4855, 4
        %v4857 = vadd.f32 %v4855, %v4856
        %v4858 = vrot.slane %v4857, 2
        %v4859 = vadd.f32 %v4857, %v4858
        %v4860 = vrot.slane %v4859, 1
        %v4861 = vadd.f32 %v4859, %v4860
        %v4862 = vmul.f32 %v4770, 0.020408163
        %v4863 = vmul.f32 %v4783, 0.020408163
        %v4864 = vmul.f32 %v4796, 0.020408163
        %v4865 = vmul.f32 %v4809, 0.020408163
        %v4866 = vmul.f32 %v4822, 0.020408163
        %v4867 = vmul.f32 %v4835, 0.020408163
        %v4868 = vmul.f32 %v4848, 0.020408163
        %v4869 = vmul.f32 %v4861, 0.020408163
        %v4870 = vmul.f32 %v3869, %v3869
        %v4871 = vmul.f32 %v3871, %v3871
        %v4872 = vmul.f32 %v4153, %v4153
        %v4873 = vmul.f32 %v4155, %v4155
        %v4874 = vmul.f32 %v4437, %v4437
        %v4875 = vmul.f32 %v4439, %v4439
        %v4876 = vmul.f32 %v4721, %v4721
        %v4877 = vmul.f32 %v4723, %v4723
        %v4878 = vmul.f32 %v3873, %v3873
        %v4879 = vmul.f32 %v3875, %v3875
        %v4880 = vmul.f32 %v4157, %v4157
        %v4881 = vmul.f32 %v4159, %v4159
        %v4882 = vmul.f32 %v4441, %v4441
        %v4883 = vmul.f32 %v4443, %v4443
        %v4884 = vmul.f32 %v4725, %v4725
        %v4885 = vmul.f32 %v4727, %v4727
        %v4886 = vmul.f32 %v3879, %v3879
        %v4887 = vmul.f32 %v3881, %v3881
        %v4888 = vmul.f32 %v4163, %v4163
        %v4889 = vmul.f32 %v4165, %v4165
        %v4890 = vmul.f32 %v4447, %v4447
        %v4891 = vmul.f32 %v4449, %v4449
        %v4892 = vmul.f32 %v4731, %v4731
        %v4893 = vmul.f32 %v4733, %v4733
        %v4894 = vmul.f32 %v3883, %v3883
        %v4895 = vmul.f32 %v3885, %v3885
        %v4896 = vmul.f32 %v4167, %v4167
        %v4897 = vmul.f32 %v4169, %v4169
        %v4898 = vmul.f32 %v4451, %v4451
        %v4899 = vmul.f32 %v4453, %v4453
        %v4900 = vmul.f32 %v4735, %v4735
        %v4901 = vmul.f32 %v4737, %v4737
        %v4902 = vmul.f32 %v3889, %v3889
        %v4903 = vmul.f32 %v3891, %v3891
        %v4904 = vmul.f32 %v4173, %v4173
        %v4905 = vmul.f32 %v4175, %v4175
        %v4906 = vmul.f32 %v4457, %v4457
        %v4907 = vmul.f32 %v4459, %v4459
        %v4908 = vmul.f32 %v4741, %v4741
        %v4909 = vmul.f32 %v4743, %v4743
        %v4910 = vmul.f32 %v3893, %v3893
        %v4911 = vmul.f32 %v3895, %v3895
        %v4912 = vmul.f32 %v4177, %v4177
        %v4913 = vmul.f32 %v4179, %v4179
        %v4914 = vmul.f32 %v4461, %v4461
        %v4915 = vmul.f32 %v4463, %v4463
        %v4916 = vmul.f32 %v4745, %v4745
        %v4917 = vmul.f32 %v4747, %v4747
        %v4918 = vmul.f32 %v3899, %v3899
        %v4919 = vmul.f32 %v3901, %v3901
        %v4920 = vmul.f32 %v4183, %v4183
        %v4921 = vmul.f32 %v4185, %v4185
        %v4922 = vmul.f32 %v4467, %v4467
        %v4923 = vmul.f32 %v4469, %v4469
        %v4924 = vmul.f32 %v4751, %v4751
        %v4925 = vmul.f32 %v4753, %v4753
        %v4926 = vadd.f32 %v4870, %v4878
        %v4927 = vadd.f32 %v4926, %v4886
        %v4928 = vadd.f32 %v4927, %v4894
        %v4929 = vadd.f32 %v4928, %v4902
        %v4930 = vadd.f32 %v4929, %v4910
        %v4931 = vsel %vm4762, %v4918, 0.0
        %v4932 = vadd.f32 %v4930, %v4931
        %v4933 = vrot.slane %v4932, 4
        %v4934 = vadd.f32 %v4932, %v4933
        %v4935 = vrot.slane %v4934, 2
        %v4936 = vadd.f32 %v4934, %v4935
        %v4937 = vrot.slane %v4936, 1
        %v4938 = vadd.f32 %v4936, %v4937
        %v4939 = vadd.f32 %v4871, %v4879
        %v4940 = vadd.f32 %v4939, %v4887
        %v4941 = vadd.f32 %v4940, %v4895
        %v4942 = vadd.f32 %v4941, %v4903
        %v4943 = vadd.f32 %v4942, %v4911
        %v4944 = vsel %vm4762, %v4919, 0.0
        %v4945 = vadd.f32 %v4943, %v4944
        %v4946 = vrot.slane %v4945, 4
        %v4947 = vadd.f32 %v4945, %v4946
        %v4948 = vrot.slane %v4947, 2
        %v4949 = vadd.f32 %v4947, %v4948
        %v4950 = vrot.slane %v4949, 1
        %v4951 = vadd.f32 %v4949, %v4950
        %v4952 = vadd.f32 %v4872, %v4880
        %v4953 = vadd.f32 %v4952, %v4888
        %v4954 = vadd.f32 %v4953, %v4896
        %v4955 = vadd.f32 %v4954, %v4904
        %v4956 = vadd.f32 %v4955, %v4912
        %v4957 = vsel %vm4762, %v4920, 0.0
        %v4958 = vadd.f32 %v4956, %v4957
        %v4959 = vrot.slane %v4958, 4
        %v4960 = vadd.f32 %v4958, %v4959
        %v4961 = vrot.slane %v4960, 2
        %v4962 = vadd.f32 %v4960, %v4961
        %v4963 = vrot.slane %v4962, 1
        %v4964 = vadd.f32 %v4962, %v4963
        %v4965 = vadd.f32 %v4873, %v4881
        %v4966 = vadd.f32 %v4965, %v4889
        %v4967 = vadd.f32 %v4966, %v4897
        %v4968 = vadd.f32 %v4967, %v4905
        %v4969 = vadd.f32 %v4968, %v4913
        %v4970 = vsel %vm4762, %v4921, 0.0
        %v4971 = vadd.f32 %v4969, %v4970
        %v4972 = vrot.slane %v4971, 4
        %v4973 = vadd.f32 %v4971, %v4972
        %v4974 = vrot.slane %v4973, 2
        %v4975 = vadd.f32 %v4973, %v4974
        %v4976 = vrot.slane %v4975, 1
        %v4977 = vadd.f32 %v4975, %v4976
        %v4978 = vadd.f32 %v4874, %v4882
        %v4979 = vadd.f32 %v4978, %v4890
        %v4980 = vadd.f32 %v4979, %v4898
        %v4981 = vadd.f32 %v4980, %v4906
        %v4982 = vadd.f32 %v4981, %v4914
        %v4983 = vsel %vm4762, %v4922, 0.0
        %v4984 = vadd.f32 %v4982, %v4983
        %v4985 = vrot.slane %v4984, 4
        %v4986 = vadd.f32 %v4984, %v4985
        %v4987 = vrot.slane %v4986, 2
        %v4988 = vadd.f32 %v4986, %v4987
        %v4989 = vrot.slane %v4988, 1
        %v4990 = vadd.f32 %v4988, %v4989
        %v4991 = vadd.f32 %v4875, %v4883
        %v4992 = vadd.f32 %v4991, %v4891
        %v4993 = vadd.f32 %v4992, %v4899
        %v4994 = vadd.f32 %v4993, %v4907
        %v4995 = vadd.f32 %v4994, %v4915
        %v4996 = vsel %vm4762, %v4923, 0.0
        %v4997 = vadd.f32 %v4995, %v4996
        %v4998 = vrot.slane %v4997, 4
        %v4999 = vadd.f32 %v4997, %v4998
        %v5000 = vrot.slane %v4999, 2
        %v5001 = vadd.f32 %v4999, %v5000
        %v5002 = vrot.slane %v5001, 1
        %v5003 = vadd.f32 %v5001, %v5002
        %v5004 = vadd.f32 %v4876, %v4884
        %v5005 = vadd.f32 %v5004, %v4892
        %v5006 = vadd.f32 %v5005, %v4900
        %v5007 = vadd.f32 %v5006, %v4908
        %v5008 = vadd.f32 %v5007, %v4916
        %v5009 = vsel %vm4762, %v4924, 0.0
        %v5010 = vadd.f32 %v5008, %v5009
        %v5011 = vrot.slane %v5010, 4
        %v5012 = vadd.f32 %v5010, %v5011
        %v5013 = vrot.slane %v5012, 2
        %v5014 = vadd.f32 %v5012, %v5013
        %v5015 = vrot.slane %v5014, 1
        %v5016 = vadd.f32 %v5014, %v5015
        %v5017 = vadd.f32 %v4877, %v4885
        %v5018 = vadd.f32 %v5017, %v4893
        %v5019 = vadd.f32 %v5018, %v4901
        %v5020 = vadd.f32 %v5019, %v4909
        %v5021 = vadd.f32 %v5020, %v4917
        %v5022 = vsel %vm4762, %v4925, 0.0
        %v5023 = vadd.f32 %v5021, %v5022
        %v5024 = vrot.slane %v5023, 4
        %v5025 = vadd.f32 %v5023, %v5024
        %v5026 = vrot.slane %v5025, 2
        %v5027 = vadd.f32 %v5025, %v5026
        %v5028 = vrot.slane %v5027, 1
        %v5029 = vadd.f32 %v5027, %v5028
        %v5030 = vmul.f32 %v4938, 0.020408163
        %v5031 = vmul.f32 %v4951, 0.020408163
        %v5032 = vmul.f32 %v4964, 0.020408163
        %v5033 = vmul.f32 %v4977, 0.020408163
        %v5034 = vmul.f32 %v4990, 0.020408163
        %v5035 = vmul.f32 %v5003, 0.020408163
        %v5036 = vmul.f32 %v5016, 0.020408163
        %v5037 = vmul.f32 %v5029, 0.020408163
        %v5038 = vmul.f32 %v4862, %v4862
        %v5039 = vmul.f32 %v4863, %v4863
        %v5040 = vmul.f32 %v4864, %v4864
        %v5041 = vmul.f32 %v4865, %v4865
        %v5042 = vmul.f32 %v4866, %v4866
        %v5043 = vmul.f32 %v4867, %v4867
        %v5044 = vmul.f32 %v4868, %v4868
        %v5045 = vmul.f32 %v4869, %v4869
        %v5046 = vsub.f32 %v5030, %v5038
        %v5047 = vsub.f32 %v5031, %v5039
        %v5048 = vsub.f32 %v5032, %v5040
        %v5049 = vsub.f32 %v5033, %v5041
        %v5050 = vsub.f32 %v5034, %v5042
        %v5051 = vsub.f32 %v5035, %v5043
        %v5052 = vsub.f32 %v5036, %v5044
        %v5053 = vsub.f32 %v5037, %v5045
        %v5054 = vadd.f32 %v5046, 1e-05
        %v5055 = vadd.f32 %v5047, 1e-05
        %v5056 = vadd.f32 %v5048, 1e-05
        %v5057 = vadd.f32 %v5049, 1e-05
        %v5058 = vadd.f32 %v5050, 1e-05
        %v5059 = vadd.f32 %v5051, 1e-05
        %v5060 = vadd.f32 %v5052, 1e-05
        %v5061 = vadd.f32 %v5053, 1e-05
        %v5062 = vrsqrt.pop %v5054
        %v5063 = vrsqrt.pop %v5055
        %v5064 = vrsqrt.pop %v5056
        %v5065 = vrsqrt.pop %v5057
        %v5066 = vrsqrt.pop %v5058
        %v5067 = vrsqrt.pop %v5059
        %v5068 = vrsqrt.pop %v5060
        %v5069 = vrsqrt.pop %v5061
        %v5070 = vld [vmem:[%s308] sm:$0xff]
        %v5072 = vlaneseq
        %v5073 = vshrl.u32 %v5072, 7
        %v5074 = vsub.s32 0, %v5073
        %v5075 = vrot.slane %v5070, %v5074
        %v5076 = vlaneseq
        %v5077 = vshrl.u32 %v5076, 7
        %v5078 = vsub.s32 1, %v5077
        %v5079 = vrot.slane %v5070, %v5078
        %v5080 = vlaneseq
        %v5081 = vshrl.u32 %v5080, 7
        %v5082 = vsub.s32 2, %v5081
        %v5083 = vrot.slane %v5070, %v5082
        %v5084 = vlaneseq
        %v5085 = vshrl.u32 %v5084, 7
        %v5086 = vsub.s32 3, %v5085
        %v5087 = vrot.slane %v5070, %v5086
        %v5088 = vlaneseq
        %v5089 = vshrl.u32 %v5088, 7
        %v5090 = vsub.s32 4, %v5089
        %v5091 = vrot.slane %v5070, %v5090
        %v5092 = vlaneseq
        %v5093 = vshrl.u32 %v5092, 7
        %v5094 = vsub.s32 5, %v5093
        %v5095 = vrot.slane %v5070, %v5094
        %v5096 = vlaneseq
        %v5097 = vshrl.u32 %v5096, 7
        %v5098 = vsub.s32 6, %v5097
        %v5099 = vrot.slane %v5070, %v5098
        %v5100 = vlaneseq
        %v5101 = vshrl.u32 %v5100, 7
        %v5102 = vsub.s32 7, %v5101
        %v5103 = vrot.slane %v5070, %v5102
        %v5112 = vmul.f32 %v5062, %v5075
        %v5113 = vmul.f32 %v5063, %v5079
        %v5114 = vmul.f32 %v5064, %v5083
        %v5115 = vmul.f32 %v5065, %v5087
        %v5116 = vmul.f32 %v5066, %v5091
        %v5117 = vmul.f32 %v5067, %v5095
        %v5118 = vmul.f32 %v5068, %v5099
        %v5119 = vmul.f32 %v5069, %v5103
        %v5120 = vld [vmem:[%s317] sm:$0xff]
        %v5121 = vmul.f32 %v4862, %v5112
        %v5122 = vmul.f32 %v4863, %v5113
        %v5123 = vmul.f32 %v4864, %v5114
        %v5124 = vmul.f32 %v4865, %v5115
        %v5125 = vmul.f32 %v4866, %v5116
        %v5126 = vmul.f32 %v4867, %v5117
        %v5127 = vmul.f32 %v4868, %v5118
        %v5128 = vmul.f32 %v4869, %v5119
        %v5137 = vcombine.low %v5121, %v5122
        %v5138 = vcombine.low %v5123, %v5124
        %v5139 = vcombine.low %v5125, %v5126
        %v5140 = vcombine.low %v5127, %v5128
        %v5142 = vunpack.c.l.s4 1966171168
        %v5143 = vunpack.c.0.s8 %v5142
        %v5144 = vlaneseq
        %v5145 = vshrl.u32 %v5144, 7
        %v5146 = vsub.s32 %v5143, %v5145
        %v5147 = vrot.slane %v5137, %v5146
        %v5149 = vunpack.c.l.s4 1966171168
        %v5150 = vunpack.c.0.s8 %v5149
        %v5151 = vlaneseq
        %v5152 = vshrl.u32 %v5151, 7
        %v5153 = vsub.s32 %v5150, %v5152
        %v5154 = vrot.slane %v5138, %v5153
        %v5156 = vunpack.c.l.s4 1966171168
        %v5157 = vunpack.c.0.s8 %v5156
        %v5158 = vlaneseq
        %v5159 = vshrl.u32 %v5158, 7
        %v5160 = vsub.s32 %v5157, %v5159
        %v5161 = vrot.slane %v5139, %v5160
        %v5163 = vunpack.c.l.s4 1966171168
        %v5164 = vunpack.c.0.s8 %v5163
        %v5165 = vlaneseq
        %v5166 = vshrl.u32 %v5165, 7
        %v5167 = vsub.s32 %v5164, %v5166
        %v5168 = vrot.slane %v5140, %v5167
        %v5169 = vcombine.low %v5147, %v5154
        %v5170 = vcombine.low %v5161, %v5168
        %v5172 = vunpack.c.l.s4 1966171168
        %v5173 = vunpack.c.0.s8 %v5172
        %v5174 = vlaneseq
        %v5175 = vshrl.u32 %v5174, 7
        %v5176 = vsub.s32 %v5173, %v5175
        %v5177 = vrot.slane %v5169, %v5176
        %v5179 = vunpack.c.l.s4 1966171168
        %v5180 = vunpack.c.0.s8 %v5179
        %v5181 = vlaneseq
        %v5182 = vshrl.u32 %v5181, 7
        %v5183 = vsub.s32 %v5180, %v5182
        %v5184 = vrot.slane %v5170, %v5183
        %v5185 = vcombine.low %v5177, %v5184
        %v5187 = vsub.f32 %v5120, %v5185
        %v5188 = vlaneseq
        %v5189 = vshrl.u32 %v5188, 7
        %v5190 = vsub.s32 0, %v5189
        %v5191 = vrot.slane %v5112, %v5190
        %v5192 = vlaneseq
        %v5193 = vshrl.u32 %v5192, 7
        %v5194 = vsub.s32 0, %v5193
        %v5195 = vrot.slane %v5113, %v5194
        %v5196 = vlaneseq
        %v5197 = vshrl.u32 %v5196, 7
        %v5198 = vsub.s32 0, %v5197
        %v5199 = vrot.slane %v5114, %v5198
        %v5200 = vlaneseq
        %v5201 = vshrl.u32 %v5200, 7
        %v5202 = vsub.s32 0, %v5201
        %v5203 = vrot.slane %v5115, %v5202
        %v5204 = vlaneseq
        %v5205 = vshrl.u32 %v5204, 7
        %v5206 = vsub.s32 0, %v5205
        %v5207 = vrot.slane %v5116, %v5206
        %v5208 = vlaneseq
        %v5209 = vshrl.u32 %v5208, 7
        %v5210 = vsub.s32 0, %v5209
        %v5211 = vrot.slane %v5117, %v5210
        %v5212 = vlaneseq
        %v5213 = vshrl.u32 %v5212, 7
        %v5214 = vsub.s32 0, %v5213
        %v5215 = vrot.slane %v5118, %v5214
        %v5216 = vlaneseq
        %v5217 = vshrl.u32 %v5216, 7
        %v5218 = vsub.s32 0, %v5217
        %v5219 = vrot.slane %v5119, %v5218
        %v5220 = vmul.f32 %v3869, %v5191
        %v5221 = vmul.f32 %v3871, %v5195
        %v5222 = vmul.f32 %v4153, %v5199
        %v5223 = vmul.f32 %v4155, %v5203
        %v5224 = vmul.f32 %v4437, %v5207
        %v5225 = vmul.f32 %v4439, %v5211
        %v5226 = vmul.f32 %v4721, %v5215
        %v5227 = vmul.f32 %v4723, %v5219
        %v5228 = vmul.f32 %v3873, %v5191
        %v5229 = vmul.f32 %v3875, %v5195
        %v5230 = vmul.f32 %v4157, %v5199
        %v5231 = vmul.f32 %v4159, %v5203
        %v5232 = vmul.f32 %v4441, %v5207
        %v5233 = vmul.f32 %v4443, %v5211
        %v5234 = vmul.f32 %v4725, %v5215
        %v5235 = vmul.f32 %v4727, %v5219
        %v5236 = vmul.f32 %v3879, %v5191
        %v5237 = vmul.f32 %v3881, %v5195
        %v5238 = vmul.f32 %v4163, %v5199
        %v5239 = vmul.f32 %v4165, %v5203
        %v5240 = vmul.f32 %v4447, %v5207
        %v5241 = vmul.f32 %v4449, %v5211
        %v5242 = vmul.f32 %v4731, %v5215
        %v5243 = vmul.f32 %v4733, %v5219
        %v5244 = vmul.f32 %v3883, %v5191
        %v5245 = vmul.f32 %v3885, %v5195
        %v5246 = vmul.f32 %v4167, %v5199
        %v5247 = vmul.f32 %v4169, %v5203
        %v5248 = vmul.f32 %v4451, %v5207
        %v5249 = vmul.f32 %v4453, %v5211
        %v5250 = vmul.f32 %v4735, %v5215
        %v5251 = vmul.f32 %v4737, %v5219
        %v5252 = vmul.f32 %v3889, %v5191
        %v5253 = vmul.f32 %v3891, %v5195
        %v5254 = vmul.f32 %v4173, %v5199
        %v5255 = vmul.f32 %v4175, %v5203
        %v5256 = vmul.f32 %v4457, %v5207
        %v5257 = vmul.f32 %v4459, %v5211
        %v5258 = vmul.f32 %v4741, %v5215
        %v5259 = vmul.f32 %v4743, %v5219
        %v5260 = vmul.f32 %v3893, %v5191
        %v5261 = vmul.f32 %v3895, %v5195
        %v5262 = vmul.f32 %v4177, %v5199
        %v5263 = vmul.f32 %v4179, %v5203
        %v5264 = vmul.f32 %v4461, %v5207
        %v5265 = vmul.f32 %v4463, %v5211
        %v5266 = vmul.f32 %v4745, %v5215
        %v5267 = vmul.f32 %v4747, %v5219
        %v5268 = vmul.f32 %v3899, %v5191
        %v5269 = vmul.f32 %v3901, %v5195
        %v5270 = vmul.f32 %v4183, %v5199
        %v5271 = vmul.f32 %v4185, %v5203
        %v5272 = vmul.f32 %v4467, %v5207
        %v5273 = vmul.f32 %v4469, %v5211
        %v5274 = vmul.f32 %v4751, %v5215
        %v5275 = vmul.f32 %v4753, %v5219
        %v5277 = vlaneseq
        %v5278 = vshrl.u32 %v5277, 7
        %v5279 = vsub.s32 0, %v5278
        %v5280 = vrot.slane %v5187, %v5279
        %v5281 = vlaneseq
        %v5282 = vshrl.u32 %v5281, 7
        %v5283 = vsub.s32 1, %v5282
        %v5284 = vrot.slane %v5187, %v5283
        %v5285 = vlaneseq
        %v5286 = vshrl.u32 %v5285, 7
        %v5287 = vsub.s32 2, %v5286
        %v5288 = vrot.slane %v5187, %v5287
        %v5289 = vlaneseq
        %v5290 = vshrl.u32 %v5289, 7
        %v5291 = vsub.s32 3, %v5290
        %v5292 = vrot.slane %v5187, %v5291
        %v5293 = vlaneseq
        %v5294 = vshrl.u32 %v5293, 7
        %v5295 = vsub.s32 4, %v5294
        %v5296 = vrot.slane %v5187, %v5295
        %v5297 = vlaneseq
        %v5298 = vshrl.u32 %v5297, 7
        %v5299 = vsub.s32 5, %v5298
        %v5300 = vrot.slane %v5187, %v5299
        %v5301 = vlaneseq
        %v5302 = vshrl.u32 %v5301, 7
        %v5303 = vsub.s32 6, %v5302
        %v5304 = vrot.slane %v5187, %v5303
        %v5305 = vlaneseq
        %v5306 = vshrl.u32 %v5305, 7
        %v5307 = vsub.s32 7, %v5306
        %v5308 = vrot.slane %v5187, %v5307
        %v5317 = vadd.f32 %v5220, %v5280
        %v5318 = vadd.f32 %v5221, %v5284
        %v5319 = vadd.f32 %v5222, %v5288
        %v5320 = vadd.f32 %v5223, %v5292
        %v5321 = vadd.f32 %v5224, %v5296
        %v5322 = vadd.f32 %v5225, %v5300
        %v5323 = vadd.f32 %v5226, %v5304
        %v5324 = vadd.f32 %v5227, %v5308
        %v5325 = vadd.f32 %v5228, %v5280
        %v5326 = vadd.f32 %v5229, %v5284
        %v5327 = vadd.f32 %v5230, %v5288
        %v5328 = vadd.f32 %v5231, %v5292
        %v5329 = vadd.f32 %v5232, %v5296
        %v5330 = vadd.f32 %v5233, %v5300
        %v5331 = vadd.f32 %v5234, %v5304
        %v5332 = vadd.f32 %v5235, %v5308
        %v5333 = vadd.f32 %v5236, %v5280
        %v5334 = vadd.f32 %v5237, %v5284
        %v5335 = vadd.f32 %v5238, %v5288
        %v5336 = vadd.f32 %v5239, %v5292
        %v5337 = vadd.f32 %v5240, %v5296
        %v5338 = vadd.f32 %v5241, %v5300
        %v5339 = vadd.f32 %v5242, %v5304
        %v5340 = vadd.f32 %v5243, %v5308
        %v5341 = vadd.f32 %v5244, %v5280
        %v5342 = vadd.f32 %v5245, %v5284
        %v5343 = vadd.f32 %v5246, %v5288
        %v5344 = vadd.f32 %v5247, %v5292
        %v5345 = vadd.f32 %v5248, %v5296
        %v5346 = vadd.f32 %v5249, %v5300
        %v5347 = vadd.f32 %v5250, %v5304
        %v5348 = vadd.f32 %v5251, %v5308
        %v5349 = vadd.f32 %v5252, %v5280
        %v5350 = vadd.f32 %v5253, %v5284
        %v5351 = vadd.f32 %v5254, %v5288
        %v5352 = vadd.f32 %v5255, %v5292
        %v5353 = vadd.f32 %v5256, %v5296
        %v5354 = vadd.f32 %v5257, %v5300
        %v5355 = vadd.f32 %v5258, %v5304
        %v5356 = vadd.f32 %v5259, %v5308
        %v5357 = vadd.f32 %v5260, %v5280
        %v5358 = vadd.f32 %v5261, %v5284
        %v5359 = vadd.f32 %v5262, %v5288
        %v5360 = vadd.f32 %v5263, %v5292
        %v5361 = vadd.f32 %v5264, %v5296
        %v5362 = vadd.f32 %v5265, %v5300
        %v5363 = vadd.f32 %v5266, %v5304
        %v5364 = vadd.f32 %v5267, %v5308
        %v5365 = vadd.f32 %v5268, %v5280
        %v5366 = vadd.f32 %v5269, %v5284
        %v5367 = vadd.f32 %v5270, %v5288
        %v5368 = vadd.f32 %v5271, %v5292
        %v5369 = vadd.f32 %v5272, %v5296
        %v5370 = vadd.f32 %v5273, %v5300
        %v5371 = vadd.f32 %v5274, %v5304
        %v5372 = vadd.f32 %v5275, %v5308
        %v5373 = vld [vmem:[%s326] sm:$0xff]
        %v5374 = vld [vmem:[%s326 + $0x8] sm:$0xff]
        %v5375 = vld [vmem:[%s326 + $0x10] sm:$0xff]
        %v5376 = vld [vmem:[%s326 + $0x18] sm:$0xff]
        %v5377 = vld [vmem:[%s326 + $0x20] sm:$0xff]
        %v5378 = vld [vmem:[%s326 + $0x28] sm:$0xff]
        %v5379 = vld [vmem:[%s326 + $0x30] sm:$0xff]
        %v5380 = vld [vmem:[%s326 + $0x38] sm:$0xff]
        %v5381 = vld [vmem:[%s326 + $0x40] sm:$0xff]
        %v5382 = vld [vmem:[%s326 + $0x48] sm:$0xff]
        %v5383 = vld [vmem:[%s326 + $0x50] sm:$0xff]
        %v5384 = vld [vmem:[%s326 + $0x58] sm:$0xff]
        %v5385 = vld [vmem:[%s326 + $0x60] sm:$0xff]
        %v5386 = vld [vmem:[%s326 + $0x68] sm:$0xff]
        %v5387 = vld [vmem:[%s326 + $0x70] sm:$0xff]
        %v5388 = vld [vmem:[%s326 + $0x78] sm:$0xff]
        %v5389 = vld [vmem:[%s326 + $0x80] sm:$0xff]
        %v5390 = vld [vmem:[%s326 + $0x88] sm:$0xff]
        %v5391 = vld [vmem:[%s326 + $0x90] sm:$0xff]
        %v5392 = vld [vmem:[%s326 + $0x98] sm:$0xff]
        %v5393 = vld [vmem:[%s326 + $0xa0] sm:$0xff]
        %v5394 = vld [vmem:[%s326 + $0xa8] sm:$0xff]
        %v5395 = vld [vmem:[%s326 + $0xb0] sm:$0xff]
        %v5396 = vld [vmem:[%s326 + $0xb8] sm:$0xff]
        %v5397 = vld [vmem:[%s326 + $0xc0] sm:$0xff]
        %v5398 = vld [vmem:[%s326 + $0xc8] sm:$0xff]
        %v5399 = vld [vmem:[%s326 + $0xd0] sm:$0xff]
        %v5400 = vld [vmem:[%s326 + $0xd8] sm:$0xff]
        %v5401 = vld [vmem:[%s326 + $0xe0] sm:$0xff]
        %v5402 = vld [vmem:[%s326 + $0xe8] sm:$0xff]
        %v5403 = vld [vmem:[%s326 + $0xf0] sm:$0xff]
        %v5404 = vld [vmem:[%s326 + $0xf8] sm:$0xff]
        %v5405 = vld [vmem:[%s326 + $0x100] sm:$0xff]
        %v5406 = vld [vmem:[%s326 + $0x108] sm:$0xff]
        %v5407 = vld [vmem:[%s326 + $0x110] sm:$0xff]
        %v5408 = vld [vmem:[%s326 + $0x118] sm:$0xff]
        %v5409 = vld [vmem:[%s326 + $0x120] sm:$0xff]
        %v5410 = vld [vmem:[%s326 + $0x128] sm:$0xff]
        %v5411 = vld [vmem:[%s326 + $0x130] sm:$0xff]
        %v5412 = vld [vmem:[%s326 + $0x138] sm:$0xff]
        %v5413 = vld [vmem:[%s326 + $0x140] sm:$0xff]
        %v5414 = vld [vmem:[%s326 + $0x148] sm:$0xff]
        %v5415 = vld [vmem:[%s326 + $0x150] sm:$0xff]
        %v5416 = vld [vmem:[%s326 + $0x158] sm:$0xff]
        %v5417 = vld [vmem:[%s326 + $0x160] sm:$0xff]
        %v5418 = vld [vmem:[%s326 + $0x168] sm:$0xff]
        %v5419 = vld [vmem:[%s326 + $0x170] sm:$0xff]
        %v5420 = vld [vmem:[%s326 + $0x178] sm:$0xff]
        %v5421 = vld [vmem:[%s326 + $0x180] sm:$0x1]
        %v5422 = vld [vmem:[%s326 + $0x188] sm:$0x1]
        %v5423 = vld [vmem:[%s326 + $0x190] sm:$0x1]
        %v5424 = vld [vmem:[%s326 + $0x198] sm:$0x1]
        %v5425 = vld [vmem:[%s326 + $0x1a0] sm:$0x1]
        %v5426 = vld [vmem:[%s326 + $0x1a8] sm:$0x1]
        %v5427 = vld [vmem:[%s326 + $0x1b0] sm:$0x1]
        %v5428 = vld [vmem:[%s326 + $0x1b8] sm:$0x1]
        %v5429 = vadd.f32 %v5317, %v5373
        %v5430 = vadd.f32 %v5318, %v5374
        %v5431 = vadd.f32 %v5319, %v5375
        %v5432 = vadd.f32 %v5320, %v5376
        %v5433 = vadd.f32 %v5321, %v5377
        %v5434 = vadd.f32 %v5322, %v5378
        %v5435 = vadd.f32 %v5323, %v5379
        %v5436 = vadd.f32 %v5324, %v5380
        %v5437 = vadd.f32 %v5325, %v5381
        %v5438 = vadd.f32 %v5326, %v5382
        %v5439 = vadd.f32 %v5327, %v5383
        %v5440 = vadd.f32 %v5328, %v5384
        %v5441 = vadd.f32 %v5329, %v5385
        %v5442 = vadd.f32 %v5330, %v5386
        %v5443 = vadd.f32 %v5331, %v5387
        %v5444 = vadd.f32 %v5332, %v5388
        %v5445 = vadd.f32 %v5333, %v5389
        %v5446 = vadd.f32 %v5334, %v5390
        %v5447 = vadd.f32 %v5335, %v5391
        %v5448 = vadd.f32 %v5336, %v5392
        %v5449 = vadd.f32 %v5337, %v5393
        %v5450 = vadd.f32 %v5338, %v5394
        %v5451 = vadd.f32 %v5339, %v5395
        %v5452 = vadd.f32 %v5340, %v5396
        %v5453 = vadd.f32 %v5341, %v5397
        %v5454 = vadd.f32 %v5342, %v5398
        %v5455 = vadd.f32 %v5343, %v5399
        %v5456 = vadd.f32 %v5344, %v5400
        %v5457 = vadd.f32 %v5345, %v5401
        %v5458 = vadd.f32 %v5346, %v5402
        %v5459 = vadd.f32 %v5347, %v5403
        %v5460 = vadd.f32 %v5348, %v5404
        %v5461 = vadd.f32 %v5349, %v5405
        %v5462 = vadd.f32 %v5350, %v5406
        %v5463 = vadd.f32 %v5351, %v5407
        %v5464 = vadd.f32 %v5352, %v5408
        %v5465 = vadd.f32 %v5353, %v5409
        %v5466 = vadd.f32 %v5354, %v5410
        %v5467 = vadd.f32 %v5355, %v5411
        %v5468 = vadd.f32 %v5356, %v5412
        %v5469 = vadd.f32 %v5357, %v5413
        %v5470 = vadd.f32 %v5358, %v5414
        %v5471 = vadd.f32 %v5359, %v5415
        %v5472 = vadd.f32 %v5360, %v5416
        %v5473 = vadd.f32 %v5361, %v5417
        %v5474 = vadd.f32 %v5362, %v5418
        %v5475 = vadd.f32 %v5363, %v5419
        %v5476 = vadd.f32 %v5364, %v5420
        %v5477 = vadd.f32 %v5365, %v5421
        %v5478 = vadd.f32 %v5366, %v5422
        %v5479 = vadd.f32 %v5367, %v5423
        %v5480 = vadd.f32 %v5368, %v5424
        %v5481 = vadd.f32 %v5369, %v5425
        %v5482 = vadd.f32 %v5370, %v5426
        %v5483 = vadd.f32 %v5371, %v5427
        %v5484 = vadd.f32 %v5372, %v5428
        %5485 = vst [vmem:[%s367] sm:$0xff] %v5429
        %5486 = vst [vmem:[%s367 + $0x8] sm:$0xff] %v5430
        %5487 = vst [vmem:[%s367 + $0x10] sm:$0xff] %v5431
        %5488 = vst [vmem:[%s367 + $0x18] sm:$0xff] %v5432
        %5489 = vst [vmem:[%s367 + $0x20] sm:$0xff] %v5433
        %5490 = vst [vmem:[%s367 + $0x28] sm:$0xff] %v5434
        %5491 = vst [vmem:[%s367 + $0x30] sm:$0xff] %v5435
        %5492 = vst [vmem:[%s367 + $0x38] sm:$0xff] %v5436
        %5493 = vst [vmem:[%s367 + $0x40] sm:$0xff] %v5437
        %5494 = vst [vmem:[%s367 + $0x48] sm:$0xff] %v5438
        %5495 = vst [vmem:[%s367 + $0x50] sm:$0xff] %v5439
        %5496 = vst [vmem:[%s367 + $0x58] sm:$0xff] %v5440
        %5497 = vst [vmem:[%s367 + $0x60] sm:$0xff] %v5441
        %5498 = vst [vmem:[%s367 + $0x68] sm:$0xff] %v5442
        %5499 = vst [vmem:[%s367 + $0x70] sm:$0xff] %v5443
        %5500 = vst [vmem:[%s367 + $0x78] sm:$0xff] %v5444
        %5501 = vst [vmem:[%s367 + $0x80] sm:$0xff] %v5445
        %5502 = vst [vmem:[%s367 + $0x88] sm:$0xff] %v5446
        %5503 = vst [vmem:[%s367 + $0x90] sm:$0xff] %v5447
        %5504 = vst [vmem:[%s367 + $0x98] sm:$0xff] %v5448
        %5505 = vst [vmem:[%s367 + $0xa0] sm:$0xff] %v5449
        %5506 = vst [vmem:[%s367 + $0xa8] sm:$0xff] %v5450
        %5507 = vst [vmem:[%s367 + $0xb0] sm:$0xff] %v5451
        %5508 = vst [vmem:[%s367 + $0xb8] sm:$0xff] %v5452
        %5509 = vst [vmem:[%s367 + $0xc0] sm:$0xff] %v5453
        %5510 = vst [vmem:[%s367 + $0xc8] sm:$0xff] %v5454
        %5511 = vst [vmem:[%s367 + $0xd0] sm:$0xff] %v5455
        %5512 = vst [vmem:[%s367 + $0xd8] sm:$0xff] %v5456
        %5513 = vst [vmem:[%s367 + $0xe0] sm:$0xff] %v5457
        %5514 = vst [vmem:[%s367 + $0xe8] sm:$0xff] %v5458
        %5515 = vst [vmem:[%s367 + $0xf0] sm:$0xff] %v5459
        %5516 = vst [vmem:[%s367 + $0xf8] sm:$0xff] %v5460
        %5517 = vst [vmem:[%s367 + $0x100] sm:$0xff] %v5461
        %5518 = vst [vmem:[%s367 + $0x108] sm:$0xff] %v5462
        %5519 = vst [vmem:[%s367 + $0x110] sm:$0xff] %v5463
        %5520 = vst [vmem:[%s367 + $0x118] sm:$0xff] %v5464
        %5521 = vst [vmem:[%s367 + $0x120] sm:$0xff] %v5465
        %5522 = vst [vmem:[%s367 + $0x128] sm:$0xff] %v5466
        %5523 = vst [vmem:[%s367 + $0x130] sm:$0xff] %v5467
        %5524 = vst [vmem:[%s367 + $0x138] sm:$0xff] %v5468
        %5525 = vst [vmem:[%s367 + $0x140] sm:$0xff] %v5469
        %5526 = vst [vmem:[%s367 + $0x148] sm:$0xff] %v5470
        %5527 = vst [vmem:[%s367 + $0x150] sm:$0xff] %v5471
        %5528 = vst [vmem:[%s367 + $0x158] sm:$0xff] %v5472
        %5529 = vst [vmem:[%s367 + $0x160] sm:$0xff] %v5473
        %5530 = vst [vmem:[%s367 + $0x168] sm:$0xff] %v5474
        %5531 = vst [vmem:[%s367 + $0x170] sm:$0xff] %v5475
        %5532 = vst [vmem:[%s367 + $0x178] sm:$0xff] %v5476
        %5533 = vst [vmem:[%s367 + $0x180] sm:$0x1] %v5477
        %5534 = vst [vmem:[%s367 + $0x188] sm:$0x1] %v5478
        %5535 = vst [vmem:[%s367 + $0x190] sm:$0x1] %v5479
        %5536 = vst [vmem:[%s367 + $0x198] sm:$0x1] %v5480
        %5537 = vst [vmem:[%s367 + $0x1a0] sm:$0x1] %v5481
        %5538 = vst [vmem:[%s367 + $0x1a8] sm:$0x1] %v5482
        %5539 = vst [vmem:[%s367 + $0x1b0] sm:$0x1] %v5483
        %5540 = vst [vmem:[%s367 + $0x1b8] sm:$0x1] %v5484
        %s5541 = sand.u32 %s159, 1
        %s5542 = scalar_lea.sflag [#allocation4], %s5541
        %s5543 = sand.u32 %s159, 1
        %s5544 = smul.addr %s5543, 448
        %s5545 = scalar_lea.vmem [#allocation11], %s5544
        // Predicated region
        $region61: #{tpu_custom_call.1} parent=39 // pred_check
          %p5546 = pneg %p169
        $region62: #{tpu_custom_call.1} parent=39 // pred_check_branch
          %5548 = sbr.rel (%p5546) target = $region64
        $region63: #{tpu_custom_call.1} parent=39 // pred_region
          %s5549 = smul.u32 8, %s26
          %s5551 = ssub.s32 7168, 7168
          %5552 = vsyncadd %s5542, %s5551
          %s5553 = smul.addr %s5549, 128
          %s5554 = scalar_lea.hbm %s5, %s5553
          %s5555 = sshll.u32 %s5545, 4
          %s5556 = int_to_ptr.vmem [resolvable:$true] %s5555
          %5561 = dma.vmem_to_hbm [thread:$0]  %s5556, 7168, %s5554, %s5542, 1024, 2048, 64
        $region64: #{tpu_custom_call.1} parent=39 // pred_fallthru
          _
      $region40: #{tpu_custom_call.1} parent=5 // pred_fallthru
        _
      %p5562 = scmp.le.s32.totalorder 2, %s21
      // Predicated region
      $region65: #{tpu_custom_call.1} parent=5 // pred_check
        %p5563 = pneg %p5562
      $region66: #{tpu_custom_call.1} parent=5 // pred_check_branch
        %5565 = sbr.rel (%p5563) target = $region68
      $region67: #{tpu_custom_call.1} parent=5 // pred_region
        %s5566 = ssub.s32 %s21, 2
        // Predicated region
        $region69: #{tpu_custom_call.1} parent=67 // pred_check
          %p5567 = pneg %p175
        $region70: #{tpu_custom_call.1} parent=67 // pred_check_branch
          %5569 = sbr.rel (%p5567) target = $region72
        $region71: #{tpu_custom_call.1} parent=67 // pred_region
          %s5570 = sand.u32 %s160, 1
          %s5571 = scalar_lea.sflag [#allocation4], %s5570
          %s5572 = sand.u32 %s160, 1
          %s5573 = smul.addr %s5572, 448
          %s5574 = scalar_lea.vmem [#allocation11], %s5573
          %5575 = dma.done %s5571, 7168
        $region72: #{tpu_custom_call.1} parent=67 // pred_fallthru
          _
      $region68: #{tpu_custom_call.1} parent=5 // pred_fallthru
        _
    $region6: #{tpu_custom_call.1} parent=1 // loop_footer
      %s25 = sadd.s32 1, %s21
    $region7: #{tpu_custom_call.1} parent=1 // loop_footer_branch
      %20 = sbr.rel target = $region3
    $region8: #{tpu_custom_call.1} parent=1 // loop_exit
      _
    %5576 = vsyncpa [#allocation3], 1
    %s5577 = scalar_lea.sflag [#allocation3], 1
    %5578 = vsyncpa %s5577, 1
    %5579 = vsyncpa [#allocation6], 1
    %s5580 = scalar_lea.sflag [#allocation6], 1
    %5581 = vsyncpa %s5580, 1
    %5582 = vsyncpa [#allocation9], 1
    %s5583 = scalar_lea.sflag [#allocation9], 1
    %5584 = vsyncpa %s5583, 1
    %5585 = vsyncpa [#allocation4], 1
    %s5586 = scalar_lea.sflag [#allocation4], 1
    %5587 = vsyncpa %s5586, 1

</llo_original>
